<compile_context>
chip_gen: v5e
topology: v5e:2x2
jax: 0.10.0
libtpu: 0.0.40
codegen_flags: <defaults>
</compile_context>

<pallas_src>
import functools

import jax
import jax.numpy as jnp
from jax.experimental import pallas as pl
from jax.experimental.pallas import tpu as pltpu

LANES = 128


def _round_up(x, m):
    return (x + m - 1) // m * m


def _fold_bn(gamma, beta, mean, var, eps=1e-5):
    scale = gamma / jnp.sqrt(var + eps)
    return scale, beta - mean * scale


def _depsep_kernel(xm_ref, xh_ref, dww_ref, dwb_ref, pww_ref, pwb_ref,
                   o_ref, y_ref, *, stride, th, wo, wh):
    """One (batch, row-tile) grid step.

    xm_ref : (1, th*stride, Wp, Cp) bf16  main rows of the padded NHWC input tile
    xh_ref : (1, 3-stride, Wp, Cp)  bf16  bottom halo rows
    dww_ref: (9, Cp)  f32                 depthwise 3x3 weights * BN1 scale (tap = kh*3+kw)
    dwb_ref: (1, Cp)  f32                 folded BN1 bias
    pww_ref: (Cp, Coutp) bf16             pointwise weights * BN2 scale
    pwb_ref: (1, Coutp) f32               folded BN2 bias
    o_ref  : (1, th*wo, Coutp) bf16       flat (row-major) output rows of this tile
    y_ref  : (th*wo, Cp) bf16  scratch    depthwise activations staged for the MXU
    """
    cp = xm_ref.shape[-1]
    th_s = xm_ref.shape[1]

    # Hoisted once per grid step (JAX does not CSE broadcasts inside the loops).
    dw = dww_ref[...]                                            # (9, cp)
    wt = [jnp.broadcast_to(dw[k], (wo, cp)) for k in range(9)]
    b1 = jnp.broadcast_to(dwb_ref[...], (wo, cp))

    def in_row(idx):  # static idx -> (Wp, cp) f32 row of this tile's padded window
        r = xm_ref[0, idx] if idx < th_s else xh_ref[0, idx - th_s]
        return r.astype(jnp.float32)

    # Depthwise 3x3, one output row at a time: the f32 accumulator stays in vregs;
    # taps + bias + ReLU6 + bf16 cast fuse in-register; ONE store per row chunk.
    for r in range(th):
        acc = b1
        for kh in range(3):
            row = in_row(r * stride + kh)
            if stride == 1:
                for kw in range(3):
                    acc = acc + row[kw:kw + wo, :] * wt[kh * 3 + kw]
            else:
                # Wrapper de-interleaved the columns: [0, wh) even, [wh, 2*wh) odd.
                acc = acc + row[0:wo, :] * wt[kh * 3 + 0]
                acc = acc + row[wh:wh + wo, :] * wt[kh * 3 + 1]
                acc = acc + row[1:1 + wo, :] * wt[kh * 3 + 2]
        y_ref[pl.ds(r * wo, wo), :] = jnp.clip(acc, 0.0, 6.0).astype(jnp.bfloat16)

    # Pointwise 1x1 conv on the MXU (bf16 x bf16 -> f32 accumulate) + BN2 bias;
    # single lane-dense store of the flat (th*wo, Coutp) slab.
    z = jnp.dot(y_ref[...], pww_ref[...], preferred_element_type=jnp.float32)
    o_ref[0] = (z + pwb_ref[...]).astype(o_ref.dtype)


def pack_depsep_params(dw_w_torch, dw_bn, pw_w_torch, pw_bn, eps=1e-5):
    """One-time transform of PyTorch-convention params into the kernel layout.

    Folds the (inference-mode) BN scales into the conv weights and zero-pads the
    channel axes up to multiples of 128 so every vreg lane does useful work.
    """
    C = dw_w_torch.shape[0]
    Cout = pw_w_torch.shape[0]
    Cp, Coutp = _round_up(C, LANES), _round_up(Cout, LANES)

    s1, b1 = _fold_bn(*dw_bn, eps)
    s2, b2 = _fold_bn(*pw_bn, eps)

    # depthwise: (C,1,3,3) -> (9,C), tap = kh*3+kw, BN1 scale folded per channel.
    dww = jnp.transpose(dw_w_torch[:, 0], (1, 2, 0)).reshape(9, C) * s1
    dww = jnp.pad(dww, ((0, 0), (0, Cp - C))).astype(jnp.float32)
    dwb = jnp.pad(b1, (0, Cp - C)).reshape(1, Cp).astype(jnp.float32)

    # pointwise: (Cout,C,1,1) -> (C,Cout), BN2 scale folded per out channel, bf16.
    pww = jnp.transpose(pw_w_torch[:, :, 0, 0], (1, 0)) * s2[None, :]
    pww = jnp.pad(pww, ((0, Cp - C), (0, Coutp - Cout))).astype(jnp.bfloat16)
    pwb = jnp.pad(b2, (0, Coutp - Cout)).reshape(1, Coutp).astype(jnp.float32)
    return dww, dwb, pww, pwb, Cout


def _pick_tile_rows(Ho, Wo, Wp, Cp, Coutp, s):
    """Output rows per grid step.  Multiple of 8 (sublane-aligned output slab and
    halo index_map validity); grown toward an MXU-friendly M = th*Wo of ~512 while
    staying within a conservative per-step VMEM budget for this TPU generation."""
    h2 = 3 - s
    try:
        vmem_cap = pltpu.get_tpu_info().vmem_capacity_bytes
    except Exception:
        vmem_cap = 64 * 1024 * 1024          # v7x-safe fallback
    budget = vmem_cap // 3

    def step_bytes(t):
        main = 2 * t * s * Wp * Cp * 2                      # double-buffered bf16 in
        halo = 2 * h2 * Wp * Cp * 2
        out = 2 * t * Wo * Coutp * 2                        # double-buffered bf16 out
        scratch = t * Wo * Cp * 2 + t * Wo * Coutp * 4      # y scratch + matmul result
        w = 2 * (Cp * Coutp * 2 + 9 * Cp * 4 + Cp * 4 + Coutp * 4)
        return main + halo + out + scratch + w

    th = 8
    while (th * Wo < 512 and 2 * th <= _round_up(Ho, 8)
           and step_bytes(2 * th) <= budget):
        th *= 2
    return th, vmem_cap


@functools.partial(jax.jit, static_argnames=("cout", "stride"))
def dep_sep_conv(x_nchw, dww, dwb, pww, pwb, *, cout, stride):
    """x_nchw: (B, C, H, W) float32.  Returns (B, Cout, Ho, Wo) in x's dtype."""
    B, C, H, W = x_nchw.shape
    Cp, Coutp = dww.shape[-1], pww.shape[-1]
    s = stride
    h2 = 3 - s
    Ho = (H + 2 - 3) // s + 1
    Wo = (W + 2 - 3) // s + 1
    # 1-px conv halo on each side, rounded up to a multiple of 8 sublanes (the TPU
    # tiled layout pads the second-minor dim to 8 anyway, so this is free) and even,
    # so the stride-2 de-interleave splits cleanly.
    Wp = _round_up(W + 2, 8)
    wh = Wp // 2

    th, vmem_cap = _pick_tile_rows(Ho, Wo, Wp, Cp, Coutp, s)
    th_s = th * s
    assert th_s % h2 == 0, "halo index_map requires th*stride divisible by halo rows"
    hb = th_s // h2                       # halo block index per tile
    nt = (Ho + th - 1) // th
    rows_needed = nt * th_s + h2          # padded input rows the grid will touch

    # NCHW -> NHWC, cast to bf16 (halves the dominant HBM read), then ONE pad that
    # fuses the spatial halo, the row-tiling tail, width alignment and the channel
    # padding to the 128-lane width.
    x = jnp.transpose(x_nchw, (0, 2, 3, 1)).astype(jnp.bfloat16)
    x_p = jnp.pad(x, ((0, 0), (1, rows_needed - H - 1),
                      (1, Wp - W - 1), (0, Cp - C)))
    if s == 2:
        # One-time even/odd column de-interleave so every in-kernel tap is a
        # unit-stride slice (no per-step strided sublane work).
        x_p = jnp.concatenate([x_p[:, :, 0::2, :], x_p[:, :, 1::2, :]], axis=2)

    kern = functools.partial(_depsep_kernel, stride=s, th=th, wo=Wo, wh=wh)

    flops = 2 * B * Ho * Wo * (9 * C + C * cout)
    bytes_accessed = (x_p.size * 2 + B * nt * th * Wo * Coutp * 2
                      + dww.size * 4 + pww.size * 2)

    out_flat = pl.pallas_call(
        kern,
        out_shape=jax.ShapeDtypeStruct((B, nt * th * Wo, Coutp), jnp.bfloat16),
        grid=(B, nt),
        in_specs=[
            # Main rows of the tile (auto double-buffered by the pipeline).
            pl.BlockSpec((1, th_s, Wp, Cp), lambda b, j: (b, j, 0, 0)),
            # Bottom halo rows: tiny second stream over the same padded array.
            pl.BlockSpec((1, h2, Wp, Cp), lambda b, j: (b, (j + 1) * hb, 0, 0)),
            pl.BlockSpec((9, Cp), lambda b, j: (0, 0)),
            pl.BlockSpec((1, Cp), lambda b, j: (0, 0)),
            pl.BlockSpec((Cp, Coutp), lambda b, j: (0, 0)),
            pl.BlockSpec((1, Coutp), lambda b, j: (0, 0)),
        ],
        out_specs=pl.BlockSpec((1, th * Wo, Coutp), lambda b, j: (b, j, 0)),
        scratch_shapes=[pltpu.VMEM((th * Wo, Cp), jnp.bfloat16)],
        compiler_params=pltpu.CompilerParams(
            dimension_semantics=("parallel", "parallel"),
            vmem_limit_bytes=min(int(vmem_cap * 3 // 4), 100 * 1024 * 1024)),
        cost_estimate=pl.CostEstimate(flops=flops, transcendentals=0,
                                      bytes_accessed=bytes_accessed),
    )(x_p, x_p, dww, dwb, pww, pwb)

    out = out_flat.reshape(B, nt * th, Wo, Coutp)[:, :Ho, :, :cout]
    return jnp.transpose(out, (0, 3, 1, 2)).astype(x_nchw.dtype)


def _reference(x, dw_w_t, dw_bn, pw_w_t, pw_bn, stride, eps=1e-5):
    """Pure-JAX reference with the same (eval-mode BN) semantics, NCHW, f32."""
    g1, b1, m1, v1 = dw_bn
    g2, b2, m2, v2 = pw_bn
    y = jax.lax.conv_general_dilated(
        x, dw_w_t, window_strides=(stride, stride), padding=((1, 1), (1, 1)),
        feature_group_count=x.shape[1],
        dimension_numbers=("NCHW", "OIHW", "NCHW"))
    y = (y - m1[None, :, None, None]) / jnp.sqrt(v1[None, :, None, None] + eps)
    y = y * g1[None, :, None, None] + b1[None, :, None, None]
    y = jnp.clip(y, 0.0, 6.0)
    z = jax.lax.conv_general_dilated(
        y, pw_w_t, window_strides=(1, 1), padding="VALID",
        dimension_numbers=("NCHW", "OIHW", "NCHW"))
    z = (z - m2[None, :, None, None]) / jnp.sqrt(v2[None, :, None, None] + eps)
    z = z * g2[None, :, None, None] + b2[None, :, None, None]
    return z


if __name__ == "__main__":
    B, C, Cout, H, W = 2, 8, 16, 16, 16

    key = jax.random.PRNGKey(0)
    ks = jax.random.split(key, 11)

    # PyTorch-convention parameters (deterministic init).
    dw_w_torch = jax.random.normal(ks[0], (C, 1, 3, 3), jnp.float32) * 0.2
    dw_bn = (1.0 + 0.1 * jax.random.normal(ks[1], (C,), jnp.float32),
             0.1 * jax.random.normal(ks[2], (C,), jnp.float32),
             0.1 * jax.random.normal(ks[3], (C,), jnp.float32),
             jax.random.uniform(ks[4], (C,), jnp.float32, 0.5, 1.5))
    pw_w_torch = jax.random.normal(ks[5], (Cout, C, 1, 1), jnp.float32) * 0.2
    pw_bn = (1.0 + 0.1 * jax.random.normal(ks[6], (Cout,), jnp.float32),
             0.1 * jax.random.normal(ks[7], (Cout,), jnp.float32),
             0.1 * jax.random.normal(ks[8], (Cout,), jnp.float32),
             jax.random.uniform(ks[9], (Cout,), jnp.float32, 0.5, 1.5))
    x = jax.random.normal(ks[10], (B, C, H, W), jnp.float32)

    dww, dwb, pww, pwb, cout = pack_depsep_params(dw_w_torch, dw_bn,
                                                  pw_w_torch, pw_bn)

    # Exercise both stride variants used by MobileNetV2.
    for stride in (1, 2):
        out = jax.block_until_ready(
            dep_sep_conv(x, dww, dwb, pww, pwb, cout=cout, stride=stride))
        ref = jax.block_until_ready(
            _reference(x, dw_w_torch, dw_bn, pw_w_torch, pw_bn, stride))
        Ho = (H + 2 - 3) // stride + 1
        Wo = (W + 2 - 3) // stride + 1
        assert out.shape == (B, cout, Ho, Wo), out.shape
        # bf16 input / bf16 MXU operands / bf16 output slab -> ~1e-2-level relative
        # error vs the full-f32 reference is expected.
        if not jnp.allclose(out, ref, rtol=4e-2, atol=4e-2):
            raise AssertionError(
                f"stride={stride}: max abs err = {jnp.max(jnp.abs(out - ref))}")

    print("KERNEL_OK")
</pallas_src>

<mosaic_0001>
module attributes {stable_mosaic.version = 11 : i64} {
  func.func @_depsep_kernel(%arg0: i32, %arg1: i32, %arg2: memref<1x16x24x128xbf16, #tpu.memory_space<vmem>>, %arg3: memref<1x2x24x128xbf16, #tpu.memory_space<vmem>>, %arg4: memref<9x128xf32, #tpu.memory_space<vmem>>, %arg5: memref<1x128xf32, #tpu.memory_space<vmem>>, %arg6: memref<128x128xbf16, #tpu.memory_space<vmem>>, %arg7: memref<1x128xf32, #tpu.memory_space<vmem>>, %arg8: memref<1x256x128xbf16, #tpu.memory_space<vmem>>, %arg9: memref<256x128xbf16, #tpu.memory_space<vmem>>) attributes {dimension_semantics = [#tpu.dimension_semantics<parallel>, #tpu.dimension_semantics<parallel>], iteration_bounds = array<i64: 2, 1>, scalar_prefetch = 0 : i64, scratch_operands = 1 : i64, tpu.core_type = #tpu.core_type<tc>, window_params = [{transform_indices = @transform_0, window_bounds = array<i64: 1, 16, 24, 128>}, {transform_indices = @transform_1, window_bounds = array<i64: 1, 2, 24, 128>}, {pipeline_mode = #tpu.pipeline_mode<synchronous>, transform_indices = @transform_2, window_bounds = array<i64: 9, 128>}, {pipeline_mode = #tpu.pipeline_mode<synchronous>, transform_indices = @transform_3, window_bounds = array<i64: 1, 128>}, {pipeline_mode = #tpu.pipeline_mode<synchronous>, transform_indices = @transform_4, window_bounds = array<i64: 128, 128>}, {pipeline_mode = #tpu.pipeline_mode<synchronous>, transform_indices = @transform_5, window_bounds = array<i64: 1, 128>}, {transform_indices = @transform_6, window_bounds = array<i64: 1, 256, 128>}]} {
    %c0 = arith.constant 0 : index
    %c0_0 = arith.constant 0 : index
    %0 = vector.load %arg4[%c0, %c0_0] : memref<9x128xf32, #tpu.memory_space<vmem>>, vector<9x128xf32>
    %1 = vector.extract_strided_slice %0 {offsets = [0, 0], sizes = [1, 128], strides = [1, 1]} : vector<9x128xf32> to vector<1x128xf32>
    %2 = vector.shape_cast %1 : vector<1x128xf32> to vector<128xf32>
    %3 = vector.shape_cast %2 : vector<128xf32> to vector<1x128xf32>
    %4 = vector.broadcast %3 : vector<1x128xf32> to vector<16x128xf32>
    %5 = vector.extract_strided_slice %0 {offsets = [1, 0], sizes = [1, 128], strides = [1, 1]} : vector<9x128xf32> to vector<1x128xf32>
    %6 = vector.shape_cast %5 : vector<1x128xf32> to vector<128xf32>
    %7 = vector.shape_cast %6 : vector<128xf32> to vector<1x128xf32>
    %8 = vector.broadcast %7 : vector<1x128xf32> to vector<16x128xf32>
    %9 = vector.extract_strided_slice %0 {offsets = [2, 0], sizes = [1, 128], strides = [1, 1]} : vector<9x128xf32> to vector<1x128xf32>
    %10 = vector.shape_cast %9 : vector<1x128xf32> to vector<128xf32>
    %11 = vector.shape_cast %10 : vector<128xf32> to vector<1x128xf32>
    %12 = vector.broadcast %11 : vector<1x128xf32> to vector<16x128xf32>
    %13 = vector.extract_strided_slice %0 {offsets = [3, 0], sizes = [1, 128], strides = [1, 1]} : vector<9x128xf32> to vector<1x128xf32>
    %14 = vector.shape_cast %13 : vector<1x128xf32> to vector<128xf32>
    %15 = vector.shape_cast %14 : vector<128xf32> to vector<1x128xf32>
    %16 = vector.broadcast %15 : vector<1x128xf32> to vector<16x128xf32>
    %17 = vector.extract_strided_slice %0 {offsets = [4, 0], sizes = [1, 128], strides = [1, 1]} : vector<9x128xf32> to vector<1x128xf32>
    %18 = vector.shape_cast %17 : vector<1x128xf32> to vector<128xf32>
    %19 = vector.shape_cast %18 : vector<128xf32> to vector<1x128xf32>
    %20 = vector.broadcast %19 : vector<1x128xf32> to vector<16x128xf32>
    %21 = vector.extract_strided_slice %0 {offsets = [5, 0], sizes = [1, 128], strides = [1, 1]} : vector<9x128xf32> to vector<1x128xf32>
    %22 = vector.shape_cast %21 : vector<1x128xf32> to vector<128xf32>
    %23 = vector.shape_cast %22 : vector<128xf32> to vector<1x128xf32>
    %24 = vector.broadcast %23 : vector<1x128xf32> to vector<16x128xf32>
    %25 = vector.extract_strided_slice %0 {offsets = [6, 0], sizes = [1, 128], strides = [1, 1]} : vector<9x128xf32> to vector<1x128xf32>
    %26 = vector.shape_cast %25 : vector<1x128xf32> to vector<128xf32>
    %27 = vector.shape_cast %26 : vector<128xf32> to vector<1x128xf32>
    %28 = vector.broadcast %27 : vector<1x128xf32> to vector<16x128xf32>
    %29 = vector.extract_strided_slice %0 {offsets = [7, 0], sizes = [1, 128], strides = [1, 1]} : vector<9x128xf32> to vector<1x128xf32>
    %30 = vector.shape_cast %29 : vector<1x128xf32> to vector<128xf32>
    %31 = vector.shape_cast %30 : vector<128xf32> to vector<1x128xf32>
    %32 = vector.broadcast %31 : vector<1x128xf32> to vector<16x128xf32>
    %33 = vector.extract_strided_slice %0 {offsets = [8, 0], sizes = [1, 128], strides = [1, 1]} : vector<9x128xf32> to vector<1x128xf32>
    %34 = vector.shape_cast %33 : vector<1x128xf32> to vector<128xf32>
    %35 = vector.shape_cast %34 : vector<128xf32> to vector<1x128xf32>
    %36 = vector.broadcast %35 : vector<1x128xf32> to vector<16x128xf32>
    %c0_1 = arith.constant 0 : index
    %c0_2 = arith.constant 0 : index
    %37 = vector.load %arg5[%c0_1, %c0_2] : memref<1x128xf32, #tpu.memory_space<vmem>>, vector<1x128xf32>
    %38 = vector.shape_cast %37 : vector<1x128xf32> to vector<1x128xf32>
    %39 = vector.broadcast %38 : vector<1x128xf32> to vector<16x128xf32>
    %c0_3 = arith.constant 0 : index
    %c0_4 = arith.constant 0 : index
    %c0_5 = arith.constant 0 : index
    %c0_6 = arith.constant 0 : index
    %40 = vector.load %arg2[%c0_3, %c0_4, %c0_5, %c0_6] : memref<1x16x24x128xbf16, #tpu.memory_space<vmem>>, vector<1x1x24x128xbf16>
    %41 = vector.shape_cast %40 : vector<1x1x24x128xbf16> to vector<24x128xbf16>
    %42 = arith.extf %41 : vector<24x128xbf16> to vector<24x128xf32>
    %43 = vector.extract_strided_slice %42 {offsets = [0, 0], sizes = [16, 128], strides = [1, 1]} : vector<24x128xf32> to vector<16x128xf32>
    %44 = arith.mulf %43, %4 : vector<16x128xf32>
    %45 = arith.addf %39, %44 : vector<16x128xf32>
    %46 = vector.extract_strided_slice %42 {offsets = [1, 0], sizes = [16, 128], strides = [1, 1]} : vector<24x128xf32> to vector<16x128xf32>
    %47 = arith.mulf %46, %8 : vector<16x128xf32>
    %48 = arith.addf %45, %47 : vector<16x128xf32>
    %49 = vector.extract_strided_slice %42 {offsets = [2, 0], sizes = [16, 128], strides = [1, 1]} : vector<24x128xf32> to vector<16x128xf32>
    %50 = arith.mulf %49, %12 : vector<16x128xf32>
    %51 = arith.addf %48, %50 : vector<16x128xf32>
    %c0_7 = arith.constant 0 : index
    %c1 = arith.constant 1 : index
    %c0_8 = arith.constant 0 : index
    %c0_9 = arith.constant 0 : index
    %52 = vector.load %arg2[%c0_7, %c1, %c0_8, %c0_9] : memref<1x16x24x128xbf16, #tpu.memory_space<vmem>>, vector<1x1x24x128xbf16>
    %53 = vector.shape_cast %52 : vector<1x1x24x128xbf16> to vector<24x128xbf16>
    %54 = arith.extf %53 : vector<24x128xbf16> to vector<24x128xf32>
    %55 = vector.extract_strided_slice %54 {offsets = [0, 0], sizes = [16, 128], strides = [1, 1]} : vector<24x128xf32> to vector<16x128xf32>
    %56 = arith.mulf %55, %16 : vector<16x128xf32>
    %57 = arith.addf %51, %56 : vector<16x128xf32>
    %58 = vector.extract_strided_slice %54 {offsets = [1, 0], sizes = [16, 128], strides = [1, 1]} : vector<24x128xf32> to vector<16x128xf32>
    %59 = arith.mulf %58, %20 : vector<16x128xf32>
    %60 = arith.addf %57, %59 : vector<16x128xf32>
    %61 = vector.extract_strided_slice %54 {offsets = [2, 0], sizes = [16, 128], strides = [1, 1]} : vector<24x128xf32> to vector<16x128xf32>
    %62 = arith.mulf %61, %24 : vector<16x128xf32>
    %63 = arith.addf %60, %62 : vector<16x128xf32>
    %c0_10 = arith.constant 0 : index
    %c2 = arith.constant 2 : index
    %c0_11 = arith.constant 0 : index
    %c0_12 = arith.constant 0 : index
    %64 = vector.load %arg2[%c0_10, %c2, %c0_11, %c0_12] : memref<1x16x24x128xbf16, #tpu.memory_space<vmem>>, vector<1x1x24x128xbf16>
    %65 = vector.shape_cast %64 : vector<1x1x24x128xbf16> to vector<24x128xbf16>
    %66 = arith.extf %65 : vector<24x128xbf16> to vector<24x128xf32>
    %67 = vector.extract_strided_slice %66 {offsets = [0, 0], sizes = [16, 128], strides = [1, 1]} : vector<24x128xf32> to vector<16x128xf32>
    %68 = arith.mulf %67, %28 : vector<16x128xf32>
    %69 = arith.addf %63, %68 : vector<16x128xf32>
    %70 = vector.extract_strided_slice %66 {offsets = [1, 0], sizes = [16, 128], strides = [1, 1]} : vector<24x128xf32> to vector<16x128xf32>
    %71 = arith.mulf %70, %32 : vector<16x128xf32>
    %72 = arith.addf %69, %71 : vector<16x128xf32>
    %73 = vector.extract_strided_slice %66 {offsets = [2, 0], sizes = [16, 128], strides = [1, 1]} : vector<24x128xf32> to vector<16x128xf32>
    %74 = arith.mulf %73, %36 : vector<16x128xf32>
    %75 = arith.addf %72, %74 : vector<16x128xf32>
    %cst = arith.constant 0.000000e+00 : f32
    %cst_13 = arith.constant 6.000000e+00 : f32
    %76 = vector.broadcast %cst : f32 to vector<16x128xf32>
    %77 = arith.maximumf %76, %75 : vector<16x128xf32>
    %78 = vector.broadcast %cst_13 : f32 to vector<16x128xf32>
    %79 = arith.minimumf %78, %77 : vector<16x128xf32>
    %80 = arith.truncf %79 : vector<16x128xf32> to vector<16x128xbf16>
    %c0_14 = arith.constant 0 : index
    %c0_15 = arith.constant 0 : index
    %81 = vector.load %arg9[%c0_14, %c0_15] : memref<256x128xbf16, #tpu.memory_space<vmem>>, vector<16x128xbf16>
    tpu.vector_store %arg9[%c0_14, %c0_15], %80 {strides = array<i32>} : memref<256x128xbf16, #tpu.memory_space<vmem>>, vector<16x128xbf16>,
    %c0_16 = arith.constant 0 : index
    %c1_17 = arith.constant 1 : index
    %c0_18 = arith.constant 0 : index
    %c0_19 = arith.constant 0 : index
    %82 = vector.load %arg2[%c0_16, %c1_17, %c0_18, %c0_19] : memref<1x16x24x128xbf16, #tpu.memory_space<vmem>>, vector<1x1x24x128xbf16>
    %83 = vector.shape_cast %82 : vector<1x1x24x128xbf16> to vector<24x128xbf16>
    %84 = arith.extf %83 : vector<24x128xbf16> to vector<24x128xf32>
    %85 = vector.extract_strided_slice %84 {offsets = [0, 0], sizes = [16, 128], strides = [1, 1]} : vector<24x128xf32> to vector<16x128xf32>
    %86 = arith.mulf %85, %4 : vector<16x128xf32>
    %87 = arith.addf %39, %86 : vector<16x128xf32>
    %88 = vector.extract_strided_slice %84 {offsets = [1, 0], sizes = [16, 128], strides = [1, 1]} : vector<24x128xf32> to vector<16x128xf32>
    %89 = arith.mulf %88, %8 : vector<16x128xf32>
    %90 = arith.addf %87, %89 : vector<16x128xf32>
    %91 = vector.extract_strided_slice %84 {offsets = [2, 0], sizes = [16, 128], strides = [1, 1]} : vector<24x128xf32> to vector<16x128xf32>
    %92 = arith.mulf %91, %12 : vector<16x128xf32>
    %93 = arith.addf %90, %92 : vector<16x128xf32>
    %c0_20 = arith.constant 0 : index
    %c2_21 = arith.constant 2 : index
    %c0_22 = arith.constant 0 : index
    %c0_23 = arith.constant 0 : index
    %94 = vector.load %arg2[%c0_20, %c2_21, %c0_22, %c0_23] : memref<1x16x24x128xbf16, #tpu.memory_space<vmem>>, vector<1x1x24x128xbf16>
    %95 = vector.shape_cast %94 : vector<1x1x24x128xbf16> to vector<24x128xbf16>
    %96 = arith.extf %95 : vector<24x128xbf16> to vector<24x128xf32>
    %97 = vector.extract_strided_slice %96 {offsets = [0, 0], sizes = [16, 128], strides = [1, 1]} : vector<24x128xf32> to vector<16x128xf32>
    %98 = arith.mulf %97, %16 : vector<16x128xf32>
    %99 = arith.addf %93, %98 : vector<16x128xf32>
    %100 = vector.extract_strided_slice %96 {offsets = [1, 0], sizes = [16, 128], strides = [1, 1]} : vector<24x128xf32> to vector<16x128xf32>
    %101 = arith.mulf %100, %20 : vector<16x128xf32>
    %102 = arith.addf %99, %101 : vector<16x128xf32>
    %103 = vector.extract_strided_slice %96 {offsets = [2, 0], sizes = [16, 128], strides = [1, 1]} : vector<24x128xf32> to vector<16x128xf32>
    %104 = arith.mulf %103, %24 : vector<16x128xf32>
    %105 = arith.addf %102, %104 : vector<16x128xf32>
    %c0_24 = arith.constant 0 : index
    %c3 = arith.constant 3 : index
    %c0_25 = arith.constant 0 : index
    %c0_26 = arith.constant 0 : index
    %106 = vector.load %arg2[%c0_24, %c3, %c0_25, %c0_26] : memref<1x16x24x128xbf16, #tpu.memory_space<vmem>>, vector<1x1x24x128xbf16>
    %107 = vector.shape_cast %106 : vector<1x1x24x128xbf16> to vector<24x128xbf16>
    %108 = arith.extf %107 : vector<24x128xbf16> to vector<24x128xf32>
    %109 = vector.extract_strided_slice %108 {offsets = [0, 0], sizes = [16, 128], strides = [1, 1]} : vector<24x128xf32> to vector<16x128xf32>
    %110 = arith.mulf %109, %28 : vector<16x128xf32>
    %111 = arith.addf %105, %110 : vector<16x128xf32>
    %112 = vector.extract_strided_slice %108 {offsets = [1, 0], sizes = [16, 128], strides = [1, 1]} : vector<24x128xf32> to vector<16x128xf32>
    %113 = arith.mulf %112, %32 : vector<16x128xf32>
    %114 = arith.addf %111, %113 : vector<16x128xf32>
    %115 = vector.extract_strided_slice %108 {offsets = [2, 0], sizes = [16, 128], strides = [1, 1]} : vector<24x128xf32> to vector<16x128xf32>
    %116 = arith.mulf %115, %36 : vector<16x128xf32>
    %117 = arith.addf %114, %116 : vector<16x128xf32>
    %cst_27 = arith.constant 0.000000e+00 : f32
    %cst_28 = arith.constant 6.000000e+00 : f32
    %118 = vector.broadcast %cst_27 : f32 to vector<16x128xf32>
    %119 = arith.maximumf %118, %117 : vector<16x128xf32>
    %120 = vector.broadcast %cst_28 : f32 to vector<16x128xf32>
    %121 = arith.minimumf %120, %119 : vector<16x128xf32>
    %122 = arith.truncf %121 : vector<16x128xf32> to vector<16x128xbf16>
    %c16 = arith.constant 16 : index
    %c0_29 = arith.constant 0 : index
    %123 = vector.load %arg9[%c16, %c0_29] : memref<256x128xbf16, #tpu.memory_space<vmem>>, vector<16x128xbf16>
    tpu.vector_store %arg9[%c16, %c0_29], %122 {strides = array<i32>} : memref<256x128xbf16, #tpu.memory_space<vmem>>, vector<16x128xbf16>,
    %c0_30 = arith.constant 0 : index
    %c2_31 = arith.constant 2 : index
    %c0_32 = arith.constant 0 : index
    %c0_33 = arith.constant 0 : index
    %124 = vector.load %arg2[%c0_30, %c2_31, %c0_32, %c0_33] : memref<1x16x24x128xbf16, #tpu.memory_space<vmem>>, vector<1x1x24x128xbf16>
    %125 = vector.shape_cast %124 : vector<1x1x24x128xbf16> to vector<24x128xbf16>
    %126 = arith.extf %125 : vector<24x128xbf16> to vector<24x128xf32>
    %127 = vector.extract_strided_slice %126 {offsets = [0, 0], sizes = [16, 128], strides = [1, 1]} : vector<24x128xf32> to vector<16x128xf32>
    %128 = arith.mulf %127, %4 : vector<16x128xf32>
    %129 = arith.addf %39, %128 : vector<16x128xf32>
    %130 = vector.extract_strided_slice %126 {offsets = [1, 0], sizes = [16, 128], strides = [1, 1]} : vector<24x128xf32> to vector<16x128xf32>
    %131 = arith.mulf %130, %8 : vector<16x128xf32>
    %132 = arith.addf %129, %131 : vector<16x128xf32>
    %133 = vector.extract_strided_slice %126 {offsets = [2, 0], sizes = [16, 128], strides = [1, 1]} : vector<24x128xf32> to vector<16x128xf32>
    %134 = arith.mulf %133, %12 : vector<16x128xf32>
    %135 = arith.addf %132, %134 : vector<16x128xf32>
    %c0_34 = arith.constant 0 : index
    %c3_35 = arith.constant 3 : index
    %c0_36 = arith.constant 0 : index
    %c0_37 = arith.constant 0 : index
    %136 = vector.load %arg2[%c0_34, %c3_35, %c0_36, %c0_37] : memref<1x16x24x128xbf16, #tpu.memory_space<vmem>>, vector<1x1x24x128xbf16>
    %137 = vector.shape_cast %136 : vector<1x1x24x128xbf16> to vector<24x128xbf16>
    %138 = arith.extf %137 : vector<24x128xbf16> to vector<24x128xf32>
    %139 = vector.extract_strided_slice %138 {offsets = [0, 0], sizes = [16, 128], strides = [1, 1]} : vector<24x128xf32> to vector<16x128xf32>
    %140 = arith.mulf %139, %16 : vector<16x128xf32>
    %141 = arith.addf %135, %140 : vector<16x128xf32>
    %142 = vector.extract_strided_slice %138 {offsets = [1, 0], sizes = [16, 128], strides = [1, 1]} : vector<24x128xf32> to vector<16x128xf32>
    %143 = arith.mulf %142, %20 : vector<16x128xf32>
    %144 = arith.addf %141, %143 : vector<16x128xf32>
    %145 = vector.extract_strided_slice %138 {offsets = [2, 0], sizes = [16, 128], strides = [1, 1]} : vector<24x128xf32> to vector<16x128xf32>
    %146 = arith.mulf %145, %24 : vector<16x128xf32>
    %147 = arith.addf %144, %146 : vector<16x128xf32>
    %c0_38 = arith.constant 0 : index
    %c4 = arith.constant 4 : index
    %c0_39 = arith.constant 0 : index
    %c0_40 = arith.constant 0 : index
    %148 = vector.load %arg2[%c0_38, %c4, %c0_39, %c0_40] : memref<1x16x24x128xbf16, #tpu.memory_space<vmem>>, vector<1x1x24x128xbf16>
    %149 = vector.shape_cast %148 : vector<1x1x24x128xbf16> to vector<24x128xbf16>
    %150 = arith.extf %149 : vector<24x128xbf16> to vector<24x128xf32>
    %151 = vector.extract_strided_slice %150 {offsets = [0, 0], sizes = [16, 128], strides = [1, 1]} : vector<24x128xf32> to vector<16x128xf32>
    %152 = arith.mulf %151, %28 : vector<16x128xf32>
    %153 = arith.addf %147, %152 : vector<16x128xf32>
    %154 = vector.extract_strided_slice %150 {offsets = [1, 0], sizes = [16, 128], strides = [1, 1]} : vector<24x128xf32> to vector<16x128xf32>
    %155 = arith.mulf %154, %32 : vector<16x128xf32>
    %156 = arith.addf %153, %155 : vector<16x128xf32>
    %157 = vector.extract_strided_slice %150 {offsets = [2, 0], sizes = [16, 128], strides = [1, 1]} : vector<24x128xf32> to vector<16x128xf32>
    %158 = arith.mulf %157, %36 : vector<16x128xf32>
    %159 = arith.addf %156, %158 : vector<16x128xf32>
    %cst_41 = arith.constant 0.000000e+00 : f32
    %cst_42 = arith.constant 6.000000e+00 : f32
    %160 = vector.broadcast %cst_41 : f32 to vector<16x128xf32>
    %161 = arith.maximumf %160, %159 : vector<16x128xf32>
    %162 = vector.broadcast %cst_42 : f32 to vector<16x128xf32>
    %163 = arith.minimumf %162, %161 : vector<16x128xf32>
    %164 = arith.truncf %163 : vector<16x128xf32> to vector<16x128xbf16>
    %c32 = arith.constant 32 : index
    %c0_43 = arith.constant 0 : index
    %165 = vector.load %arg9[%c32, %c0_43] : memref<256x128xbf16, #tpu.memory_space<vmem>>, vector<16x128xbf16>
    tpu.vector_store %arg9[%c32, %c0_43], %164 {strides = array<i32>} : memref<256x128xbf16, #tpu.memory_space<vmem>>, vector<16x128xbf16>,
    %c0_44 = arith.constant 0 : index
    %c3_45 = arith.constant 3 : index
    %c0_46 = arith.constant 0 : index
    %c0_47 = arith.constant 0 : index
    %166 = vector.load %arg2[%c0_44, %c3_45, %c0_46, %c0_47] : memref<1x16x24x128xbf16, #tpu.memory_space<vmem>>, vector<1x1x24x128xbf16>
    %167 = vector.shape_cast %166 : vector<1x1x24x128xbf16> to vector<24x128xbf16>
    %168 = arith.extf %167 : vector<24x128xbf16> to vector<24x128xf32>
    %169 = vector.extract_strided_slice %168 {offsets = [0, 0], sizes = [16, 128], strides = [1, 1]} : vector<24x128xf32> to vector<16x128xf32>
    %170 = arith.mulf %169, %4 : vector<16x128xf32>
    %171 = arith.addf %39, %170 : vector<16x128xf32>
    %172 = vector.extract_strided_slice %168 {offsets = [1, 0], sizes = [16, 128], strides = [1, 1]} : vector<24x128xf32> to vector<16x128xf32>
    %173 = arith.mulf %172, %8 : vector<16x128xf32>
    %174 = arith.addf %171, %173 : vector<16x128xf32>
    %175 = vector.extract_strided_slice %168 {offsets = [2, 0], sizes = [16, 128], strides = [1, 1]} : vector<24x128xf32> to vector<16x128xf32>
    %176 = arith.mulf %175, %12 : vector<16x128xf32>
    %177 = arith.addf %174, %176 : vector<16x128xf32>
    %c0_48 = arith.constant 0 : index
    %c4_49 = arith.constant 4 : index
    %c0_50 = arith.constant 0 : index
    %c0_51 = arith.constant 0 : index
    %178 = vector.load %arg2[%c0_48, %c4_49, %c0_50, %c0_51] : memref<1x16x24x128xbf16, #tpu.memory_space<vmem>>, vector<1x1x24x128xbf16>
    %179 = vector.shape_cast %178 : vector<1x1x24x128xbf16> to vector<24x128xbf16>
    %180 = arith.extf %179 : vector<24x128xbf16> to vector<24x128xf32>
    %181 = vector.extract_strided_slice %180 {offsets = [0, 0], sizes = [16, 128], strides = [1, 1]} : vector<24x128xf32> to vector<16x128xf32>
    %182 = arith.mulf %181, %16 : vector<16x128xf32>
    %183 = arith.addf %177, %182 : vector<16x128xf32>
    %184 = vector.extract_strided_slice %180 {offsets = [1, 0], sizes = [16, 128], strides = [1, 1]} : vector<24x128xf32> to vector<16x128xf32>
    %185 = arith.mulf %184, %20 : vector<16x128xf32>
    %186 = arith.addf %183, %185 : vector<16x128xf32>
    %187 = vector.extract_strided_slice %180 {offsets = [2, 0], sizes = [16, 128], strides = [1, 1]} : vector<24x128xf32> to vector<16x128xf32>
    %188 = arith.mulf %187, %24 : vector<16x128xf32>
    %189 = arith.addf %186, %188 : vector<16x128xf32>
    %c0_52 = arith.constant 0 : index
    %c5 = arith.constant 5 : index
    %c0_53 = arith.constant 0 : index
    %c0_54 = arith.constant 0 : index
    %190 = vector.load %arg2[%c0_52, %c5, %c0_53, %c0_54] : memref<1x16x24x128xbf16, #tpu.memory_space<vmem>>, vector<1x1x24x128xbf16>
    %191 = vector.shape_cast %190 : vector<1x1x24x128xbf16> to vector<24x128xbf16>
    %192 = arith.extf %191 : vector<24x128xbf16> to vector<24x128xf32>
    %193 = vector.extract_strided_slice %192 {offsets = [0, 0], sizes = [16, 128], strides = [1, 1]} : vector<24x128xf32> to vector<16x128xf32>
    %194 = arith.mulf %193, %28 : vector<16x128xf32>
    %195 = arith.addf %189, %194 : vector<16x128xf32>
    %196 = vector.extract_strided_slice %192 {offsets = [1, 0], sizes = [16, 128], strides = [1, 1]} : vector<24x128xf32> to vector<16x128xf32>
    %197 = arith.mulf %196, %32 : vector<16x128xf32>
    %198 = arith.addf %195, %197 : vector<16x128xf32>
    %199 = vector.extract_strided_slice %192 {offsets = [2, 0], sizes = [16, 128], strides = [1, 1]} : vector<24x128xf32> to vector<16x128xf32>
    %200 = arith.mulf %199, %36 : vector<16x128xf32>
    %201 = arith.addf %198, %200 : vector<16x128xf32>
    %cst_55 = arith.constant 0.000000e+00 : f32
    %cst_56 = arith.constant 6.000000e+00 : f32
    %202 = vector.broadcast %cst_55 : f32 to vector<16x128xf32>
    %203 = arith.maximumf %202, %201 : vector<16x128xf32>
    %204 = vector.broadcast %cst_56 : f32 to vector<16x128xf32>
    %205 = arith.minimumf %204, %203 : vector<16x128xf32>
    %206 = arith.truncf %205 : vector<16x128xf32> to vector<16x128xbf16>
    %c48 = arith.constant 48 : index
    %c0_57 = arith.constant 0 : index
    %207 = vector.load %arg9[%c48, %c0_57] : memref<256x128xbf16, #tpu.memory_space<vmem>>, vector<16x128xbf16>
    tpu.vector_store %arg9[%c48, %c0_57], %206 {strides = array<i32>} : memref<256x128xbf16, #tpu.memory_space<vmem>>, vector<16x128xbf16>,
    %c0_58 = arith.constant 0 : index
    %c4_59 = arith.constant 4 : index
    %c0_60 = arith.constant 0 : index
    %c0_61 = arith.constant 0 : index
    %208 = vector.load %arg2[%c0_58, %c4_59, %c0_60, %c0_61] : memref<1x16x24x128xbf16, #tpu.memory_space<vmem>>, vector<1x1x24x128xbf16>
    %209 = vector.shape_cast %208 : vector<1x1x24x128xbf16> to vector<24x128xbf16>
    %210 = arith.extf %209 : vector<24x128xbf16> to vector<24x128xf32>
    %211 = vector.extract_strided_slice %210 {offsets = [0, 0], sizes = [16, 128], strides = [1, 1]} : vector<24x128xf32> to vector<16x128xf32>
    %212 = arith.mulf %211, %4 : vector<16x128xf32>
    %213 = arith.addf %39, %212 : vector<16x128xf32>
    %214 = vector.extract_strided_slice %210 {offsets = [1, 0], sizes = [16, 128], strides = [1, 1]} : vector<24x128xf32> to vector<16x128xf32>
    %215 = arith.mulf %214, %8 : vector<16x128xf32>
    %216 = arith.addf %213, %215 : vector<16x128xf32>
    %217 = vector.extract_strided_slice %210 {offsets = [2, 0], sizes = [16, 128], strides = [1, 1]} : vector<24x128xf32> to vector<16x128xf32>
    %218 = arith.mulf %217, %12 : vector<16x128xf32>
    %219 = arith.addf %216, %218 : vector<16x128xf32>
    %c0_62 = arith.constant 0 : index
    %c5_63 = arith.constant 5 : index
    %c0_64 = arith.constant 0 : index
    %c0_65 = arith.constant 0 : index
    %220 = vector.load %arg2[%c0_62, %c5_63, %c0_64, %c0_65] : memref<1x16x24x128xbf16, #tpu.memory_space<vmem>>, vector<1x1x24x128xbf16>
    %221 = vector.shape_cast %220 : vector<1x1x24x128xbf16> to vector<24x128xbf16>
    %222 = arith.extf %221 : vector<24x128xbf16> to vector<24x128xf32>
    %223 = vector.extract_strided_slice %222 {offsets = [0, 0], sizes = [16, 128], strides = [1, 1]} : vector<24x128xf32> to vector<16x128xf32>
    %224 = arith.mulf %223, %16 : vector<16x128xf32>
    %225 = arith.addf %219, %224 : vector<16x128xf32>
    %226 = vector.extract_strided_slice %222 {offsets = [1, 0], sizes = [16, 128], strides = [1, 1]} : vector<24x128xf32> to vector<16x128xf32>
    %227 = arith.mulf %226, %20 : vector<16x128xf32>
    %228 = arith.addf %225, %227 : vector<16x128xf32>
    %229 = vector.extract_strided_slice %222 {offsets = [2, 0], sizes = [16, 128], strides = [1, 1]} : vector<24x128xf32> to vector<16x128xf32>
    %230 = arith.mulf %229, %24 : vector<16x128xf32>
    %231 = arith.addf %228, %230 : vector<16x128xf32>
    %c0_66 = arith.constant 0 : index
    %c6 = arith.constant 6 : index
    %c0_67 = arith.constant 0 : index
    %c0_68 = arith.constant 0 : index
    %232 = vector.load %arg2[%c0_66, %c6, %c0_67, %c0_68] : memref<1x16x24x128xbf16, #tpu.memory_space<vmem>>, vector<1x1x24x128xbf16>
    %233 = vector.shape_cast %232 : vector<1x1x24x128xbf16> to vector<24x128xbf16>
    %234 = arith.extf %233 : vector<24x128xbf16> to vector<24x128xf32>
    %235 = vector.extract_strided_slice %234 {offsets = [0, 0], sizes = [16, 128], strides = [1, 1]} : vector<24x128xf32> to vector<16x128xf32>
    %236 = arith.mulf %235, %28 : vector<16x128xf32>
    %237 = arith.addf %231, %236 : vector<16x128xf32>
    %238 = vector.extract_strided_slice %234 {offsets = [1, 0], sizes = [16, 128], strides = [1, 1]} : vector<24x128xf32> to vector<16x128xf32>
    %239 = arith.mulf %238, %32 : vector<16x128xf32>
    %240 = arith.addf %237, %239 : vector<16x128xf32>
    %241 = vector.extract_strided_slice %234 {offsets = [2, 0], sizes = [16, 128], strides = [1, 1]} : vector<24x128xf32> to vector<16x128xf32>
    %242 = arith.mulf %241, %36 : vector<16x128xf32>
    %243 = arith.addf %240, %242 : vector<16x128xf32>
    %cst_69 = arith.constant 0.000000e+00 : f32
    %cst_70 = arith.constant 6.000000e+00 : f32
    %244 = vector.broadcast %cst_69 : f32 to vector<16x128xf32>
    %245 = arith.maximumf %244, %243 : vector<16x128xf32>
    %246 = vector.broadcast %cst_70 : f32 to vector<16x128xf32>
    %247 = arith.minimumf %246, %245 : vector<16x128xf32>
    %248 = arith.truncf %247 : vector<16x128xf32> to vector<16x128xbf16>
    %c64 = arith.constant 64 : index
    %c0_71 = arith.constant 0 : index
    %249 = vector.load %arg9[%c64, %c0_71] : memref<256x128xbf16, #tpu.memory_space<vmem>>, vector<16x128xbf16>
    tpu.vector_store %arg9[%c64, %c0_71], %248 {strides = array<i32>} : memref<256x128xbf16, #tpu.memory_space<vmem>>, vector<16x128xbf16>,
    %c0_72 = arith.constant 0 : index
    %c5_73 = arith.constant 5 : index
    %c0_74 = arith.constant 0 : index
    %c0_75 = arith.constant 0 : index
    %250 = vector.load %arg2[%c0_72, %c5_73, %c0_74, %c0_75] : memref<1x16x24x128xbf16, #tpu.memory_space<vmem>>, vector<1x1x24x128xbf16>
    %251 = vector.shape_cast %250 : vector<1x1x24x128xbf16> to vector<24x128xbf16>
    %252 = arith.extf %251 : vector<24x128xbf16> to vector<24x128xf32>
    %253 = vector.extract_strided_slice %252 {offsets = [0, 0], sizes = [16, 128], strides = [1, 1]} : vector<24x128xf32> to vector<16x128xf32>
    %254 = arith.mulf %253, %4 : vector<16x128xf32>
    %255 = arith.addf %39, %254 : vector<16x128xf32>
    %256 = vector.extract_strided_slice %252 {offsets = [1, 0], sizes = [16, 128], strides = [1, 1]} : vector<24x128xf32> to vector<16x128xf32>
    %257 = arith.mulf %256, %8 : vector<16x128xf32>
    %258 = arith.addf %255, %257 : vector<16x128xf32>
    %259 = vector.extract_strided_slice %252 {offsets = [2, 0], sizes = [16, 128], strides = [1, 1]} : vector<24x128xf32> to vector<16x128xf32>
    %260 = arith.mulf %259, %12 : vector<16x128xf32>
    %261 = arith.addf %258, %260 : vector<16x128xf32>
    %c0_76 = arith.constant 0 : index
    %c6_77 = arith.constant 6 : index
    %c0_78 = arith.constant 0 : index
    %c0_79 = arith.constant 0 : index
    %262 = vector.load %arg2[%c0_76, %c6_77, %c0_78, %c0_79] : memref<1x16x24x128xbf16, #tpu.memory_space<vmem>>, vector<1x1x24x128xbf16>
    %263 = vector.shape_cast %262 : vector<1x1x24x128xbf16> to vector<24x128xbf16>
    %264 = arith.extf %263 : vector<24x128xbf16> to vector<24x128xf32>
    %265 = vector.extract_strided_slice %264 {offsets = [0, 0], sizes = [16, 128], strides = [1, 1]} : vector<24x128xf32> to vector<16x128xf32>
    %266 = arith.mulf %265, %16 : vector<16x128xf32>
    %267 = arith.addf %261, %266 : vector<16x128xf32>
    %268 = vector.extract_strided_slice %264 {offsets = [1, 0], sizes = [16, 128], strides = [1, 1]} : vector<24x128xf32> to vector<16x128xf32>
    %269 = arith.mulf %268, %20 : vector<16x128xf32>
    %270 = arith.addf %267, %269 : vector<16x128xf32>
    %271 = vector.extract_strided_slice %264 {offsets = [2, 0], sizes = [16, 128], strides = [1, 1]} : vector<24x128xf32> to vector<16x128xf32>
    %272 = arith.mulf %271, %24 : vector<16x128xf32>
    %273 = arith.addf %270, %272 : vector<16x128xf32>
    %c0_80 = arith.constant 0 : index
    %c7 = arith.constant 7 : index
    %c0_81 = arith.constant 0 : index
    %c0_82 = arith.constant 0 : index
    %274 = vector.load %arg2[%c0_80, %c7, %c0_81, %c0_82] : memref<1x16x24x128xbf16, #tpu.memory_space<vmem>>, vector<1x1x24x128xbf16>
    %275 = vector.shape_cast %274 : vector<1x1x24x128xbf16> to vector<24x128xbf16>
    %276 = arith.extf %275 : vector<24x128xbf16> to vector<24x128xf32>
    %277 = vector.extract_strided_slice %276 {offsets = [0, 0], sizes = [16, 128], strides = [1, 1]} : vector<24x128xf32> to vector<16x128xf32>
    %278 = arith.mulf %277, %28 : vector<16x128xf32>
    %279 = arith.addf %273, %278 : vector<16x128xf32>
    %280 = vector.extract_strided_slice %276 {offsets = [1, 0], sizes = [16, 128], strides = [1, 1]} : vector<24x128xf32> to vector<16x128xf32>
    %281 = arith.mulf %280, %32 : vector<16x128xf32>
    %282 = arith.addf %279, %281 : vector<16x128xf32>
    %283 = vector.extract_strided_slice %276 {offsets = [2, 0], sizes = [16, 128], strides = [1, 1]} : vector<24x128xf32> to vector<16x128xf32>
    %284 = arith.mulf %283, %36 : vector<16x128xf32>
    %285 = arith.addf %282, %284 : vector<16x128xf32>
    %cst_83 = arith.constant 0.000000e+00 : f32
    %cst_84 = arith.constant 6.000000e+00 : f32
    %286 = vector.broadcast %cst_83 : f32 to vector<16x128xf32>
    %287 = arith.maximumf %286, %285 : vector<16x128xf32>
    %288 = vector.broadcast %cst_84 : f32 to vector<16x128xf32>
    %289 = arith.minimumf %288, %287 : vector<16x128xf32>
    %290 = arith.truncf %289 : vector<16x128xf32> to vector<16x128xbf16>
    %c80 = arith.constant 80 : index
    %c0_85 = arith.constant 0 : index
    %291 = vector.load %arg9[%c80, %c0_85] : memref<256x128xbf16, #tpu.memory_space<vmem>>, vector<16x128xbf16>
    tpu.vector_store %arg9[%c80, %c0_85], %290 {strides = array<i32>} : memref<256x128xbf16, #tpu.memory_space<vmem>>, vector<16x128xbf16>,
    %c0_86 = arith.constant 0 : index
    %c6_87 = arith.constant 6 : index
    %c0_88 = arith.constant 0 : index
    %c0_89 = arith.constant 0 : index
    %292 = vector.load %arg2[%c0_86, %c6_87, %c0_88, %c0_89] : memref<1x16x24x128xbf16, #tpu.memory_space<vmem>>, vector<1x1x24x128xbf16>
    %293 = vector.shape_cast %292 : vector<1x1x24x128xbf16> to vector<24x128xbf16>
    %294 = arith.extf %293 : vector<24x128xbf16> to vector<24x128xf32>
    %295 = vector.extract_strided_slice %294 {offsets = [0, 0], sizes = [16, 128], strides = [1, 1]} : vector<24x128xf32> to vector<16x128xf32>
    %296 = arith.mulf %295, %4 : vector<16x128xf32>
    %297 = arith.addf %39, %296 : vector<16x128xf32>
    %298 = vector.extract_strided_slice %294 {offsets = [1, 0], sizes = [16, 128], strides = [1, 1]} : vector<24x128xf32> to vector<16x128xf32>
    %299 = arith.mulf %298, %8 : vector<16x128xf32>
    %300 = arith.addf %297, %299 : vector<16x128xf32>
    %301 = vector.extract_strided_slice %294 {offsets = [2, 0], sizes = [16, 128], strides = [1, 1]} : vector<24x128xf32> to vector<16x128xf32>
    %302 = arith.mulf %301, %12 : vector<16x128xf32>
    %303 = arith.addf %300, %302 : vector<16x128xf32>
    %c0_90 = arith.constant 0 : index
    %c7_91 = arith.constant 7 : index
    %c0_92 = arith.constant 0 : index
    %c0_93 = arith.constant 0 : index
    %304 = vector.load %arg2[%c0_90, %c7_91, %c0_92, %c0_93] : memref<1x16x24x128xbf16, #tpu.memory_space<vmem>>, vector<1x1x24x128xbf16>
    %305 = vector.shape_cast %304 : vector<1x1x24x128xbf16> to vector<24x128xbf16>
    %306 = arith.extf %305 : vector<24x128xbf16> to vector<24x128xf32>
    %307 = vector.extract_strided_slice %306 {offsets = [0, 0], sizes = [16, 128], strides = [1, 1]} : vector<24x128xf32> to vector<16x128xf32>
    %308 = arith.mulf %307, %16 : vector<16x128xf32>
    %309 = arith.addf %303, %308 : vector<16x128xf32>
    %310 = vector.extract_strided_slice %306 {offsets = [1, 0], sizes = [16, 128], strides = [1, 1]} : vector<24x128xf32> to vector<16x128xf32>
    %311 = arith.mulf %310, %20 : vector<16x128xf32>
    %312 = arith.addf %309, %311 : vector<16x128xf32>
    %313 = vector.extract_strided_slice %306 {offsets = [2, 0], sizes = [16, 128], strides = [1, 1]} : vector<24x128xf32> to vector<16x128xf32>
    %314 = arith.mulf %313, %24 : vector<16x128xf32>
    %315 = arith.addf %312, %314 : vector<16x128xf32>
    %c0_94 = arith.constant 0 : index
    %c8 = arith.constant 8 : index
    %c0_95 = arith.constant 0 : index
    %c0_96 = arith.constant 0 : index
    %316 = vector.load %arg2[%c0_94, %c8, %c0_95, %c0_96] : memref<1x16x24x128xbf16, #tpu.memory_space<vmem>>, vector<1x1x24x128xbf16>
    %317 = vector.shape_cast %316 : vector<1x1x24x128xbf16> to vector<24x128xbf16>
    %318 = arith.extf %317 : vector<24x128xbf16> to vector<24x128xf32>
    %319 = vector.extract_strided_slice %318 {offsets = [0, 0], sizes = [16, 128], strides = [1, 1]} : vector<24x128xf32> to vector<16x128xf32>
    %320 = arith.mulf %319, %28 : vector<16x128xf32>
    %321 = arith.addf %315, %320 : vector<16x128xf32>
    %322 = vector.extract_strided_slice %318 {offsets = [1, 0], sizes = [16, 128], strides = [1, 1]} : vector<24x128xf32> to vector<16x128xf32>
    %323 = arith.mulf %322, %32 : vector<16x128xf32>
    %324 = arith.addf %321, %323 : vector<16x128xf32>
    %325 = vector.extract_strided_slice %318 {offsets = [2, 0], sizes = [16, 128], strides = [1, 1]} : vector<24x128xf32> to vector<16x128xf32>
    %326 = arith.mulf %325, %36 : vector<16x128xf32>
    %327 = arith.addf %324, %326 : vector<16x128xf32>
    %cst_97 = arith.constant 0.000000e+00 : f32
    %cst_98 = arith.constant 6.000000e+00 : f32
    %328 = vector.broadcast %cst_97 : f32 to vector<16x128xf32>
    %329 = arith.maximumf %328, %327 : vector<16x128xf32>
    %330 = vector.broadcast %cst_98 : f32 to vector<16x128xf32>
    %331 = arith.minimumf %330, %329 : vector<16x128xf32>
    %332 = arith.truncf %331 : vector<16x128xf32> to vector<16x128xbf16>
    %c96 = arith.constant 96 : index
    %c0_99 = arith.constant 0 : index
    %333 = vector.load %arg9[%c96, %c0_99] : memref<256x128xbf16, #tpu.memory_space<vmem>>, vector<16x128xbf16>
    tpu.vector_store %arg9[%c96, %c0_99], %332 {strides = array<i32>} : memref<256x128xbf16, #tpu.memory_space<vmem>>, vector<16x128xbf16>,
    %c0_100 = arith.constant 0 : index
    %c7_101 = arith.constant 7 : index
    %c0_102 = arith.constant 0 : index
    %c0_103 = arith.constant 0 : index
    %334 = vector.load %arg2[%c0_100, %c7_101, %c0_102, %c0_103] : memref<1x16x24x128xbf16, #tpu.memory_space<vmem>>, vector<1x1x24x128xbf16>
    %335 = vector.shape_cast %334 : vector<1x1x24x128xbf16> to vector<24x128xbf16>
    %336 = arith.extf %335 : vector<24x128xbf16> to vector<24x128xf32>
    %337 = vector.extract_strided_slice %336 {offsets = [0, 0], sizes = [16, 128], strides = [1, 1]} : vector<24x128xf32> to vector<16x128xf32>
    %338 = arith.mulf %337, %4 : vector<16x128xf32>
    %339 = arith.addf %39, %338 : vector<16x128xf32>
    %340 = vector.extract_strided_slice %336 {offsets = [1, 0], sizes = [16, 128], strides = [1, 1]} : vector<24x128xf32> to vector<16x128xf32>
    %341 = arith.mulf %340, %8 : vector<16x128xf32>
    %342 = arith.addf %339, %341 : vector<16x128xf32>
    %343 = vector.extract_strided_slice %336 {offsets = [2, 0], sizes = [16, 128], strides = [1, 1]} : vector<24x128xf32> to vector<16x128xf32>
    %344 = arith.mulf %343, %12 : vector<16x128xf32>
    %345 = arith.addf %342, %344 : vector<16x128xf32>
    %c0_104 = arith.constant 0 : index
    %c8_105 = arith.constant 8 : index
    %c0_106 = arith.constant 0 : index
    %c0_107 = arith.constant 0 : index
    %346 = vector.load %arg2[%c0_104, %c8_105, %c0_106, %c0_107] : memref<1x16x24x128xbf16, #tpu.memory_space<vmem>>, vector<1x1x24x128xbf16>
    %347 = vector.shape_cast %346 : vector<1x1x24x128xbf16> to vector<24x128xbf16>
    %348 = arith.extf %347 : vector<24x128xbf16> to vector<24x128xf32>
    %349 = vector.extract_strided_slice %348 {offsets = [0, 0], sizes = [16, 128], strides = [1, 1]} : vector<24x128xf32> to vector<16x128xf32>
    %350 = arith.mulf %349, %16 : vector<16x128xf32>
    %351 = arith.addf %345, %350 : vector<16x128xf32>
    %352 = vector.extract_strided_slice %348 {offsets = [1, 0], sizes = [16, 128], strides = [1, 1]} : vector<24x128xf32> to vector<16x128xf32>
    %353 = arith.mulf %352, %20 : vector<16x128xf32>
    %354 = arith.addf %351, %353 : vector<16x128xf32>
    %355 = vector.extract_strided_slice %348 {offsets = [2, 0], sizes = [16, 128], strides = [1, 1]} : vector<24x128xf32> to vector<16x128xf32>
    %356 = arith.mulf %355, %24 : vector<16x128xf32>
    %357 = arith.addf %354, %356 : vector<16x128xf32>
    %c0_108 = arith.constant 0 : index
    %c9 = arith.constant 9 : index
    %c0_109 = arith.constant 0 : index
    %c0_110 = arith.constant 0 : index
    %358 = vector.load %arg2[%c0_108, %c9, %c0_109, %c0_110] : memref<1x16x24x128xbf16, #tpu.memory_space<vmem>>, vector<1x1x24x128xbf16>
    %359 = vector.shape_cast %358 : vector<1x1x24x128xbf16> to vector<24x128xbf16>
    %360 = arith.extf %359 : vector<24x128xbf16> to vector<24x128xf32>
    %361 = vector.extract_strided_slice %360 {offsets = [0, 0], sizes = [16, 128], strides = [1, 1]} : vector<24x128xf32> to vector<16x128xf32>
    %362 = arith.mulf %361, %28 : vector<16x128xf32>
    %363 = arith.addf %357, %362 : vector<16x128xf32>
    %364 = vector.extract_strided_slice %360 {offsets = [1, 0], sizes = [16, 128], strides = [1, 1]} : vector<24x128xf32> to vector<16x128xf32>
    %365 = arith.mulf %364, %32 : vector<16x128xf32>
    %366 = arith.addf %363, %365 : vector<16x128xf32>
    %367 = vector.extract_strided_slice %360 {offsets = [2, 0], sizes = [16, 128], strides = [1, 1]} : vector<24x128xf32> to vector<16x128xf32>
    %368 = arith.mulf %367, %36 : vector<16x128xf32>
    %369 = arith.addf %366, %368 : vector<16x128xf32>
    %cst_111 = arith.constant 0.000000e+00 : f32
    %cst_112 = arith.constant 6.000000e+00 : f32
    %370 = vector.broadcast %cst_111 : f32 to vector<16x128xf32>
    %371 = arith.maximumf %370, %369 : vector<16x128xf32>
    %372 = vector.broadcast %cst_112 : f32 to vector<16x128xf32>
    %373 = arith.minimumf %372, %371 : vector<16x128xf32>
    %374 = arith.truncf %373 : vector<16x128xf32> to vector<16x128xbf16>
    %c112 = arith.constant 112 : index
    %c0_113 = arith.constant 0 : index
    %375 = vector.load %arg9[%c112, %c0_113] : memref<256x128xbf16, #tpu.memory_space<vmem>>, vector<16x128xbf16>
    tpu.vector_store %arg9[%c112, %c0_113], %374 {strides = array<i32>} : memref<256x128xbf16, #tpu.memory_space<vmem>>, vector<16x128xbf16>,
    %c0_114 = arith.constant 0 : index
    %c8_115 = arith.constant 8 : index
    %c0_116 = arith.constant 0 : index
    %c0_117 = arith.constant 0 : index
    %376 = vector.load %arg2[%c0_114, %c8_115, %c0_116, %c0_117] : memref<1x16x24x128xbf16, #tpu.memory_space<vmem>>, vector<1x1x24x128xbf16>
    %377 = vector.shape_cast %376 : vector<1x1x24x128xbf16> to vector<24x128xbf16>
    %378 = arith.extf %377 : vector<24x128xbf16> to vector<24x128xf32>
    %379 = vector.extract_strided_slice %378 {offsets = [0, 0], sizes = [16, 128], strides = [1, 1]} : vector<24x128xf32> to vector<16x128xf32>
    %380 = arith.mulf %379, %4 : vector<16x128xf32>
    %381 = arith.addf %39, %380 : vector<16x128xf32>
    %382 = vector.extract_strided_slice %378 {offsets = [1, 0], sizes = [16, 128], strides = [1, 1]} : vector<24x128xf32> to vector<16x128xf32>
    %383 = arith.mulf %382, %8 : vector<16x128xf32>
    %384 = arith.addf %381, %383 : vector<16x128xf32>
    %385 = vector.extract_strided_slice %378 {offsets = [2, 0], sizes = [16, 128], strides = [1, 1]} : vector<24x128xf32> to vector<16x128xf32>
    %386 = arith.mulf %385, %12 : vector<16x128xf32>
    %387 = arith.addf %384, %386 : vector<16x128xf32>
    %c0_118 = arith.constant 0 : index
    %c9_119 = arith.constant 9 : index
    %c0_120 = arith.constant 0 : index
    %c0_121 = arith.constant 0 : index
    %388 = vector.load %arg2[%c0_118, %c9_119, %c0_120, %c0_121] : memref<1x16x24x128xbf16, #tpu.memory_space<vmem>>, vector<1x1x24x128xbf16>
    %389 = vector.shape_cast %388 : vector<1x1x24x128xbf16> to vector<24x128xbf16>
    %390 = arith.extf %389 : vector<24x128xbf16> to vector<24x128xf32>
    %391 = vector.extract_strided_slice %390 {offsets = [0, 0], sizes = [16, 128], strides = [1, 1]} : vector<24x128xf32> to vector<16x128xf32>
    %392 = arith.mulf %391, %16 : vector<16x128xf32>
    %393 = arith.addf %387, %392 : vector<16x128xf32>
    %394 = vector.extract_strided_slice %390 {offsets = [1, 0], sizes = [16, 128], strides = [1, 1]} : vector<24x128xf32> to vector<16x128xf32>
    %395 = arith.mulf %394, %20 : vector<16x128xf32>
    %396 = arith.addf %393, %395 : vector<16x128xf32>
    %397 = vector.extract_strided_slice %390 {offsets = [2, 0], sizes = [16, 128], strides = [1, 1]} : vector<24x128xf32> to vector<16x128xf32>
    %398 = arith.mulf %397, %24 : vector<16x128xf32>
    %399 = arith.addf %396, %398 : vector<16x128xf32>
    %c0_122 = arith.constant 0 : index
    %c10 = arith.constant 10 : index
    %c0_123 = arith.constant 0 : index
    %c0_124 = arith.constant 0 : index
    %400 = vector.load %arg2[%c0_122, %c10, %c0_123, %c0_124] : memref<1x16x24x128xbf16, #tpu.memory_space<vmem>>, vector<1x1x24x128xbf16>
    %401 = vector.shape_cast %400 : vector<1x1x24x128xbf16> to vector<24x128xbf16>
    %402 = arith.extf %401 : vector<24x128xbf16> to vector<24x128xf32>
    %403 = vector.extract_strided_slice %402 {offsets = [0, 0], sizes = [16, 128], strides = [1, 1]} : vector<24x128xf32> to vector<16x128xf32>
    %404 = arith.mulf %403, %28 : vector<16x128xf32>
    %405 = arith.addf %399, %404 : vector<16x128xf32>
    %406 = vector.extract_strided_slice %402 {offsets = [1, 0], sizes = [16, 128], strides = [1, 1]} : vector<24x128xf32> to vector<16x128xf32>
    %407 = arith.mulf %406, %32 : vector<16x128xf32>
    %408 = arith.addf %405, %407 : vector<16x128xf32>
    %409 = vector.extract_strided_slice %402 {offsets = [2, 0], sizes = [16, 128], strides = [1, 1]} : vector<24x128xf32> to vector<16x128xf32>
    %410 = arith.mulf %409, %36 : vector<16x128xf32>
    %411 = arith.addf %408, %410 : vector<16x128xf32>
    %cst_125 = arith.constant 0.000000e+00 : f32
    %cst_126 = arith.constant 6.000000e+00 : f32
    %412 = vector.broadcast %cst_125 : f32 to vector<16x128xf32>
    %413 = arith.maximumf %412, %411 : vector<16x128xf32>
    %414 = vector.broadcast %cst_126 : f32 to vector<16x128xf32>
    %415 = arith.minimumf %414, %413 : vector<16x128xf32>
    %416 = arith.truncf %415 : vector<16x128xf32> to vector<16x128xbf16>
    %c128 = arith.constant 128 : index
    %c0_127 = arith.constant 0 : index
    %417 = vector.load %arg9[%c128, %c0_127] : memref<256x128xbf16, #tpu.memory_space<vmem>>, vector<16x128xbf16>
    tpu.vector_store %arg9[%c128, %c0_127], %416 {strides = array<i32>} : memref<256x128xbf16, #tpu.memory_space<vmem>>, vector<16x128xbf16>,
    %c0_128 = arith.constant 0 : index
    %c9_129 = arith.constant 9 : index
    %c0_130 = arith.constant 0 : index
    %c0_131 = arith.constant 0 : index
    %418 = vector.load %arg2[%c0_128, %c9_129, %c0_130, %c0_131] : memref<1x16x24x128xbf16, #tpu.memory_space<vmem>>, vector<1x1x24x128xbf16>
    %419 = vector.shape_cast %418 : vector<1x1x24x128xbf16> to vector<24x128xbf16>
    %420 = arith.extf %419 : vector<24x128xbf16> to vector<24x128xf32>
    %421 = vector.extract_strided_slice %420 {offsets = [0, 0], sizes = [16, 128], strides = [1, 1]} : vector<24x128xf32> to vector<16x128xf32>
    %422 = arith.mulf %421, %4 : vector<16x128xf32>
    %423 = arith.addf %39, %422 : vector<16x128xf32>
    %424 = vector.extract_strided_slice %420 {offsets = [1, 0], sizes = [16, 128], strides = [1, 1]} : vector<24x128xf32> to vector<16x128xf32>
    %425 = arith.mulf %424, %8 : vector<16x128xf32>
    %426 = arith.addf %423, %425 : vector<16x128xf32>
    %427 = vector.extract_strided_slice %420 {offsets = [2, 0], sizes = [16, 128], strides = [1, 1]} : vector<24x128xf32> to vector<16x128xf32>
    %428 = arith.mulf %427, %12 : vector<16x128xf32>
    %429 = arith.addf %426, %428 : vector<16x128xf32>
    %c0_132 = arith.constant 0 : index
    %c10_133 = arith.constant 10 : index
    %c0_134 = arith.constant 0 : index
    %c0_135 = arith.constant 0 : index
    %430 = vector.load %arg2[%c0_132, %c10_133, %c0_134, %c0_135] : memref<1x16x24x128xbf16, #tpu.memory_space<vmem>>, vector<1x1x24x128xbf16>
    %431 = vector.shape_cast %430 : vector<1x1x24x128xbf16> to vector<24x128xbf16>
    %432 = arith.extf %431 : vector<24x128xbf16> to vector<24x128xf32>
    %433 = vector.extract_strided_slice %432 {offsets = [0, 0], sizes = [16, 128], strides = [1, 1]} : vector<24x128xf32> to vector<16x128xf32>
    %434 = arith.mulf %433, %16 : vector<16x128xf32>
    %435 = arith.addf %429, %434 : vector<16x128xf32>
    %436 = vector.extract_strided_slice %432 {offsets = [1, 0], sizes = [16, 128], strides = [1, 1]} : vector<24x128xf32> to vector<16x128xf32>
    %437 = arith.mulf %436, %20 : vector<16x128xf32>
    %438 = arith.addf %435, %437 : vector<16x128xf32>
    %439 = vector.extract_strided_slice %432 {offsets = [2, 0], sizes = [16, 128], strides = [1, 1]} : vector<24x128xf32> to vector<16x128xf32>
    %440 = arith.mulf %439, %24 : vector<16x128xf32>
    %441 = arith.addf %438, %440 : vector<16x128xf32>
    %c0_136 = arith.constant 0 : index
    %c11 = arith.constant 11 : index
    %c0_137 = arith.constant 0 : index
    %c0_138 = arith.constant 0 : index
    %442 = vector.load %arg2[%c0_136, %c11, %c0_137, %c0_138] : memref<1x16x24x128xbf16, #tpu.memory_space<vmem>>, vector<1x1x24x128xbf16>
    %443 = vector.shape_cast %442 : vector<1x1x24x128xbf16> to vector<24x128xbf16>
    %444 = arith.extf %443 : vector<24x128xbf16> to vector<24x128xf32>
    %445 = vector.extract_strided_slice %444 {offsets = [0, 0], sizes = [16, 128], strides = [1, 1]} : vector<24x128xf32> to vector<16x128xf32>
    %446 = arith.mulf %445, %28 : vector<16x128xf32>
    %447 = arith.addf %441, %446 : vector<16x128xf32>
    %448 = vector.extract_strided_slice %444 {offsets = [1, 0], sizes = [16, 128], strides = [1, 1]} : vector<24x128xf32> to vector<16x128xf32>
    %449 = arith.mulf %448, %32 : vector<16x128xf32>
    %450 = arith.addf %447, %449 : vector<16x128xf32>
    %451 = vector.extract_strided_slice %444 {offsets = [2, 0], sizes = [16, 128], strides = [1, 1]} : vector<24x128xf32> to vector<16x128xf32>
    %452 = arith.mulf %451, %36 : vector<16x128xf32>
    %453 = arith.addf %450, %452 : vector<16x128xf32>
    %cst_139 = arith.constant 0.000000e+00 : f32
    %cst_140 = arith.constant 6.000000e+00 : f32
    %454 = vector.broadcast %cst_139 : f32 to vector<16x128xf32>
    %455 = arith.maximumf %454, %453 : vector<16x128xf32>
    %456 = vector.broadcast %cst_140 : f32 to vector<16x128xf32>
    %457 = arith.minimumf %456, %455 : vector<16x128xf32>
    %458 = arith.truncf %457 : vector<16x128xf32> to vector<16x128xbf16>
    %c144 = arith.constant 144 : index
    %c0_141 = arith.constant 0 : index
    %459 = vector.load %arg9[%c144, %c0_141] : memref<256x128xbf16, #tpu.memory_space<vmem>>, vector<16x128xbf16>
    tpu.vector_store %arg9[%c144, %c0_141], %458 {strides = array<i32>} : memref<256x128xbf16, #tpu.memory_space<vmem>>, vector<16x128xbf16>,
    %c0_142 = arith.constant 0 : index
    %c10_143 = arith.constant 10 : index
    %c0_144 = arith.constant 0 : index
    %c0_145 = arith.constant 0 : index
    %460 = vector.load %arg2[%c0_142, %c10_143, %c0_144, %c0_145] : memref<1x16x24x128xbf16, #tpu.memory_space<vmem>>, vector<1x1x24x128xbf16>
    %461 = vector.shape_cast %460 : vector<1x1x24x128xbf16> to vector<24x128xbf16>
    %462 = arith.extf %461 : vector<24x128xbf16> to vector<24x128xf32>
    %463 = vector.extract_strided_slice %462 {offsets = [0, 0], sizes = [16, 128], strides = [1, 1]} : vector<24x128xf32> to vector<16x128xf32>
    %464 = arith.mulf %463, %4 : vector<16x128xf32>
    %465 = arith.addf %39, %464 : vector<16x128xf32>
    %466 = vector.extract_strided_slice %462 {offsets = [1, 0], sizes = [16, 128], strides = [1, 1]} : vector<24x128xf32> to vector<16x128xf32>
    %467 = arith.mulf %466, %8 : vector<16x128xf32>
    %468 = arith.addf %465, %467 : vector<16x128xf32>
    %469 = vector.extract_strided_slice %462 {offsets = [2, 0], sizes = [16, 128], strides = [1, 1]} : vector<24x128xf32> to vector<16x128xf32>
    %470 = arith.mulf %469, %12 : vector<16x128xf32>
    %471 = arith.addf %468, %470 : vector<16x128xf32>
    %c0_146 = arith.constant 0 : index
    %c11_147 = arith.constant 11 : index
    %c0_148 = arith.constant 0 : index
    %c0_149 = arith.constant 0 : index
    %472 = vector.load %arg2[%c0_146, %c11_147, %c0_148, %c0_149] : memref<1x16x24x128xbf16, #tpu.memory_space<vmem>>, vector<1x1x24x128xbf16>
    %473 = vector.shape_cast %472 : vector<1x1x24x128xbf16> to vector<24x128xbf16>
    %474 = arith.extf %473 : vector<24x128xbf16> to vector<24x128xf32>
    %475 = vector.extract_strided_slice %474 {offsets = [0, 0], sizes = [16, 128], strides = [1, 1]} : vector<24x128xf32> to vector<16x128xf32>
    %476 = arith.mulf %475, %16 : vector<16x128xf32>
    %477 = arith.addf %471, %476 : vector<16x128xf32>
    %478 = vector.extract_strided_slice %474 {offsets = [1, 0], sizes = [16, 128], strides = [1, 1]} : vector<24x128xf32> to vector<16x128xf32>
    %479 = arith.mulf %478, %20 : vector<16x128xf32>
    %480 = arith.addf %477, %479 : vector<16x128xf32>
    %481 = vector.extract_strided_slice %474 {offsets = [2, 0], sizes = [16, 128], strides = [1, 1]} : vector<24x128xf32> to vector<16x128xf32>
    %482 = arith.mulf %481, %24 : vector<16x128xf32>
    %483 = arith.addf %480, %482 : vector<16x128xf32>
    %c0_150 = arith.constant 0 : index
    %c12 = arith.constant 12 : index
    %c0_151 = arith.constant 0 : index
    %c0_152 = arith.constant 0 : index
    %484 = vector.load %arg2[%c0_150, %c12, %c0_151, %c0_152] : memref<1x16x24x128xbf16, #tpu.memory_space<vmem>>, vector<1x1x24x128xbf16>
    %485 = vector.shape_cast %484 : vector<1x1x24x128xbf16> to vector<24x128xbf16>
    %486 = arith.extf %485 : vector<24x128xbf16> to vector<24x128xf32>
    %487 = vector.extract_strided_slice %486 {offsets = [0, 0], sizes = [16, 128], strides = [1, 1]} : vector<24x128xf32> to vector<16x128xf32>
    %488 = arith.mulf %487, %28 : vector<16x128xf32>
    %489 = arith.addf %483, %488 : vector<16x128xf32>
    %490 = vector.extract_strided_slice %486 {offsets = [1, 0], sizes = [16, 128], strides = [1, 1]} : vector<24x128xf32> to vector<16x128xf32>
    %491 = arith.mulf %490, %32 : vector<16x128xf32>
    %492 = arith.addf %489, %491 : vector<16x128xf32>
    %493 = vector.extract_strided_slice %486 {offsets = [2, 0], sizes = [16, 128], strides = [1, 1]} : vector<24x128xf32> to vector<16x128xf32>
    %494 = arith.mulf %493, %36 : vector<16x128xf32>
    %495 = arith.addf %492, %494 : vector<16x128xf32>
    %cst_153 = arith.constant 0.000000e+00 : f32
    %cst_154 = arith.constant 6.000000e+00 : f32
    %496 = vector.broadcast %cst_153 : f32 to vector<16x128xf32>
    %497 = arith.maximumf %496, %495 : vector<16x128xf32>
    %498 = vector.broadcast %cst_154 : f32 to vector<16x128xf32>
    %499 = arith.minimumf %498, %497 : vector<16x128xf32>
    %500 = arith.truncf %499 : vector<16x128xf32> to vector<16x128xbf16>
    %c160 = arith.constant 160 : index
    %c0_155 = arith.constant 0 : index
    %501 = vector.load %arg9[%c160, %c0_155] : memref<256x128xbf16, #tpu.memory_space<vmem>>, vector<16x128xbf16>
    tpu.vector_store %arg9[%c160, %c0_155], %500 {strides = array<i32>} : memref<256x128xbf16, #tpu.memory_space<vmem>>, vector<16x128xbf16>,
    %c0_156 = arith.constant 0 : index
    %c11_157 = arith.constant 11 : index
    %c0_158 = arith.constant 0 : index
    %c0_159 = arith.constant 0 : index
    %502 = vector.load %arg2[%c0_156, %c11_157, %c0_158, %c0_159] : memref<1x16x24x128xbf16, #tpu.memory_space<vmem>>, vector<1x1x24x128xbf16>
    %503 = vector.shape_cast %502 : vector<1x1x24x128xbf16> to vector<24x128xbf16>
    %504 = arith.extf %503 : vector<24x128xbf16> to vector<24x128xf32>
    %505 = vector.extract_strided_slice %504 {offsets = [0, 0], sizes = [16, 128], strides = [1, 1]} : vector<24x128xf32> to vector<16x128xf32>
    %506 = arith.mulf %505, %4 : vector<16x128xf32>
    %507 = arith.addf %39, %506 : vector<16x128xf32>
    %508 = vector.extract_strided_slice %504 {offsets = [1, 0], sizes = [16, 128], strides = [1, 1]} : vector<24x128xf32> to vector<16x128xf32>
    %509 = arith.mulf %508, %8 : vector<16x128xf32>
    %510 = arith.addf %507, %509 : vector<16x128xf32>
    %511 = vector.extract_strided_slice %504 {offsets = [2, 0], sizes = [16, 128], strides = [1, 1]} : vector<24x128xf32> to vector<16x128xf32>
    %512 = arith.mulf %511, %12 : vector<16x128xf32>
    %513 = arith.addf %510, %512 : vector<16x128xf32>
    %c0_160 = arith.constant 0 : index
    %c12_161 = arith.constant 12 : index
    %c0_162 = arith.constant 0 : index
    %c0_163 = arith.constant 0 : index
    %514 = vector.load %arg2[%c0_160, %c12_161, %c0_162, %c0_163] : memref<1x16x24x128xbf16, #tpu.memory_space<vmem>>, vector<1x1x24x128xbf16>
    %515 = vector.shape_cast %514 : vector<1x1x24x128xbf16> to vector<24x128xbf16>
    %516 = arith.extf %515 : vector<24x128xbf16> to vector<24x128xf32>
    %517 = vector.extract_strided_slice %516 {offsets = [0, 0], sizes = [16, 128], strides = [1, 1]} : vector<24x128xf32> to vector<16x128xf32>
    %518 = arith.mulf %517, %16 : vector<16x128xf32>
    %519 = arith.addf %513, %518 : vector<16x128xf32>
    %520 = vector.extract_strided_slice %516 {offsets = [1, 0], sizes = [16, 128], strides = [1, 1]} : vector<24x128xf32> to vector<16x128xf32>
    %521 = arith.mulf %520, %20 : vector<16x128xf32>
    %522 = arith.addf %519, %521 : vector<16x128xf32>
    %523 = vector.extract_strided_slice %516 {offsets = [2, 0], sizes = [16, 128], strides = [1, 1]} : vector<24x128xf32> to vector<16x128xf32>
    %524 = arith.mulf %523, %24 : vector<16x128xf32>
    %525 = arith.addf %522, %524 : vector<16x128xf32>
    %c0_164 = arith.constant 0 : index
    %c13 = arith.constant 13 : index
    %c0_165 = arith.constant 0 : index
    %c0_166 = arith.constant 0 : index
    %526 = vector.load %arg2[%c0_164, %c13, %c0_165, %c0_166] : memref<1x16x24x128xbf16, #tpu.memory_space<vmem>>, vector<1x1x24x128xbf16>
    %527 = vector.shape_cast %526 : vector<1x1x24x128xbf16> to vector<24x128xbf16>
    %528 = arith.extf %527 : vector<24x128xbf16> to vector<24x128xf32>
    %529 = vector.extract_strided_slice %528 {offsets = [0, 0], sizes = [16, 128], strides = [1, 1]} : vector<24x128xf32> to vector<16x128xf32>
    %530 = arith.mulf %529, %28 : vector<16x128xf32>
    %531 = arith.addf %525, %530 : vector<16x128xf32>
    %532 = vector.extract_strided_slice %528 {offsets = [1, 0], sizes = [16, 128], strides = [1, 1]} : vector<24x128xf32> to vector<16x128xf32>
    %533 = arith.mulf %532, %32 : vector<16x128xf32>
    %534 = arith.addf %531, %533 : vector<16x128xf32>
    %535 = vector.extract_strided_slice %528 {offsets = [2, 0], sizes = [16, 128], strides = [1, 1]} : vector<24x128xf32> to vector<16x128xf32>
    %536 = arith.mulf %535, %36 : vector<16x128xf32>
    %537 = arith.addf %534, %536 : vector<16x128xf32>
    %cst_167 = arith.constant 0.000000e+00 : f32
    %cst_168 = arith.constant 6.000000e+00 : f32
    %538 = vector.broadcast %cst_167 : f32 to vector<16x128xf32>
    %539 = arith.maximumf %538, %537 : vector<16x128xf32>
    %540 = vector.broadcast %cst_168 : f32 to vector<16x128xf32>
    %541 = arith.minimumf %540, %539 : vector<16x128xf32>
    %542 = arith.truncf %541 : vector<16x128xf32> to vector<16x128xbf16>
    %c176 = arith.constant 176 : index
    %c0_169 = arith.constant 0 : index
    %543 = vector.load %arg9[%c176, %c0_169] : memref<256x128xbf16, #tpu.memory_space<vmem>>, vector<16x128xbf16>
    tpu.vector_store %arg9[%c176, %c0_169], %542 {strides = array<i32>} : memref<256x128xbf16, #tpu.memory_space<vmem>>, vector<16x128xbf16>,
    %c0_170 = arith.constant 0 : index
    %c12_171 = arith.constant 12 : index
    %c0_172 = arith.constant 0 : index
    %c0_173 = arith.constant 0 : index
    %544 = vector.load %arg2[%c0_170, %c12_171, %c0_172, %c0_173] : memref<1x16x24x128xbf16, #tpu.memory_space<vmem>>, vector<1x1x24x128xbf16>
    %545 = vector.shape_cast %544 : vector<1x1x24x128xbf16> to vector<24x128xbf16>
    %546 = arith.extf %545 : vector<24x128xbf16> to vector<24x128xf32>
    %547 = vector.extract_strided_slice %546 {offsets = [0, 0], sizes = [16, 128], strides = [1, 1]} : vector<24x128xf32> to vector<16x128xf32>
    %548 = arith.mulf %547, %4 : vector<16x128xf32>
    %549 = arith.addf %39, %548 : vector<16x128xf32>
    %550 = vector.extract_strided_slice %546 {offsets = [1, 0], sizes = [16, 128], strides = [1, 1]} : vector<24x128xf32> to vector<16x128xf32>
    %551 = arith.mulf %550, %8 : vector<16x128xf32>
    %552 = arith.addf %549, %551 : vector<16x128xf32>
    %553 = vector.extract_strided_slice %546 {offsets = [2, 0], sizes = [16, 128], strides = [1, 1]} : vector<24x128xf32> to vector<16x128xf32>
    %554 = arith.mulf %553, %12 : vector<16x128xf32>
    %555 = arith.addf %552, %554 : vector<16x128xf32>
    %c0_174 = arith.constant 0 : index
    %c13_175 = arith.constant 13 : index
    %c0_176 = arith.constant 0 : index
    %c0_177 = arith.constant 0 : index
    %556 = vector.load %arg2[%c0_174, %c13_175, %c0_176, %c0_177] : memref<1x16x24x128xbf16, #tpu.memory_space<vmem>>, vector<1x1x24x128xbf16>
    %557 = vector.shape_cast %556 : vector<1x1x24x128xbf16> to vector<24x128xbf16>
    %558 = arith.extf %557 : vector<24x128xbf16> to vector<24x128xf32>
    %559 = vector.extract_strided_slice %558 {offsets = [0, 0], sizes = [16, 128], strides = [1, 1]} : vector<24x128xf32> to vector<16x128xf32>
    %560 = arith.mulf %559, %16 : vector<16x128xf32>
    %561 = arith.addf %555, %560 : vector<16x128xf32>
    %562 = vector.extract_strided_slice %558 {offsets = [1, 0], sizes = [16, 128], strides = [1, 1]} : vector<24x128xf32> to vector<16x128xf32>
    %563 = arith.mulf %562, %20 : vector<16x128xf32>
    %564 = arith.addf %561, %563 : vector<16x128xf32>
    %565 = vector.extract_strided_slice %558 {offsets = [2, 0], sizes = [16, 128], strides = [1, 1]} : vector<24x128xf32> to vector<16x128xf32>
    %566 = arith.mulf %565, %24 : vector<16x128xf32>
    %567 = arith.addf %564, %566 : vector<16x128xf32>
    %c0_178 = arith.constant 0 : index
    %c14 = arith.constant 14 : index
    %c0_179 = arith.constant 0 : index
    %c0_180 = arith.constant 0 : index
    %568 = vector.load %arg2[%c0_178, %c14, %c0_179, %c0_180] : memref<1x16x24x128xbf16, #tpu.memory_space<vmem>>, vector<1x1x24x128xbf16>
    %569 = vector.shape_cast %568 : vector<1x1x24x128xbf16> to vector<24x128xbf16>
    %570 = arith.extf %569 : vector<24x128xbf16> to vector<24x128xf32>
    %571 = vector.extract_strided_slice %570 {offsets = [0, 0], sizes = [16, 128], strides = [1, 1]} : vector<24x128xf32> to vector<16x128xf32>
    %572 = arith.mulf %571, %28 : vector<16x128xf32>
    %573 = arith.addf %567, %572 : vector<16x128xf32>
    %574 = vector.extract_strided_slice %570 {offsets = [1, 0], sizes = [16, 128], strides = [1, 1]} : vector<24x128xf32> to vector<16x128xf32>
    %575 = arith.mulf %574, %32 : vector<16x128xf32>
    %576 = arith.addf %573, %575 : vector<16x128xf32>
    %577 = vector.extract_strided_slice %570 {offsets = [2, 0], sizes = [16, 128], strides = [1, 1]} : vector<24x128xf32> to vector<16x128xf32>
    %578 = arith.mulf %577, %36 : vector<16x128xf32>
    %579 = arith.addf %576, %578 : vector<16x128xf32>
    %cst_181 = arith.constant 0.000000e+00 : f32
    %cst_182 = arith.constant 6.000000e+00 : f32
    %580 = vector.broadcast %cst_181 : f32 to vector<16x128xf32>
    %581 = arith.maximumf %580, %579 : vector<16x128xf32>
    %582 = vector.broadcast %cst_182 : f32 to vector<16x128xf32>
    %583 = arith.minimumf %582, %581 : vector<16x128xf32>
    %584 = arith.truncf %583 : vector<16x128xf32> to vector<16x128xbf16>
    %c192 = arith.constant 192 : index
    %c0_183 = arith.constant 0 : index
    %585 = vector.load %arg9[%c192, %c0_183] : memref<256x128xbf16, #tpu.memory_space<vmem>>, vector<16x128xbf16>
    tpu.vector_store %arg9[%c192, %c0_183], %584 {strides = array<i32>} : memref<256x128xbf16, #tpu.memory_space<vmem>>, vector<16x128xbf16>,
    %c0_184 = arith.constant 0 : index
    %c13_185 = arith.constant 13 : index
    %c0_186 = arith.constant 0 : index
    %c0_187 = arith.constant 0 : index
    %586 = vector.load %arg2[%c0_184, %c13_185, %c0_186, %c0_187] : memref<1x16x24x128xbf16, #tpu.memory_space<vmem>>, vector<1x1x24x128xbf16>
    %587 = vector.shape_cast %586 : vector<1x1x24x128xbf16> to vector<24x128xbf16>
    %588 = arith.extf %587 : vector<24x128xbf16> to vector<24x128xf32>
    %589 = vector.extract_strided_slice %588 {offsets = [0, 0], sizes = [16, 128], strides = [1, 1]} : vector<24x128xf32> to vector<16x128xf32>
    %590 = arith.mulf %589, %4 : vector<16x128xf32>
    %591 = arith.addf %39, %590 : vector<16x128xf32>
    %592 = vector.extract_strided_slice %588 {offsets = [1, 0], sizes = [16, 128], strides = [1, 1]} : vector<24x128xf32> to vector<16x128xf32>
    %593 = arith.mulf %592, %8 : vector<16x128xf32>
    %594 = arith.addf %591, %593 : vector<16x128xf32>
    %595 = vector.extract_strided_slice %588 {offsets = [2, 0], sizes = [16, 128], strides = [1, 1]} : vector<24x128xf32> to vector<16x128xf32>
    %596 = arith.mulf %595, %12 : vector<16x128xf32>
    %597 = arith.addf %594, %596 : vector<16x128xf32>
    %c0_188 = arith.constant 0 : index
    %c14_189 = arith.constant 14 : index
    %c0_190 = arith.constant 0 : index
    %c0_191 = arith.constant 0 : index
    %598 = vector.load %arg2[%c0_188, %c14_189, %c0_190, %c0_191] : memref<1x16x24x128xbf16, #tpu.memory_space<vmem>>, vector<1x1x24x128xbf16>
    %599 = vector.shape_cast %598 : vector<1x1x24x128xbf16> to vector<24x128xbf16>
    %600 = arith.extf %599 : vector<24x128xbf16> to vector<24x128xf32>
    %601 = vector.extract_strided_slice %600 {offsets = [0, 0], sizes = [16, 128], strides = [1, 1]} : vector<24x128xf32> to vector<16x128xf32>
    %602 = arith.mulf %601, %16 : vector<16x128xf32>
    %603 = arith.addf %597, %602 : vector<16x128xf32>
    %604 = vector.extract_strided_slice %600 {offsets = [1, 0], sizes = [16, 128], strides = [1, 1]} : vector<24x128xf32> to vector<16x128xf32>
    %605 = arith.mulf %604, %20 : vector<16x128xf32>
    %606 = arith.addf %603, %605 : vector<16x128xf32>
    %607 = vector.extract_strided_slice %600 {offsets = [2, 0], sizes = [16, 128], strides = [1, 1]} : vector<24x128xf32> to vector<16x128xf32>
    %608 = arith.mulf %607, %24 : vector<16x128xf32>
    %609 = arith.addf %606, %608 : vector<16x128xf32>
    %c0_192 = arith.constant 0 : index
    %c15 = arith.constant 15 : index
    %c0_193 = arith.constant 0 : index
    %c0_194 = arith.constant 0 : index
    %610 = vector.load %arg2[%c0_192, %c15, %c0_193, %c0_194] : memref<1x16x24x128xbf16, #tpu.memory_space<vmem>>, vector<1x1x24x128xbf16>
    %611 = vector.shape_cast %610 : vector<1x1x24x128xbf16> to vector<24x128xbf16>
    %612 = arith.extf %611 : vector<24x128xbf16> to vector<24x128xf32>
    %613 = vector.extract_strided_slice %612 {offsets = [0, 0], sizes = [16, 128], strides = [1, 1]} : vector<24x128xf32> to vector<16x128xf32>
    %614 = arith.mulf %613, %28 : vector<16x128xf32>
    %615 = arith.addf %609, %614 : vector<16x128xf32>
    %616 = vector.extract_strided_slice %612 {offsets = [1, 0], sizes = [16, 128], strides = [1, 1]} : vector<24x128xf32> to vector<16x128xf32>
    %617 = arith.mulf %616, %32 : vector<16x128xf32>
    %618 = arith.addf %615, %617 : vector<16x128xf32>
    %619 = vector.extract_strided_slice %612 {offsets = [2, 0], sizes = [16, 128], strides = [1, 1]} : vector<24x128xf32> to vector<16x128xf32>
    %620 = arith.mulf %619, %36 : vector<16x128xf32>
    %621 = arith.addf %618, %620 : vector<16x128xf32>
    %cst_195 = arith.constant 0.000000e+00 : f32
    %cst_196 = arith.constant 6.000000e+00 : f32
    %622 = vector.broadcast %cst_195 : f32 to vector<16x128xf32>
    %623 = arith.maximumf %622, %621 : vector<16x128xf32>
    %624 = vector.broadcast %cst_196 : f32 to vector<16x128xf32>
    %625 = arith.minimumf %624, %623 : vector<16x128xf32>
    %626 = arith.truncf %625 : vector<16x128xf32> to vector<16x128xbf16>
    %c208 = arith.constant 208 : index
    %c0_197 = arith.constant 0 : index
    %627 = vector.load %arg9[%c208, %c0_197] : memref<256x128xbf16, #tpu.memory_space<vmem>>, vector<16x128xbf16>
    tpu.vector_store %arg9[%c208, %c0_197], %626 {strides = array<i32>} : memref<256x128xbf16, #tpu.memory_space<vmem>>, vector<16x128xbf16>,
    %c0_198 = arith.constant 0 : index
    %c14_199 = arith.constant 14 : index
    %c0_200 = arith.constant 0 : index
    %c0_201 = arith.constant 0 : index
    %628 = vector.load %arg2[%c0_198, %c14_199, %c0_200, %c0_201] : memref<1x16x24x128xbf16, #tpu.memory_space<vmem>>, vector<1x1x24x128xbf16>
    %629 = vector.shape_cast %628 : vector<1x1x24x128xbf16> to vector<24x128xbf16>
    %630 = arith.extf %629 : vector<24x128xbf16> to vector<24x128xf32>
    %631 = vector.extract_strided_slice %630 {offsets = [0, 0], sizes = [16, 128], strides = [1, 1]} : vector<24x128xf32> to vector<16x128xf32>
    %632 = arith.mulf %631, %4 : vector<16x128xf32>
    %633 = arith.addf %39, %632 : vector<16x128xf32>
    %634 = vector.extract_strided_slice %630 {offsets = [1, 0], sizes = [16, 128], strides = [1, 1]} : vector<24x128xf32> to vector<16x128xf32>
    %635 = arith.mulf %634, %8 : vector<16x128xf32>
    %636 = arith.addf %633, %635 : vector<16x128xf32>
    %637 = vector.extract_strided_slice %630 {offsets = [2, 0], sizes = [16, 128], strides = [1, 1]} : vector<24x128xf32> to vector<16x128xf32>
    %638 = arith.mulf %637, %12 : vector<16x128xf32>
    %639 = arith.addf %636, %638 : vector<16x128xf32>
    %c0_202 = arith.constant 0 : index
    %c15_203 = arith.constant 15 : index
    %c0_204 = arith.constant 0 : index
    %c0_205 = arith.constant 0 : index
    %640 = vector.load %arg2[%c0_202, %c15_203, %c0_204, %c0_205] : memref<1x16x24x128xbf16, #tpu.memory_space<vmem>>, vector<1x1x24x128xbf16>
    %641 = vector.shape_cast %640 : vector<1x1x24x128xbf16> to vector<24x128xbf16>
    %642 = arith.extf %641 : vector<24x128xbf16> to vector<24x128xf32>
    %643 = vector.extract_strided_slice %642 {offsets = [0, 0], sizes = [16, 128], strides = [1, 1]} : vector<24x128xf32> to vector<16x128xf32>
    %644 = arith.mulf %643, %16 : vector<16x128xf32>
    %645 = arith.addf %639, %644 : vector<16x128xf32>
    %646 = vector.extract_strided_slice %642 {offsets = [1, 0], sizes = [16, 128], strides = [1, 1]} : vector<24x128xf32> to vector<16x128xf32>
    %647 = arith.mulf %646, %20 : vector<16x128xf32>
    %648 = arith.addf %645, %647 : vector<16x128xf32>
    %649 = vector.extract_strided_slice %642 {offsets = [2, 0], sizes = [16, 128], strides = [1, 1]} : vector<24x128xf32> to vector<16x128xf32>
    %650 = arith.mulf %649, %24 : vector<16x128xf32>
    %651 = arith.addf %648, %650 : vector<16x128xf32>
    %c0_206 = arith.constant 0 : index
    %c0_207 = arith.constant 0 : index
    %c0_208 = arith.constant 0 : index
    %c0_209 = arith.constant 0 : index
    %652 = vector.load %arg3[%c0_206, %c0_207, %c0_208, %c0_209] : memref<1x2x24x128xbf16, #tpu.memory_space<vmem>>, vector<1x1x24x128xbf16>
    %653 = vector.shape_cast %652 : vector<1x1x24x128xbf16> to vector<24x128xbf16>
    %654 = arith.extf %653 : vector<24x128xbf16> to vector<24x128xf32>
    %655 = vector.extract_strided_slice %654 {offsets = [0, 0], sizes = [16, 128], strides = [1, 1]} : vector<24x128xf32> to vector<16x128xf32>
    %656 = arith.mulf %655, %28 : vector<16x128xf32>
    %657 = arith.addf %651, %656 : vector<16x128xf32>
    %658 = vector.extract_strided_slice %654 {offsets = [1, 0], sizes = [16, 128], strides = [1, 1]} : vector<24x128xf32> to vector<16x128xf32>
    %659 = arith.mulf %658, %32 : vector<16x128xf32>
    %660 = arith.addf %657, %659 : vector<16x128xf32>
    %661 = vector.extract_strided_slice %654 {offsets = [2, 0], sizes = [16, 128], strides = [1, 1]} : vector<24x128xf32> to vector<16x128xf32>
    %662 = arith.mulf %661, %36 : vector<16x128xf32>
    %663 = arith.addf %660, %662 : vector<16x128xf32>
    %cst_210 = arith.constant 0.000000e+00 : f32
    %cst_211 = arith.constant 6.000000e+00 : f32
    %664 = vector.broadcast %cst_210 : f32 to vector<16x128xf32>
    %665 = arith.maximumf %664, %663 : vector<16x128xf32>
    %666 = vector.broadcast %cst_211 : f32 to vector<16x128xf32>
    %667 = arith.minimumf %666, %665 : vector<16x128xf32>
    %668 = arith.truncf %667 : vector<16x128xf32> to vector<16x128xbf16>
    %c224 = arith.constant 224 : index
    %c0_212 = arith.constant 0 : index
    %669 = vector.load %arg9[%c224, %c0_212] : memref<256x128xbf16, #tpu.memory_space<vmem>>, vector<16x128xbf16>
    tpu.vector_store %arg9[%c224, %c0_212], %668 {strides = array<i32>} : memref<256x128xbf16, #tpu.memory_space<vmem>>, vector<16x128xbf16>,
    %c0_213 = arith.constant 0 : index
    %c15_214 = arith.constant 15 : index
    %c0_215 = arith.constant 0 : index
    %c0_216 = arith.constant 0 : index
    %670 = vector.load %arg2[%c0_213, %c15_214, %c0_215, %c0_216] : memref<1x16x24x128xbf16, #tpu.memory_space<vmem>>, vector<1x1x24x128xbf16>
    %671 = vector.shape_cast %670 : vector<1x1x24x128xbf16> to vector<24x128xbf16>
    %672 = arith.extf %671 : vector<24x128xbf16> to vector<24x128xf32>
    %673 = vector.extract_strided_slice %672 {offsets = [0, 0], sizes = [16, 128], strides = [1, 1]} : vector<24x128xf32> to vector<16x128xf32>
    %674 = arith.mulf %673, %4 : vector<16x128xf32>
    %675 = arith.addf %39, %674 : vector<16x128xf32>
    %676 = vector.extract_strided_slice %672 {offsets = [1, 0], sizes = [16, 128], strides = [1, 1]} : vector<24x128xf32> to vector<16x128xf32>
    %677 = arith.mulf %676, %8 : vector<16x128xf32>
    %678 = arith.addf %675, %677 : vector<16x128xf32>
    %679 = vector.extract_strided_slice %672 {offsets = [2, 0], sizes = [16, 128], strides = [1, 1]} : vector<24x128xf32> to vector<16x128xf32>
    %680 = arith.mulf %679, %12 : vector<16x128xf32>
    %681 = arith.addf %678, %680 : vector<16x128xf32>
    %c0_217 = arith.constant 0 : index
    %c0_218 = arith.constant 0 : index
    %c0_219 = arith.constant 0 : index
    %c0_220 = arith.constant 0 : index
    %682 = vector.load %arg3[%c0_217, %c0_218, %c0_219, %c0_220] : memref<1x2x24x128xbf16, #tpu.memory_space<vmem>>, vector<1x1x24x128xbf16>
    %683 = vector.shape_cast %682 : vector<1x1x24x128xbf16> to vector<24x128xbf16>
    %684 = arith.extf %683 : vector<24x128xbf16> to vector<24x128xf32>
    %685 = vector.extract_strided_slice %684 {offsets = [0, 0], sizes = [16, 128], strides = [1, 1]} : vector<24x128xf32> to vector<16x128xf32>
    %686 = arith.mulf %685, %16 : vector<16x128xf32>
    %687 = arith.addf %681, %686 : vector<16x128xf32>
    %688 = vector.extract_strided_slice %684 {offsets = [1, 0], sizes = [16, 128], strides = [1, 1]} : vector<24x128xf32> to vector<16x128xf32>
    %689 = arith.mulf %688, %20 : vector<16x128xf32>
    %690 = arith.addf %687, %689 : vector<16x128xf32>
    %691 = vector.extract_strided_slice %684 {offsets = [2, 0], sizes = [16, 128], strides = [1, 1]} : vector<24x128xf32> to vector<16x128xf32>
    %692 = arith.mulf %691, %24 : vector<16x128xf32>
    %693 = arith.addf %690, %692 : vector<16x128xf32>
    %c0_221 = arith.constant 0 : index
    %c1_222 = arith.constant 1 : index
    %c0_223 = arith.constant 0 : index
    %c0_224 = arith.constant 0 : index
    %694 = vector.load %arg3[%c0_221, %c1_222, %c0_223, %c0_224] : memref<1x2x24x128xbf16, #tpu.memory_space<vmem>>, vector<1x1x24x128xbf16>
    %695 = vector.shape_cast %694 : vector<1x1x24x128xbf16> to vector<24x128xbf16>
    %696 = arith.extf %695 : vector<24x128xbf16> to vector<24x128xf32>
    %697 = vector.extract_strided_slice %696 {offsets = [0, 0], sizes = [16, 128], strides = [1, 1]} : vector<24x128xf32> to vector<16x128xf32>
    %698 = arith.mulf %697, %28 : vector<16x128xf32>
    %699 = arith.addf %693, %698 : vector<16x128xf32>
    %700 = vector.extract_strided_slice %696 {offsets = [1, 0], sizes = [16, 128], strides = [1, 1]} : vector<24x128xf32> to vector<16x128xf32>
    %701 = arith.mulf %700, %32 : vector<16x128xf32>
    %702 = arith.addf %699, %701 : vector<16x128xf32>
    %703 = vector.extract_strided_slice %696 {offsets = [2, 0], sizes = [16, 128], strides = [1, 1]} : vector<24x128xf32> to vector<16x128xf32>
    %704 = arith.mulf %703, %36 : vector<16x128xf32>
    %705 = arith.addf %702, %704 : vector<16x128xf32>
    %cst_225 = arith.constant 0.000000e+00 : f32
    %cst_226 = arith.constant 6.000000e+00 : f32
    %706 = vector.broadcast %cst_225 : f32 to vector<16x128xf32>
    %707 = arith.maximumf %706, %705 : vector<16x128xf32>
    %708 = vector.broadcast %cst_226 : f32 to vector<16x128xf32>
    %709 = arith.minimumf %708, %707 : vector<16x128xf32>
    %710 = arith.truncf %709 : vector<16x128xf32> to vector<16x128xbf16>
    %c240 = arith.constant 240 : index
    %c0_227 = arith.constant 0 : index
    %711 = vector.load %arg9[%c240, %c0_227] : memref<256x128xbf16, #tpu.memory_space<vmem>>, vector<16x128xbf16>
    tpu.vector_store %arg9[%c240, %c0_227], %710 {strides = array<i32>} : memref<256x128xbf16, #tpu.memory_space<vmem>>, vector<16x128xbf16>,
    %c0_228 = arith.constant 0 : index
    %c0_229 = arith.constant 0 : index
    %712 = vector.load %arg9[%c0_228, %c0_229] : memref<256x128xbf16, #tpu.memory_space<vmem>>, vector<256x128xbf16>
    %c0_230 = arith.constant 0 : index
    %c0_231 = arith.constant 0 : index
    %713 = vector.load %arg6[%c0_230, %c0_231] : memref<128x128xbf16, #tpu.memory_space<vmem>>, vector<128x128xbf16>
    %cst_232 = arith.constant dense<0.000000e+00> : vector<256x128xf32>
    %714 = tpu.matmul %712, %713, %cst_232 {dimension_numbers = #tpu.dot_dimension_numbers<[1], [0], [0], [1], [0, 0, 1, 1], [], []>} : vector<256x128xbf16>, vector<128x128xbf16>, vector<256x128xf32> -> vector<256x128xf32>
    %c0_233 = arith.constant 0 : index
    %c0_234 = arith.constant 0 : index
    %715 = vector.load %arg7[%c0_233, %c0_234] : memref<1x128xf32, #tpu.memory_space<vmem>>, vector<1x128xf32>
    %716 = vector.broadcast %715 : vector<1x128xf32> to vector<256x128xf32>
    %717 = arith.addf %714, %716 : vector<256x128xf32>
    %718 = arith.truncf %717 : vector<256x128xf32> to vector<256x128xbf16>
    %c0_235 = arith.constant 0 : index
    %c0_236 = arith.constant 0 : index
    %c0_237 = arith.constant 0 : index
    %719 = vector.load %arg8[%c0_235, %c0_236, %c0_237] : memref<1x256x128xbf16, #tpu.memory_space<vmem>>, vector<1x256x128xbf16>
    %720 = vector.shape_cast %719 : vector<1x256x128xbf16> to vector<256x128xbf16>
    %721 = vector.shape_cast %718 : vector<256x128xbf16> to vector<1x256x128xbf16>
    tpu.vector_store %arg8[%c0_235, %c0_236, %c0_237], %721 {strides = array<i32>} : memref<1x256x128xbf16, #tpu.memory_space<vmem>>, vector<1x256x128xbf16>,
    return
  }
  func.func @transform_0(%arg0: i32, %arg1: i32) -> (i32, i32, i32, i32) {
    %c0_i32 = arith.constant 0 : i32
    %c0_i32_0 = arith.constant 0 : i32
    %c0_i32_1 = arith.constant 0 : i32
    return %arg0, %arg1, %c0_i32, %c0_i32_0 : i32, i32, i32, i32
  }
  func.func @transform_1(%arg0: i32, %arg1: i32) -> (i32, i32, i32, i32) {
    %c1_i32 = arith.constant 1 : i32
    %0 = arith.addi %arg1, %c1_i32 : i32
    %c8_i32 = arith.constant 8 : i32
    %1 = arith.muli %0, %c8_i32 : i32
    %c0_i32 = arith.constant 0 : i32
    %c0_i32_0 = arith.constant 0 : i32
    %c0_i32_1 = arith.constant 0 : i32
    return %arg0, %1, %c0_i32, %c0_i32_0 : i32, i32, i32, i32
  }
  func.func @transform_2(%arg0: i32, %arg1: i32) -> (i32, i32) {
    %c0_i32 = arith.constant 0 : i32
    %c0_i32_0 = arith.constant 0 : i32
    %c0_i32_1 = arith.constant 0 : i32
    return %c0_i32, %c0_i32_0 : i32, i32
  }
  func.func @transform_3(%arg0: i32, %arg1: i32) -> (i32, i32) {
    %c0_i32 = arith.constant 0 : i32
    %c0_i32_0 = arith.constant 0 : i32
    %c0_i32_1 = arith.constant 0 : i32
    return %c0_i32, %c0_i32_0 : i32, i32
  }
  func.func @transform_4(%arg0: i32, %arg1: i32) -> (i32, i32) {
    %c0_i32 = arith.constant 0 : i32
    %c0_i32_0 = arith.constant 0 : i32
    %c0_i32_1 = arith.constant 0 : i32
    return %c0_i32, %c0_i32_0 : i32, i32
  }
  func.func @transform_5(%arg0: i32, %arg1: i32) -> (i32, i32) {
    %c0_i32 = arith.constant 0 : i32
    %c0_i32_0 = arith.constant 0 : i32
    %c0_i32_1 = arith.constant 0 : i32
    return %c0_i32, %c0_i32_0 : i32, i32
  }
  func.func @transform_6(%arg0: i32, %arg1: i32) -> (i32, i32, i32) {
    %c0_i32 = arith.constant 0 : i32
    %c0_i32_0 = arith.constant 0 : i32
    return %arg0, %arg1, %c0_i32 : i32, i32, i32
  }
}

</mosaic_0001>

<llo_original>
// kernel: dep_sep_conv.1
$region0: #{dep_sep_conv.1}
  #allocation0 [shape = 'u32[]', space=smem, size = 0x4, offset = 0x4, fixed_abs, tag = 'smem constant byte address 0x4 - core index']
  #allocation1 [shape = 'u32[72,128]{1,0:T(1,128)}', space=vmem, size = 0x9000, scoped, tag = 'internal scratch']
  #allocation2 [shape = 'bf16[256,128]{1,0:T(8,128)(2,1)}', space=vmem, size = 0x10000, scoped, tag = 'scratch operand']
  %s0 = inlined_call_operand.vmem [shape: bf16[2,18,24,128], index: 0, kind: input, shape index: {}, may-alias: {0,1}]
  %s1 = inlined_call_operand.vmem [shape: bf16[2,18,24,128], index: 1, kind: input, shape index: {}, may-alias: {0,1}]
  %s2 = inlined_call_operand.vmem [shape: f32[9,128], index: 2, kind: input, shape index: {}]
  %s3 = inlined_call_operand.vmem [shape: f32[1,128], index: 3, kind: input, shape index: {}]
  %s4 = inlined_call_operand.vmem [shape: bf16[128,128], index: 4, kind: input, shape index: {}]
  %s5 = inlined_call_operand.vmem [shape: f32[1,128], index: 5, kind: input, shape index: {}]
  %s6 = inlined_call_operand.vmem [shape: bf16[2,256,128], index: 6, kind: output, shape index: {}]
  %s7 = sld [smem:[#allocation0]]
  $region57: #{dep_sep_conv.1} parent=0
    _
  %s9 = ssub.s32 1, %s7
  %s10 = scalar_select 0, %s9, %s7
  loop: start=0, step=1, limit=4
  $region2: #{dep_sep_conv.1} parent=0 // loop_pre_header
    _
  $region3: #{dep_sep_conv.1} parent=0 // loop_header
    %s12 = sphi 0, %s16
    %p13 = scmp.ge.s32.totalorder %s12, 4
    %s19 = sphi 0, %s31
    %s20 = sphi 0, %s27
    %s21 = sphi 0, %s19
    %s22 = sphi 0, %s20
    %s23 = sphi 0, %s21
    %s24 = sphi 0, %s22
    %s36 = sphi 0, %s38
    %s39 = sphi 0, %s36
    %s40 = sphi 0, %s39
    %s56 = sphi 0, %s40
    %s68 = sphi 0, %s70
    %s71 = sphi 0, %s68
    %s72 = sphi 0, %s71
    %s88 = sphi 0, %s72
    %s92 = sphi 0, %s92
    %s94 = sphi 0, %s92
    %s95 = sphi 0, %s94
    %s109 = sphi 0, %s95
    %s113 = sphi 0, %s113
    %s115 = sphi 0, %s113
    %s116 = sphi 0, %s115
    %s130 = sphi 0, %s116
    %s134 = sphi 0, %s134
    %s136 = sphi 0, %s134
    %s137 = sphi 0, %s136
    %s151 = sphi 0, %s137
    %s155 = sphi 0, %s155
    %s157 = sphi 0, %s155
    %s158 = sphi 0, %s157
    %s172 = sphi 0, %s158
    %s180 = sphi 0, %s182
    %s183 = sphi 0, %s180
    %s184 = sphi 0, %s183
    %s200 = sphi 0, %s184
  $region4: #{dep_sep_conv.1} parent=0 // loop_header_branch
    %15 = sbr.rel (%p13) target = $region8
  $region5: #{dep_sep_conv.1} parent=0 // loop_body
    %s17 = ssub.s32 %s12, 1
    %s18 = ssub.s32 %s12, 2
    %s25 = sadd.s32 1, %s20
    %p26 = scmp.ge.s32.totalorder %s25, 1
    %s27 = scalar_select %p26, 0, %s25
    %s28 = sadd.s32 1, %s19
    %s29 = scalar_select %p26, %s28, %s19
    %p30 = scmp.ge.s32.totalorder %s29, 2
    %s31 = scalar_select %p30, 0, %s29
    %s32 = ssub.s32 %s19, %s31
    %s33 = ssub.s32 %s20, %s27
    %s34 = sor.u32 %s32, %s33
    %p35 = scmp.eq.s32.totalorder %s34, 0
    %s37 = sadd.s32 %s36, 1
    %s38 = scalar_select %p35, %s36, %s37
    %p41 = pneg %p35
    %p42 = scmp.eq.s32.totalorder %s12, 1
    %p43 = por %p41, %p42
    %p44 = scmp.ne.s32.totalorder %s36, %s39
    %p45 = scmp.eq.s32.totalorder %s12, 0
    %p46 = por %p44, %p45
    %p47 = scmp.ne.s32.totalorder %s36, %s39
    %p48 = scmp.eq.s32.totalorder %s17, 1
    %p49 = por %p47, %p48
    %p50 = scmp.ne.s32.totalorder %s39, %s40
    %p51 = scmp.eq.s32.totalorder %s17, 0
    %p52 = por %p50, %p51
    %p53 = scmp.ne.s32.totalorder %s39, %s40
    %p54 = scmp.eq.s32.totalorder %s18, 1
    %p55 = por %p53, %p54
    %p57 = scmp.ne.s32.totalorder %s40, %s56
    %p58 = scmp.eq.s32.totalorder %s18, 0
    %p59 = por %p57, %p58
    %s60 = sadd.s32 %s20, 1
    %s61 = smul.u32 %s60, 8
    %s62 = sadd.s32 %s27, 1
    %s63 = smul.u32 %s62, 8
    %s64 = ssub.s32 %s19, %s31
    %s65 = ssub.s32 %s61, %s63
    %s66 = sor.u32 %s64, %s65
    %p67 = scmp.eq.s32.totalorder %s66, 0
    %s69 = sadd.s32 %s68, 1
    %s70 = scalar_select %p67, %s68, %s69
    %p73 = pneg %p67
    %p74 = scmp.eq.s32.totalorder %s12, 1
    %p75 = por %p73, %p74
    %p76 = scmp.ne.s32.totalorder %s68, %s71
    %p77 = scmp.eq.s32.totalorder %s12, 0
    %p78 = por %p76, %p77
    %p79 = scmp.ne.s32.totalorder %s68, %s71
    %p80 = scmp.eq.s32.totalorder %s17, 1
    %p81 = por %p79, %p80
    %p82 = scmp.ne.s32.totalorder %s71, %s72
    %p83 = scmp.eq.s32.totalorder %s17, 0
    %p84 = por %p82, %p83
    %p85 = scmp.ne.s32.totalorder %s71, %s72
    %p86 = scmp.eq.s32.totalorder %s18, 1
    %p87 = por %p85, %p86
    %p89 = scmp.ne.s32.totalorder %s72, %s88
    %p90 = scmp.eq.s32.totalorder %s18, 0
    %p91 = por %p89, %p90
    %s93 = sadd.s32 %s92, 1
    %p96 = scmp.eq.s32.totalorder %s12, 1
    %p97 = scmp.ne.s32.totalorder %s92, %s94
    %p98 = scmp.eq.s32.totalorder %s12, 0
    %p99 = por %p97, %p98
    %p100 = scmp.ne.s32.totalorder %s92, %s94
    %p101 = scmp.eq.s32.totalorder %s17, 1
    %p102 = por %p100, %p101
    %p103 = scmp.ne.s32.totalorder %s94, %s95
    %p104 = scmp.eq.s32.totalorder %s17, 0
    %p105 = por %p103, %p104
    %p106 = scmp.ne.s32.totalorder %s94, %s95
    %p107 = scmp.eq.s32.totalorder %s18, 1
    %p108 = por %p106, %p107
    %p110 = scmp.ne.s32.totalorder %s95, %s109
    %p111 = scmp.eq.s32.totalorder %s18, 0
    %p112 = por %p110, %p111
    %s114 = sadd.s32 %s113, 1
    %p117 = scmp.eq.s32.totalorder %s12, 1
    %p118 = scmp.ne.s32.totalorder %s113, %s115
    %p119 = scmp.eq.s32.totalorder %s12, 0
    %p120 = por %p118, %p119
    %p121 = scmp.ne.s32.totalorder %s113, %s115
    %p122 = scmp.eq.s32.totalorder %s17, 1
    %p123 = por %p121, %p122
    %p124 = scmp.ne.s32.totalorder %s115, %s116
    %p125 = scmp.eq.s32.totalorder %s17, 0
    %p126 = por %p124, %p125
    %p127 = scmp.ne.s32.totalorder %s115, %s116
    %p128 = scmp.eq.s32.totalorder %s18, 1
    %p129 = por %p127, %p128
    %p131 = scmp.ne.s32.totalorder %s116, %s130
    %p132 = scmp.eq.s32.totalorder %s18, 0
    %p133 = por %p131, %p132
    %s135 = sadd.s32 %s134, 1
    %p138 = scmp.eq.s32.totalorder %s12, 1
    %p139 = scmp.ne.s32.totalorder %s134, %s136
    %p140 = scmp.eq.s32.totalorder %s12, 0
    %p141 = por %p139, %p140
    %p142 = scmp.ne.s32.totalorder %s134, %s136
    %p143 = scmp.eq.s32.totalorder %s17, 1
    %p144 = por %p142, %p143
    %p145 = scmp.ne.s32.totalorder %s136, %s137
    %p146 = scmp.eq.s32.totalorder %s17, 0
    %p147 = por %p145, %p146
    %p148 = scmp.ne.s32.totalorder %s136, %s137
    %p149 = scmp.eq.s32.totalorder %s18, 1
    %p150 = por %p148, %p149
    %p152 = scmp.ne.s32.totalorder %s137, %s151
    %p153 = scmp.eq.s32.totalorder %s18, 0
    %p154 = por %p152, %p153
    %s156 = sadd.s32 %s155, 1
    %p159 = scmp.eq.s32.totalorder %s12, 1
    %p160 = scmp.ne.s32.totalorder %s155, %s157
    %p161 = scmp.eq.s32.totalorder %s12, 0
    %p162 = por %p160, %p161
    %p163 = scmp.ne.s32.totalorder %s155, %s157
    %p164 = scmp.eq.s32.totalorder %s17, 1
    %p165 = por %p163, %p164
    %p166 = scmp.ne.s32.totalorder %s157, %s158
    %p167 = scmp.eq.s32.totalorder %s17, 0
    %p168 = por %p166, %p167
    %p169 = scmp.ne.s32.totalorder %s157, %s158
    %p170 = scmp.eq.s32.totalorder %s18, 1
    %p171 = por %p169, %p170
    %p173 = scmp.ne.s32.totalorder %s158, %s172
    %p174 = scmp.eq.s32.totalorder %s18, 0
    %p175 = por %p173, %p174
    %s176 = ssub.s32 %s19, %s31
    %s177 = ssub.s32 %s20, %s27
    %s178 = sor.u32 %s176, %s177
    %p179 = scmp.eq.s32.totalorder %s178, 0
    %s181 = sadd.s32 %s180, 1
    %s182 = scalar_select %p179, %s180, %s181
    %p185 = pneg %p179
    %p186 = scmp.eq.s32.totalorder %s12, 1
    %p187 = por %p185, %p186
    %p188 = scmp.ne.s32.totalorder %s180, %s183
    %p189 = scmp.eq.s32.totalorder %s12, 0
    %p190 = por %p188, %p189
    %p191 = scmp.ne.s32.totalorder %s180, %s183
    %p192 = scmp.eq.s32.totalorder %s17, 1
    %p193 = por %p191, %p192
    %p194 = scmp.ne.s32.totalorder %s183, %s184
    %p195 = scmp.eq.s32.totalorder %s17, 0
    %p196 = por %p194, %p195
    %p197 = scmp.ne.s32.totalorder %s183, %s184
    %p198 = scmp.eq.s32.totalorder %s18, 1
    %p199 = por %p197, %p198
    %p201 = scmp.ne.s32.totalorder %s184, %s200
    %p202 = scmp.eq.s32.totalorder %s18, 0
    %p203 = por %p201, %p202
    %p204 = scmp.le.s32.totalorder 1, %s12
    %p205 = scmp.lt.s32.totalorder %s12, 3
    %p206 = pnand %p204, %p205
    %p207 = pneg %p206
    // Predicated region
    $region9: #{dep_sep_conv.1} parent=5 // pred_check
      _
    $region10: #{dep_sep_conv.1} parent=5 // pred_check_branch
      %209 = sbr.rel (%p206) target = $region12
    $region11: #{dep_sep_conv.1} parent=5 // pred_region
      %s210 = ssub.s32 %s12, 1
      // Predicated region
      $region13: #{dep_sep_conv.1} parent=11 // pred_check
        %p211 = pneg %p105
      $region14: #{dep_sep_conv.1} parent=11 // pred_check_branch
        %213 = sbr.rel (%p211) target = $region16
      $region15: #{dep_sep_conv.1} parent=11 // pred_region
        _
      $region16: #{dep_sep_conv.1} parent=11 // pred_fallthru
        _
      // Predicated region
      $region17: #{dep_sep_conv.1} parent=11 // pred_check
        %p214 = pneg %p126
      $region18: #{dep_sep_conv.1} parent=11 // pred_check_branch
        %216 = sbr.rel (%p214) target = $region20
      $region19: #{dep_sep_conv.1} parent=11 // pred_region
        _
      $region20: #{dep_sep_conv.1} parent=11 // pred_fallthru
        _
      // Predicated region
      $region21: #{dep_sep_conv.1} parent=11 // pred_check
        %p217 = pneg %p147
      $region22: #{dep_sep_conv.1} parent=11 // pred_check_branch
        %219 = sbr.rel (%p217) target = $region24
      $region23: #{dep_sep_conv.1} parent=11 // pred_region
        _
      $region24: #{dep_sep_conv.1} parent=11 // pred_fallthru
        _
      // Predicated region
      $region25: #{dep_sep_conv.1} parent=11 // pred_check
        %p220 = pneg %p168
      $region26: #{dep_sep_conv.1} parent=11 // pred_check_branch
        %222 = sbr.rel (%p220) target = $region28
      $region27: #{dep_sep_conv.1} parent=11 // pred_region
        _
      $region28: #{dep_sep_conv.1} parent=11 // pred_fallthru
        _
    $region12: #{dep_sep_conv.1} parent=5 // pred_fallthru
      _
    %p223 = scmp.lt.s32.totalorder %s12, 2
    // Predicated region
    $region29: #{dep_sep_conv.1} parent=5 // pred_check
      %p224 = pneg %p223
    $region30: #{dep_sep_conv.1} parent=5 // pred_check_branch
      %226 = sbr.rel (%p224) target = $region32
    $region31: #{dep_sep_conv.1} parent=5 // pred_region
      // Predicated region
      $region33: #{dep_sep_conv.1} parent=31 // pred_check
        %p227 = pneg %p46
      $region34: #{dep_sep_conv.1} parent=31 // pred_check_branch
        %229 = sbr.rel (%p227) target = $region36
      $region35: #{dep_sep_conv.1} parent=31 // pred_region
        %s230 = smul.u32 16, %s20
        %s231 = ssub.s32 18, %s230
        %p232 = scmp.lt.s32.totalorder %s231, 16
        %s233 = scalar_select %p232, %s231, 16
        %s234 = smul.u32 4, %s233
        %s235 = smul.u32 %s234, 3
        %p236 = scmp.lt.s32.totalorder %s19, 1
        %s237 = scalar_select %p236, %s19, 1
        %p238 = scmp.lt.s32.totalorder %s230, 17
        %s239 = scalar_select %p238, %s230, 17
        %s240 = smul.addr %s239, 3
        %s241 = smul.addr %s237, 54
        %s242 = sadd.s32 %s240, %s241
        %s243 = smul.addr %s242, 4
        %s244 = scalar_lea.vmem %s0, %s243
        %s245 = smul.u32 16, %s20
        %s246 = ssub.s32 18, %s245
        %p247 = scmp.lt.s32.totalorder %s246, 16
        %s248 = scalar_select %p247, %s246, 16
        %s249 = smul.u32 4, %s248
        %s250 = smul.u32 %s249, 3
      $region36: #{dep_sep_conv.1} parent=31 // pred_fallthru
        _
      // Predicated region
      $region37: #{dep_sep_conv.1} parent=31 // pred_check
        %p251 = pneg %p78
      $region38: #{dep_sep_conv.1} parent=31 // pred_check_branch
        %253 = sbr.rel (%p251) target = $region40
      $region39: #{dep_sep_conv.1} parent=31 // pred_region
        %s254 = sadd.s32 %s20, 1
        %s255 = smul.u32 %s254, 8
        %s256 = smul.u32 2, %s255
        %p257 = scmp.lt.s32.totalorder %s19, 1
        %s258 = scalar_select %p257, %s19, 1
        %p259 = scmp.lt.s32.totalorder %s256, 17
        %s260 = scalar_select %p259, %s256, 17
        %s261 = smul.addr %s260, 3
        %s262 = smul.addr %s258, 54
        %s263 = sadd.s32 %s261, %s262
        %s264 = smul.addr %s263, 4
        %s265 = scalar_lea.vmem %s1, %s264
        %s266 = sadd.s32 %s20, 1
        %s267 = smul.u32 %s266, 8
        %s268 = smul.u32 2, %s267
      $region40: #{dep_sep_conv.1} parent=31 // pred_fallthru
        _
    $region32: #{dep_sep_conv.1} parent=5 // pred_fallthru
      _
    %p269 = scmp.le.s32.totalorder 1, %s12
    %p270 = scmp.lt.s32.totalorder %s12, 3
    %p271 = pnand %p269, %p270
    %p272 = pneg %p271
    // Predicated region
    $region41: #{dep_sep_conv.1} parent=5 // pred_check
      _
    $region42: #{dep_sep_conv.1} parent=5 // pred_check_branch
      %274 = sbr.rel (%p271) target = $region44
    $region43: #{dep_sep_conv.1} parent=5 // pred_region
      %s275 = ssub.s32 %s12, 1
      %s276 = smul.u32 16, %s22
      %s277 = ssub.s32 18, %s276
      %p278 = scmp.lt.s32.totalorder %s277, 16
      %s279 = scalar_select %p278, %s277, 16
      %s280 = smul.u32 4, %s279
      %s281 = smul.u32 %s280, 3
      %p282 = scmp.lt.s32.totalorder %s21, 1
      %s283 = scalar_select %p282, %s21, 1
      %p284 = scmp.lt.s32.totalorder %s276, 17
      %s285 = scalar_select %p284, %s276, 17
      %s286 = smul.addr %s285, 3
      %s287 = smul.addr %s283, 54
      %s288 = sadd.s32 %s286, %s287
      %s289 = smul.addr %s288, 4
      %s290 = scalar_lea.vmem %s0, %s289
      %p291 = pneg %p52
      %p292 = pneg %p49
      %s293 = sadd.s32 %s22, 1
      %s294 = smul.u32 %s293, 8
      %s295 = smul.u32 2, %s294
      %p296 = scmp.lt.s32.totalorder %s21, 1
      %s297 = scalar_select %p296, %s21, 1
      %p298 = scmp.lt.s32.totalorder %s295, 17
      %s299 = scalar_select %p298, %s295, 17
      %s300 = smul.addr %s299, 3
      %s301 = smul.addr %s297, 54
      %s302 = sadd.s32 %s300, %s301
      %s303 = smul.addr %s302, 4
      %s304 = scalar_lea.vmem %s1, %s303
      %p305 = pneg %p84
      %p306 = pneg %p81
      %p307 = pneg %p105
      %p308 = pneg %p102
      %p309 = pneg %p126
      %p310 = pneg %p123
      %p311 = pneg %p147
      %p312 = pneg %p144
      %p313 = pneg %p168
      %p314 = pneg %p165
      %p315 = pneg %p196
      %p316 = pneg %p193
      %s317 = smul.u32 32, %s22
      %p318 = scmp.lt.s32.totalorder %s21, 1
      %s319 = scalar_select %p318, %s21, 1
      %p320 = scmp.lt.s32.totalorder %s317, 31
      %s321 = scalar_select %p320, %s317, 31
      %s322 = smul.addr %s319, 32
      %s323 = sadd.s32 %s321, %s322
      %s324 = smul.addr %s323, 4
      %s325 = scalar_lea.vmem %s6, %s324
      %s326 = smul.u32 16, %s22
      %s327 = ssub.s32 18, %s326
      %p328 = scmp.lt.s32.totalorder %s327, 16
      %s329 = scalar_select %p328, %s327, 16
      %s330 = smul.u32 4, %s329
      %s331 = smul.u32 %s330, 3
      %p332 = scmp.lt.s32.totalorder %s21, 1
      %s333 = scalar_select %p332, %s21, 1
      %p334 = scmp.lt.s32.totalorder %s326, 17
      %s335 = scalar_select %p334, %s326, 17
      %s336 = smul.addr %s335, 3
      %s337 = smul.addr %s333, 54
      %s338 = sadd.s32 %s336, %s337
      %s339 = smul.addr %s338, 4
      %s340 = scalar_lea.vmem %s0, %s339
      %s341 = smul.u32 16, %s22
      %s342 = ssub.s32 18, %s341
      %p343 = scmp.lt.s32.totalorder %s342, 16
      %s344 = scalar_select %p343, %s342, 16
      %s345 = smul.u32 4, %s344
      %s346 = smul.u32 %s345, 3
      %s347 = sadd.s32 %s22, 1
      %s348 = smul.u32 %s347, 8
      %s349 = smul.u32 2, %s348
      %p350 = scmp.lt.s32.totalorder %s21, 1
      %s351 = scalar_select %p350, %s21, 1
      %p352 = scmp.lt.s32.totalorder %s349, 17
      %s353 = scalar_select %p352, %s349, 17
      %s354 = smul.addr %s353, 3
      %s355 = smul.addr %s351, 54
      %s356 = sadd.s32 %s354, %s355
      %s357 = smul.addr %s356, 4
      %s358 = scalar_lea.vmem %s1, %s357
      %s359 = sadd.s32 %s22, 1
      %s360 = smul.u32 %s359, 8
      %s361 = smul.u32 2, %s360
      %s362 = smul.u32 32, %s22
      %p363 = scmp.lt.s32.totalorder %s21, 1
      %s364 = scalar_select %p363, %s21, 1
      %p365 = scmp.lt.s32.totalorder %s362, 31
      %s366 = scalar_select %p365, %s362, 31
      %s367 = smul.addr %s364, 32
      %s368 = sadd.s32 %s366, %s367
      %s369 = smul.addr %s368, 4
      %s370 = scalar_lea.vmem %s6, %s369
      %s371 = smul.u32 32, %s22
      %v372 = vld [vmem:[%s2] sm:$0xff]
      %v373 = vld [vmem:[%s2 + $0x8] sm:$0x1]
      %v374 = vperm.slane %v372, 0
      %v375 = vperm.slane %v372, 1
      %v376 = vperm.slane %v372, 2
      %v377 = vperm.slane %v372, 3
      %v378 = vperm.slane %v372, 4
      %v379 = vperm.slane %v372, 5
      %v380 = vperm.slane %v372, 6
      %v381 = vperm.slane %v372, 7
      %v382 = vperm.slane %v373, 0
      %v383 = vld [vmem:[%s3] sm:$0x1]
      %v385 = vperm.slane %v383, 0
      %v387 = vld [vmem:[%s340] sm:$0xf]
      %v388 = vld [vmem:[%s340 + $0x4] sm:$0xf]
      %v389 = vld [vmem:[%s340 + $0x8] sm:$0xf]
      %v390 = vunpack.c.l.bf16 %v387
      %v391 = vunpack.c.l.bf16 %v388
      %v392 = vunpack.c.l.bf16 %v389
      %v393 = vmul.f32 %v390, %v374
      %v394 = vmul.f32 %v391, %v374
      %v395 = vadd.f32 %v385, %v393
      %v396 = vadd.f32 %v385, %v394
      %v397 = vmul.f32 %v390, %v375
      %v398 = vmul.f32 %v391, %v375
      %v399 = vmul.f32 %v392, %v375
      %vm403 = vcmask 1046528
      %v404 = vrot.slane %v397, 1
      %v405 = vrot.slane %v398, 1
      %v406 = vsel %vm403, %v404, %v405
      %v407 = vrot.slane %v399, 1
      %v408 = vsel %vm403, %v405, %v407
      %v411 = vadd.f32 %v395, %v406
      %v412 = vadd.f32 %v396, %v408
      %v413 = vmul.f32 %v390, %v376
      %v414 = vmul.f32 %v391, %v376
      %v415 = vmul.f32 %v392, %v376
      %vm419 = vcmask 1045504
      %v420 = vrot.slane %v413, 2
      %v421 = vrot.slane %v414, 2
      %v422 = vsel %vm419, %v420, %v421
      %v423 = vrot.slane %v415, 2
      %v424 = vsel %vm419, %v421, %v423
      %v427 = vadd.f32 %v411, %v422
      %v428 = vadd.f32 %v412, %v424
      %s429 = scalar_lea.vmem %s340, 12
      %v430 = vld [vmem:[%s429] sm:$0xf]
      %v431 = vld [vmem:[%s429 + $0x4] sm:$0xf]
      %v432 = vld [vmem:[%s429 + $0x8] sm:$0xf]
      %v433 = vunpack.c.l.bf16 %v430
      %v434 = vunpack.c.l.bf16 %v431
      %v435 = vunpack.c.l.bf16 %v432
      %v436 = vmul.f32 %v433, %v377
      %v437 = vmul.f32 %v434, %v377
      %v438 = vadd.f32 %v427, %v436
      %v439 = vadd.f32 %v428, %v437
      %v440 = vmul.f32 %v433, %v378
      %v441 = vmul.f32 %v434, %v378
      %v442 = vmul.f32 %v435, %v378
      %v446 = vrot.slane %v440, 1
      %v447 = vrot.slane %v441, 1
      %v448 = vsel %vm403, %v446, %v447
      %v449 = vrot.slane %v442, 1
      %v450 = vsel %vm403, %v447, %v449
      %v453 = vadd.f32 %v438, %v448
      %v454 = vadd.f32 %v439, %v450
      %v455 = vmul.f32 %v433, %v379
      %v456 = vmul.f32 %v434, %v379
      %v457 = vmul.f32 %v435, %v379
      %v461 = vrot.slane %v455, 2
      %v462 = vrot.slane %v456, 2
      %v463 = vsel %vm419, %v461, %v462
      %v464 = vrot.slane %v457, 2
      %v465 = vsel %vm419, %v462, %v464
      %v468 = vadd.f32 %v453, %v463
      %v469 = vadd.f32 %v454, %v465
      %s470 = scalar_lea.vmem %s340, 24
      %v471 = vld [vmem:[%s470] sm:$0xf]
      %v472 = vld [vmem:[%s470 + $0x4] sm:$0xf]
      %v473 = vld [vmem:[%s470 + $0x8] sm:$0xf]
      %v474 = vunpack.c.l.bf16 %v471
      %v475 = vunpack.c.l.bf16 %v472
      %v476 = vunpack.c.l.bf16 %v473
      %v477 = vmul.f32 %v474, %v380
      %v478 = vmul.f32 %v475, %v380
      %v479 = vadd.f32 %v468, %v477
      %v480 = vadd.f32 %v469, %v478
      %v481 = vmul.f32 %v474, %v381
      %v482 = vmul.f32 %v475, %v381
      %v483 = vmul.f32 %v476, %v381
      %v487 = vrot.slane %v481, 1
      %v488 = vrot.slane %v482, 1
      %v489 = vsel %vm403, %v487, %v488
      %v490 = vrot.slane %v483, 1
      %v491 = vsel %vm403, %v488, %v490
      %v494 = vadd.f32 %v479, %v489
      %v495 = vadd.f32 %v480, %v491
      %v496 = vmul.f32 %v474, %v382
      %v497 = vmul.f32 %v475, %v382
      %v498 = vmul.f32 %v476, %v382
      %v502 = vrot.slane %v496, 2
      %v503 = vrot.slane %v497, 2
      %v504 = vsel %vm419, %v502, %v503
      %v505 = vrot.slane %v498, 2
      %v506 = vsel %vm419, %v503, %v505
      %v509 = vadd.f32 %v494, %v504
      %v510 = vadd.f32 %v495, %v506
      %v511 = vmax.f32 %v509, 0.0
      %v512 = vmax.f32 %v510, 0.0
      %v513 = vmin.f32 %v511, 6.0
      %v514 = vmin.f32 %v512, 6.0
      %v515 = vpack.c.bf16 %v513, %v513
      %v516 = vpack.c.bf16 %v514, %v514
      %517 = vst [vmem:[#allocation2] sm:$0xf] %v515
      %518 = vst [vmem:[#allocation2 + $0x4] sm:$0xf] %v516
      %v519 = vld [vmem:[%s429] sm:$0xf]
      %v520 = vld [vmem:[%s429 + $0x4] sm:$0xf]
      %v521 = vld [vmem:[%s429 + $0x8] sm:$0xf]
      %v522 = vunpack.c.l.bf16 %v519
      %v523 = vunpack.c.l.bf16 %v520
      %v524 = vunpack.c.l.bf16 %v521
      %v525 = vmul.f32 %v522, %v374
      %v526 = vmul.f32 %v523, %v374
      %v527 = vadd.f32 %v385, %v525
      %v528 = vadd.f32 %v385, %v526
      %v529 = vmul.f32 %v522, %v375
      %v530 = vmul.f32 %v523, %v375
      %v531 = vmul.f32 %v524, %v375
      %v535 = vrot.slane %v529, 1
      %v536 = vrot.slane %v530, 1
      %v537 = vsel %vm403, %v535, %v536
      %v538 = vrot.slane %v531, 1
      %v539 = vsel %vm403, %v536, %v538
      %v542 = vadd.f32 %v527, %v537
      %v543 = vadd.f32 %v528, %v539
      %v544 = vmul.f32 %v522, %v376
      %v545 = vmul.f32 %v523, %v376
      %v546 = vmul.f32 %v524, %v376
      %v550 = vrot.slane %v544, 2
      %v551 = vrot.slane %v545, 2
      %v552 = vsel %vm419, %v550, %v551
      %v553 = vrot.slane %v546, 2
      %v554 = vsel %vm419, %v551, %v553
      %v557 = vadd.f32 %v542, %v552
      %v558 = vadd.f32 %v543, %v554
      %v559 = vld [vmem:[%s470] sm:$0xf]
      %v560 = vld [vmem:[%s470 + $0x4] sm:$0xf]
      %v561 = vld [vmem:[%s470 + $0x8] sm:$0xf]
      %v562 = vunpack.c.l.bf16 %v559
      %v563 = vunpack.c.l.bf16 %v560
      %v564 = vunpack.c.l.bf16 %v561
      %v565 = vmul.f32 %v562, %v377
      %v566 = vmul.f32 %v563, %v377
      %v567 = vadd.f32 %v557, %v565
      %v568 = vadd.f32 %v558, %v566
      %v569 = vmul.f32 %v562, %v378
      %v570 = vmul.f32 %v563, %v378
      %v571 = vmul.f32 %v564, %v378
      %v575 = vrot.slane %v569, 1
      %v576 = vrot.slane %v570, 1
      %v577 = vsel %vm403, %v575, %v576
      %v578 = vrot.slane %v571, 1
      %v579 = vsel %vm403, %v576, %v578
      %v582 = vadd.f32 %v567, %v577
      %v583 = vadd.f32 %v568, %v579
      %v584 = vmul.f32 %v562, %v379
      %v585 = vmul.f32 %v563, %v379
      %v586 = vmul.f32 %v564, %v379
      %v590 = vrot.slane %v584, 2
      %v591 = vrot.slane %v585, 2
      %v592 = vsel %vm419, %v590, %v591
      %v593 = vrot.slane %v586, 2
      %v594 = vsel %vm419, %v591, %v593
      %v597 = vadd.f32 %v582, %v592
      %v598 = vadd.f32 %v583, %v594
      %s599 = scalar_lea.vmem %s340, 36
      %v600 = vld [vmem:[%s599] sm:$0xf]
      %v601 = vld [vmem:[%s599 + $0x4] sm:$0xf]
      %v602 = vld [vmem:[%s599 + $0x8] sm:$0xf]
      %v603 = vunpack.c.l.bf16 %v600
      %v604 = vunpack.c.l.bf16 %v601
      %v605 = vunpack.c.l.bf16 %v602
      %v606 = vmul.f32 %v603, %v380
      %v607 = vmul.f32 %v604, %v380
      %v608 = vadd.f32 %v597, %v606
      %v609 = vadd.f32 %v598, %v607
      %v610 = vmul.f32 %v603, %v381
      %v611 = vmul.f32 %v604, %v381
      %v612 = vmul.f32 %v605, %v381
      %v616 = vrot.slane %v610, 1
      %v617 = vrot.slane %v611, 1
      %v618 = vsel %vm403, %v616, %v617
      %v619 = vrot.slane %v612, 1
      %v620 = vsel %vm403, %v617, %v619
      %v623 = vadd.f32 %v608, %v618
      %v624 = vadd.f32 %v609, %v620
      %v625 = vmul.f32 %v603, %v382
      %v626 = vmul.f32 %v604, %v382
      %v627 = vmul.f32 %v605, %v382
      %v631 = vrot.slane %v625, 2
      %v632 = vrot.slane %v626, 2
      %v633 = vsel %vm419, %v631, %v632
      %v634 = vrot.slane %v627, 2
      %v635 = vsel %vm419, %v632, %v634
      %v638 = vadd.f32 %v623, %v633
      %v639 = vadd.f32 %v624, %v635
      %v640 = vmax.f32 %v638, 0.0
      %v641 = vmax.f32 %v639, 0.0
      %v642 = vmin.f32 %v640, 6.0
      %v643 = vmin.f32 %v641, 6.0
      %v644 = vpack.c.bf16 %v642, %v642
      %v645 = vpack.c.bf16 %v643, %v643
      %646 = vst [vmem:[#allocation2 + $0x8] sm:$0xf] %v644
      %647 = vst [vmem:[#allocation2 + $0xc] sm:$0xf] %v645
      %v648 = vld [vmem:[%s470] sm:$0xf]
      %v649 = vld [vmem:[%s470 + $0x4] sm:$0xf]
      %v650 = vld [vmem:[%s470 + $0x8] sm:$0xf]
      %v651 = vunpack.c.l.bf16 %v648
      %v652 = vunpack.c.l.bf16 %v649
      %v653 = vunpack.c.l.bf16 %v650
      %v654 = vmul.f32 %v651, %v374
      %v655 = vmul.f32 %v652, %v374
      %v656 = vadd.f32 %v385, %v654
      %v657 = vadd.f32 %v385, %v655
      %v658 = vmul.f32 %v651, %v375
      %v659 = vmul.f32 %v652, %v375
      %v660 = vmul.f32 %v653, %v375
      %v664 = vrot.slane %v658, 1
      %v665 = vrot.slane %v659, 1
      %v666 = vsel %vm403, %v664, %v665
      %v667 = vrot.slane %v660, 1
      %v668 = vsel %vm403, %v665, %v667
      %v671 = vadd.f32 %v656, %v666
      %v672 = vadd.f32 %v657, %v668
      %v673 = vmul.f32 %v651, %v376
      %v674 = vmul.f32 %v652, %v376
      %v675 = vmul.f32 %v653, %v376
      %v679 = vrot.slane %v673, 2
      %v680 = vrot.slane %v674, 2
      %v681 = vsel %vm419, %v679, %v680
      %v682 = vrot.slane %v675, 2
      %v683 = vsel %vm419, %v680, %v682
      %v686 = vadd.f32 %v671, %v681
      %v687 = vadd.f32 %v672, %v683
      %v688 = vld [vmem:[%s599] sm:$0xf]
      %v689 = vld [vmem:[%s599 + $0x4] sm:$0xf]
      %v690 = vld [vmem:[%s599 + $0x8] sm:$0xf]
      %v691 = vunpack.c.l.bf16 %v688
      %v692 = vunpack.c.l.bf16 %v689
      %v693 = vunpack.c.l.bf16 %v690
      %v694 = vmul.f32 %v691, %v377
      %v695 = vmul.f32 %v692, %v377
      %v696 = vadd.f32 %v686, %v694
      %v697 = vadd.f32 %v687, %v695
      %v698 = vmul.f32 %v691, %v378
      %v699 = vmul.f32 %v692, %v378
      %v700 = vmul.f32 %v693, %v378
      %v704 = vrot.slane %v698, 1
      %v705 = vrot.slane %v699, 1
      %v706 = vsel %vm403, %v704, %v705
      %v707 = vrot.slane %v700, 1
      %v708 = vsel %vm403, %v705, %v707
      %v711 = vadd.f32 %v696, %v706
      %v712 = vadd.f32 %v697, %v708
      %v713 = vmul.f32 %v691, %v379
      %v714 = vmul.f32 %v692, %v379
      %v715 = vmul.f32 %v693, %v379
      %v719 = vrot.slane %v713, 2
      %v720 = vrot.slane %v714, 2
      %v721 = vsel %vm419, %v719, %v720
      %v722 = vrot.slane %v715, 2
      %v723 = vsel %vm419, %v720, %v722
      %v726 = vadd.f32 %v711, %v721
      %v727 = vadd.f32 %v712, %v723
      %s728 = scalar_lea.vmem %s340, 48
      %v729 = vld [vmem:[%s728] sm:$0xf]
      %v730 = vld [vmem:[%s728 + $0x4] sm:$0xf]
      %v731 = vld [vmem:[%s728 + $0x8] sm:$0xf]
      %v732 = vunpack.c.l.bf16 %v729
      %v733 = vunpack.c.l.bf16 %v730
      %v734 = vunpack.c.l.bf16 %v731
      %v735 = vmul.f32 %v732, %v380
      %v736 = vmul.f32 %v733, %v380
      %v737 = vadd.f32 %v726, %v735
      %v738 = vadd.f32 %v727, %v736
      %v739 = vmul.f32 %v732, %v381
      %v740 = vmul.f32 %v733, %v381
      %v741 = vmul.f32 %v734, %v381
      %v745 = vrot.slane %v739, 1
      %v746 = vrot.slane %v740, 1
      %v747 = vsel %vm403, %v745, %v746
      %v748 = vrot.slane %v741, 1
      %v749 = vsel %vm403, %v746, %v748
      %v752 = vadd.f32 %v737, %v747
      %v753 = vadd.f32 %v738, %v749
      %v754 = vmul.f32 %v732, %v382
      %v755 = vmul.f32 %v733, %v382
      %v756 = vmul.f32 %v734, %v382
      %v760 = vrot.slane %v754, 2
      %v761 = vrot.slane %v755, 2
      %v762 = vsel %vm419, %v760, %v761
      %v763 = vrot.slane %v756, 2
      %v764 = vsel %vm419, %v761, %v763
      %v767 = vadd.f32 %v752, %v762
      %v768 = vadd.f32 %v753, %v764
      %v769 = vmax.f32 %v767, 0.0
      %v770 = vmax.f32 %v768, 0.0
      %v771 = vmin.f32 %v769, 6.0
      %v772 = vmin.f32 %v770, 6.0
      %v773 = vpack.c.bf16 %v771, %v771
      %v774 = vpack.c.bf16 %v772, %v772
      %775 = vst [vmem:[#allocation2 + $0x10] sm:$0xf] %v773
      %776 = vst [vmem:[#allocation2 + $0x14] sm:$0xf] %v774
      %v777 = vld [vmem:[%s599] sm:$0xf]
      %v778 = vld [vmem:[%s599 + $0x4] sm:$0xf]
      %v779 = vld [vmem:[%s599 + $0x8] sm:$0xf]
      %v780 = vunpack.c.l.bf16 %v777
      %v781 = vunpack.c.l.bf16 %v778
      %v782 = vunpack.c.l.bf16 %v779
      %v783 = vmul.f32 %v780, %v374
      %v784 = vmul.f32 %v781, %v374
      %v785 = vadd.f32 %v385, %v783
      %v786 = vadd.f32 %v385, %v784
      %v787 = vmul.f32 %v780, %v375
      %v788 = vmul.f32 %v781, %v375
      %v789 = vmul.f32 %v782, %v375
      %v793 = vrot.slane %v787, 1
      %v794 = vrot.slane %v788, 1
      %v795 = vsel %vm403, %v793, %v794
      %v796 = vrot.slane %v789, 1
      %v797 = vsel %vm403, %v794, %v796
      %v800 = vadd.f32 %v785, %v795
      %v801 = vadd.f32 %v786, %v797
      %v802 = vmul.f32 %v780, %v376
      %v803 = vmul.f32 %v781, %v376
      %v804 = vmul.f32 %v782, %v376
      %v808 = vrot.slane %v802, 2
      %v809 = vrot.slane %v803, 2
      %v810 = vsel %vm419, %v808, %v809
      %v811 = vrot.slane %v804, 2
      %v812 = vsel %vm419, %v809, %v811
      %v815 = vadd.f32 %v800, %v810
      %v816 = vadd.f32 %v801, %v812
      %v817 = vld [vmem:[%s728] sm:$0xf]
      %v818 = vld [vmem:[%s728 + $0x4] sm:$0xf]
      %v819 = vld [vmem:[%s728 + $0x8] sm:$0xf]
      %v820 = vunpack.c.l.bf16 %v817
      %v821 = vunpack.c.l.bf16 %v818
      %v822 = vunpack.c.l.bf16 %v819
      %v823 = vmul.f32 %v820, %v377
      %v824 = vmul.f32 %v821, %v377
      %v825 = vadd.f32 %v815, %v823
      %v826 = vadd.f32 %v816, %v824
      %v827 = vmul.f32 %v820, %v378
      %v828 = vmul.f32 %v821, %v378
      %v829 = vmul.f32 %v822, %v378
      %v833 = vrot.slane %v827, 1
      %v834 = vrot.slane %v828, 1
      %v835 = vsel %vm403, %v833, %v834
      %v836 = vrot.slane %v829, 1
      %v837 = vsel %vm403, %v834, %v836
      %v840 = vadd.f32 %v825, %v835
      %v841 = vadd.f32 %v826, %v837
      %v842 = vmul.f32 %v820, %v379
      %v843 = vmul.f32 %v821, %v379
      %v844 = vmul.f32 %v822, %v379
      %v848 = vrot.slane %v842, 2
      %v849 = vrot.slane %v843, 2
      %v850 = vsel %vm419, %v848, %v849
      %v851 = vrot.slane %v844, 2
      %v852 = vsel %vm419, %v849, %v851
      %v855 = vadd.f32 %v840, %v850
      %v856 = vadd.f32 %v841, %v852
      %s857 = scalar_lea.vmem %s340, 60
      %v858 = vld [vmem:[%s857] sm:$0xf]
      %v859 = vld [vmem:[%s857 + $0x4] sm:$0xf]
      %v860 = vld [vmem:[%s857 + $0x8] sm:$0xf]
      %v861 = vunpack.c.l.bf16 %v858
      %v862 = vunpack.c.l.bf16 %v859
      %v863 = vunpack.c.l.bf16 %v860
      %v864 = vmul.f32 %v861, %v380
      %v865 = vmul.f32 %v862, %v380
      %v866 = vadd.f32 %v855, %v864
      %v867 = vadd.f32 %v856, %v865
      %v868 = vmul.f32 %v861, %v381
      %v869 = vmul.f32 %v862, %v381
      %v870 = vmul.f32 %v863, %v381
      %v874 = vrot.slane %v868, 1
      %v875 = vrot.slane %v869, 1
      %v876 = vsel %vm403, %v874, %v875
      %v877 = vrot.slane %v870, 1
      %v878 = vsel %vm403, %v875, %v877
      %v881 = vadd.f32 %v866, %v876
      %v882 = vadd.f32 %v867, %v878
      %v883 = vmul.f32 %v861, %v382
      %v884 = vmul.f32 %v862, %v382
      %v885 = vmul.f32 %v863, %v382
      %v889 = vrot.slane %v883, 2
      %v890 = vrot.slane %v884, 2
      %v891 = vsel %vm419, %v889, %v890
      %v892 = vrot.slane %v885, 2
      %v893 = vsel %vm419, %v890, %v892
      %v896 = vadd.f32 %v881, %v891
      %v897 = vadd.f32 %v882, %v893
      %v898 = vmax.f32 %v896, 0.0
      %v899 = vmax.f32 %v897, 0.0
      %v900 = vmin.f32 %v898, 6.0
      %v901 = vmin.f32 %v899, 6.0
      %v902 = vpack.c.bf16 %v900, %v900
      %v903 = vpack.c.bf16 %v901, %v901
      %904 = vst [vmem:[#allocation2 + $0x18] sm:$0xf] %v902
      %905 = vst [vmem:[#allocation2 + $0x1c] sm:$0xf] %v903
      %v906 = vld [vmem:[%s728] sm:$0xf]
      %v907 = vld [vmem:[%s728 + $0x4] sm:$0xf]
      %v908 = vld [vmem:[%s728 + $0x8] sm:$0xf]
      %v909 = vunpack.c.l.bf16 %v906
      %v910 = vunpack.c.l.bf16 %v907
      %v911 = vunpack.c.l.bf16 %v908
      %v912 = vmul.f32 %v909, %v374
      %v913 = vmul.f32 %v910, %v374
      %v914 = vadd.f32 %v385, %v912
      %v915 = vadd.f32 %v385, %v913
      %v916 = vmul.f32 %v909, %v375
      %v917 = vmul.f32 %v910, %v375
      %v918 = vmul.f32 %v911, %v375
      %v922 = vrot.slane %v916, 1
      %v923 = vrot.slane %v917, 1
      %v924 = vsel %vm403, %v922, %v923
      %v925 = vrot.slane %v918, 1
      %v926 = vsel %vm403, %v923, %v925
      %v929 = vadd.f32 %v914, %v924
      %v930 = vadd.f32 %v915, %v926
      %v931 = vmul.f32 %v909, %v376
      %v932 = vmul.f32 %v910, %v376
      %v933 = vmul.f32 %v911, %v376
      %v937 = vrot.slane %v931, 2
      %v938 = vrot.slane %v932, 2
      %v939 = vsel %vm419, %v937, %v938
      %v940 = vrot.slane %v933, 2
      %v941 = vsel %vm419, %v938, %v940
      %v944 = vadd.f32 %v929, %v939
      %v945 = vadd.f32 %v930, %v941
      %v946 = vld [vmem:[%s857] sm:$0xf]
      %v947 = vld [vmem:[%s857 + $0x4] sm:$0xf]
      %v948 = vld [vmem:[%s857 + $0x8] sm:$0xf]
      %v949 = vunpack.c.l.bf16 %v946
      %v950 = vunpack.c.l.bf16 %v947
      %v951 = vunpack.c.l.bf16 %v948
      %v952 = vmul.f32 %v949, %v377
      %v953 = vmul.f32 %v950, %v377
      %v954 = vadd.f32 %v944, %v952
      %v955 = vadd.f32 %v945, %v953
      %v956 = vmul.f32 %v949, %v378
      %v957 = vmul.f32 %v950, %v378
      %v958 = vmul.f32 %v951, %v378
      %v962 = vrot.slane %v956, 1
      %v963 = vrot.slane %v957, 1
      %v964 = vsel %vm403, %v962, %v963
      %v965 = vrot.slane %v958, 1
      %v966 = vsel %vm403, %v963, %v965
      %v969 = vadd.f32 %v954, %v964
      %v970 = vadd.f32 %v955, %v966
      %v971 = vmul.f32 %v949, %v379
      %v972 = vmul.f32 %v950, %v379
      %v973 = vmul.f32 %v951, %v379
      %v977 = vrot.slane %v971, 2
      %v978 = vrot.slane %v972, 2
      %v979 = vsel %vm419, %v977, %v978
      %v980 = vrot.slane %v973, 2
      %v981 = vsel %vm419, %v978, %v980
      %v984 = vadd.f32 %v969, %v979
      %v985 = vadd.f32 %v970, %v981
      %s986 = scalar_lea.vmem %s340, 72
      %v987 = vld [vmem:[%s986] sm:$0xf]
      %v988 = vld [vmem:[%s986 + $0x4] sm:$0xf]
      %v989 = vld [vmem:[%s986 + $0x8] sm:$0xf]
      %v990 = vunpack.c.l.bf16 %v987
      %v991 = vunpack.c.l.bf16 %v988
      %v992 = vunpack.c.l.bf16 %v989
      %v993 = vmul.f32 %v990, %v380
      %v994 = vmul.f32 %v991, %v380
      %v995 = vadd.f32 %v984, %v993
      %v996 = vadd.f32 %v985, %v994
      %v997 = vmul.f32 %v990, %v381
      %v998 = vmul.f32 %v991, %v381
      %v999 = vmul.f32 %v992, %v381
      %v1003 = vrot.slane %v997, 1
      %v1004 = vrot.slane %v998, 1
      %v1005 = vsel %vm403, %v1003, %v1004
      %v1006 = vrot.slane %v999, 1
      %v1007 = vsel %vm403, %v1004, %v1006
      %v1010 = vadd.f32 %v995, %v1005
      %v1011 = vadd.f32 %v996, %v1007
      %v1012 = vmul.f32 %v990, %v382
      %v1013 = vmul.f32 %v991, %v382
      %v1014 = vmul.f32 %v992, %v382
      %v1018 = vrot.slane %v1012, 2
      %v1019 = vrot.slane %v1013, 2
      %v1020 = vsel %vm419, %v1018, %v1019
      %v1021 = vrot.slane %v1014, 2
      %v1022 = vsel %vm419, %v1019, %v1021
      %v1025 = vadd.f32 %v1010, %v1020
      %v1026 = vadd.f32 %v1011, %v1022
      %v1027 = vmax.f32 %v1025, 0.0
      %v1028 = vmax.f32 %v1026, 0.0
      %v1029 = vmin.f32 %v1027, 6.0
      %v1030 = vmin.f32 %v1028, 6.0
      %v1031 = vpack.c.bf16 %v1029, %v1029
      %v1032 = vpack.c.bf16 %v1030, %v1030
      %1033 = vst [vmem:[#allocation2 + $0x20] sm:$0xf] %v1031
      %1034 = vst [vmem:[#allocation2 + $0x24] sm:$0xf] %v1032
      %v1035 = vld [vmem:[%s857] sm:$0xf]
      %v1036 = vld [vmem:[%s857 + $0x4] sm:$0xf]
      %v1037 = vld [vmem:[%s857 + $0x8] sm:$0xf]
      %v1038 = vunpack.c.l.bf16 %v1035
      %v1039 = vunpack.c.l.bf16 %v1036
      %v1040 = vunpack.c.l.bf16 %v1037
      %v1041 = vmul.f32 %v1038, %v374
      %v1042 = vmul.f32 %v1039, %v374
      %v1043 = vadd.f32 %v385, %v1041
      %v1044 = vadd.f32 %v385, %v1042
      %v1045 = vmul.f32 %v1038, %v375
      %v1046 = vmul.f32 %v1039, %v375
      %v1047 = vmul.f32 %v1040, %v375
      %v1051 = vrot.slane %v1045, 1
      %v1052 = vrot.slane %v1046, 1
      %v1053 = vsel %vm403, %v1051, %v1052
      %v1054 = vrot.slane %v1047, 1
      %v1055 = vsel %vm403, %v1052, %v1054
      %v1058 = vadd.f32 %v1043, %v1053
      %v1059 = vadd.f32 %v1044, %v1055
      %v1060 = vmul.f32 %v1038, %v376
      %v1061 = vmul.f32 %v1039, %v376
      %v1062 = vmul.f32 %v1040, %v376
      %v1066 = vrot.slane %v1060, 2
      %v1067 = vrot.slane %v1061, 2
      %v1068 = vsel %vm419, %v1066, %v1067
      %v1069 = vrot.slane %v1062, 2
      %v1070 = vsel %vm419, %v1067, %v1069
      %v1073 = vadd.f32 %v1058, %v1068
      %v1074 = vadd.f32 %v1059, %v1070
      %v1075 = vld [vmem:[%s986] sm:$0xf]
      %v1076 = vld [vmem:[%s986 + $0x4] sm:$0xf]
      %v1077 = vld [vmem:[%s986 + $0x8] sm:$0xf]
      %v1078 = vunpack.c.l.bf16 %v1075
      %v1079 = vunpack.c.l.bf16 %v1076
      %v1080 = vunpack.c.l.bf16 %v1077
      %v1081 = vmul.f32 %v1078, %v377
      %v1082 = vmul.f32 %v1079, %v377
      %v1083 = vadd.f32 %v1073, %v1081
      %v1084 = vadd.f32 %v1074, %v1082
      %v1085 = vmul.f32 %v1078, %v378
      %v1086 = vmul.f32 %v1079, %v378
      %v1087 = vmul.f32 %v1080, %v378
      %v1091 = vrot.slane %v1085, 1
      %v1092 = vrot.slane %v1086, 1
      %v1093 = vsel %vm403, %v1091, %v1092
      %v1094 = vrot.slane %v1087, 1
      %v1095 = vsel %vm403, %v1092, %v1094
      %v1098 = vadd.f32 %v1083, %v1093
      %v1099 = vadd.f32 %v1084, %v1095
      %v1100 = vmul.f32 %v1078, %v379
      %v1101 = vmul.f32 %v1079, %v379
      %v1102 = vmul.f32 %v1080, %v379
      %v1106 = vrot.slane %v1100, 2
      %v1107 = vrot.slane %v1101, 2
      %v1108 = vsel %vm419, %v1106, %v1107
      %v1109 = vrot.slane %v1102, 2
      %v1110 = vsel %vm419, %v1107, %v1109
      %v1113 = vadd.f32 %v1098, %v1108
      %v1114 = vadd.f32 %v1099, %v1110
      %s1115 = scalar_lea.vmem %s340, 84
      %v1116 = vld [vmem:[%s1115] sm:$0xf]
      %v1117 = vld [vmem:[%s1115 + $0x4] sm:$0xf]
      %v1118 = vld [vmem:[%s1115 + $0x8] sm:$0xf]
      %v1119 = vunpack.c.l.bf16 %v1116
      %v1120 = vunpack.c.l.bf16 %v1117
      %v1121 = vunpack.c.l.bf16 %v1118
      %v1122 = vmul.f32 %v1119, %v380
      %v1123 = vmul.f32 %v1120, %v380
      %v1124 = vadd.f32 %v1113, %v1122
      %v1125 = vadd.f32 %v1114, %v1123
      %v1126 = vmul.f32 %v1119, %v381
      %v1127 = vmul.f32 %v1120, %v381
      %v1128 = vmul.f32 %v1121, %v381
      %v1132 = vrot.slane %v1126, 1
      %v1133 = vrot.slane %v1127, 1
      %v1134 = vsel %vm403, %v1132, %v1133
      %v1135 = vrot.slane %v1128, 1
      %v1136 = vsel %vm403, %v1133, %v1135
      %v1139 = vadd.f32 %v1124, %v1134
      %v1140 = vadd.f32 %v1125, %v1136
      %v1141 = vmul.f32 %v1119, %v382
      %v1142 = vmul.f32 %v1120, %v382
      %v1143 = vmul.f32 %v1121, %v382
      %v1147 = vrot.slane %v1141, 2
      %v1148 = vrot.slane %v1142, 2
      %v1149 = vsel %vm419, %v1147, %v1148
      %v1150 = vrot.slane %v1143, 2
      %v1151 = vsel %vm419, %v1148, %v1150
      %v1154 = vadd.f32 %v1139, %v1149
      %v1155 = vadd.f32 %v1140, %v1151
      %v1156 = vmax.f32 %v1154, 0.0
      %v1157 = vmax.f32 %v1155, 0.0
      %v1158 = vmin.f32 %v1156, 6.0
      %v1159 = vmin.f32 %v1157, 6.0
      %v1160 = vpack.c.bf16 %v1158, %v1158
      %v1161 = vpack.c.bf16 %v1159, %v1159
      %1162 = vst [vmem:[#allocation2 + $0x28] sm:$0xf] %v1160
      %1163 = vst [vmem:[#allocation2 + $0x2c] sm:$0xf] %v1161
      %v1164 = vld [vmem:[%s986] sm:$0xf]
      %v1165 = vld [vmem:[%s986 + $0x4] sm:$0xf]
      %v1166 = vld [vmem:[%s986 + $0x8] sm:$0xf]
      %v1167 = vunpack.c.l.bf16 %v1164
      %v1168 = vunpack.c.l.bf16 %v1165
      %v1169 = vunpack.c.l.bf16 %v1166
      %v1170 = vmul.f32 %v1167, %v374
      %v1171 = vmul.f32 %v1168, %v374
      %v1172 = vadd.f32 %v385, %v1170
      %v1173 = vadd.f32 %v385, %v1171
      %v1174 = vmul.f32 %v1167, %v375
      %v1175 = vmul.f32 %v1168, %v375
      %v1176 = vmul.f32 %v1169, %v375
      %v1180 = vrot.slane %v1174, 1
      %v1181 = vrot.slane %v1175, 1
      %v1182 = vsel %vm403, %v1180, %v1181
      %v1183 = vrot.slane %v1176, 1
      %v1184 = vsel %vm403, %v1181, %v1183
      %v1187 = vadd.f32 %v1172, %v1182
      %v1188 = vadd.f32 %v1173, %v1184
      %v1189 = vmul.f32 %v1167, %v376
      %v1190 = vmul.f32 %v1168, %v376
      %v1191 = vmul.f32 %v1169, %v376
      %v1195 = vrot.slane %v1189, 2
      %v1196 = vrot.slane %v1190, 2
      %v1197 = vsel %vm419, %v1195, %v1196
      %v1198 = vrot.slane %v1191, 2
      %v1199 = vsel %vm419, %v1196, %v1198
      %v1202 = vadd.f32 %v1187, %v1197
      %v1203 = vadd.f32 %v1188, %v1199
      %v1204 = vld [vmem:[%s1115] sm:$0xf]
      %v1205 = vld [vmem:[%s1115 + $0x4] sm:$0xf]
      %v1206 = vld [vmem:[%s1115 + $0x8] sm:$0xf]
      %v1207 = vunpack.c.l.bf16 %v1204
      %v1208 = vunpack.c.l.bf16 %v1205
      %v1209 = vunpack.c.l.bf16 %v1206
      %v1210 = vmul.f32 %v1207, %v377
      %v1211 = vmul.f32 %v1208, %v377
      %v1212 = vadd.f32 %v1202, %v1210
      %v1213 = vadd.f32 %v1203, %v1211
      %v1214 = vmul.f32 %v1207, %v378
      %v1215 = vmul.f32 %v1208, %v378
      %v1216 = vmul.f32 %v1209, %v378
      %v1220 = vrot.slane %v1214, 1
      %v1221 = vrot.slane %v1215, 1
      %v1222 = vsel %vm403, %v1220, %v1221
      %v1223 = vrot.slane %v1216, 1
      %v1224 = vsel %vm403, %v1221, %v1223
      %v1227 = vadd.f32 %v1212, %v1222
      %v1228 = vadd.f32 %v1213, %v1224
      %v1229 = vmul.f32 %v1207, %v379
      %v1230 = vmul.f32 %v1208, %v379
      %v1231 = vmul.f32 %v1209, %v379
      %v1235 = vrot.slane %v1229, 2
      %v1236 = vrot.slane %v1230, 2
      %v1237 = vsel %vm419, %v1235, %v1236
      %v1238 = vrot.slane %v1231, 2
      %v1239 = vsel %vm419, %v1236, %v1238
      %v1242 = vadd.f32 %v1227, %v1237
      %v1243 = vadd.f32 %v1228, %v1239
      %s1244 = scalar_lea.vmem %s340, 96
      %v1245 = vld [vmem:[%s1244] sm:$0xf]
      %v1246 = vld [vmem:[%s1244 + $0x4] sm:$0xf]
      %v1247 = vld [vmem:[%s1244 + $0x8] sm:$0xf]
      %v1248 = vunpack.c.l.bf16 %v1245
      %v1249 = vunpack.c.l.bf16 %v1246
      %v1250 = vunpack.c.l.bf16 %v1247
      %v1251 = vmul.f32 %v1248, %v380
      %v1252 = vmul.f32 %v1249, %v380
      %v1253 = vadd.f32 %v1242, %v1251
      %v1254 = vadd.f32 %v1243, %v1252
      %v1255 = vmul.f32 %v1248, %v381
      %v1256 = vmul.f32 %v1249, %v381
      %v1257 = vmul.f32 %v1250, %v381
      %v1261 = vrot.slane %v1255, 1
      %v1262 = vrot.slane %v1256, 1
      %v1263 = vsel %vm403, %v1261, %v1262
      %v1264 = vrot.slane %v1257, 1
      %v1265 = vsel %vm403, %v1262, %v1264
      %v1268 = vadd.f32 %v1253, %v1263
      %v1269 = vadd.f32 %v1254, %v1265
      %v1270 = vmul.f32 %v1248, %v382
      %v1271 = vmul.f32 %v1249, %v382
      %v1272 = vmul.f32 %v1250, %v382
      %v1276 = vrot.slane %v1270, 2
      %v1277 = vrot.slane %v1271, 2
      %v1278 = vsel %vm419, %v1276, %v1277
      %v1279 = vrot.slane %v1272, 2
      %v1280 = vsel %vm419, %v1277, %v1279
      %v1283 = vadd.f32 %v1268, %v1278
      %v1284 = vadd.f32 %v1269, %v1280
      %v1285 = vmax.f32 %v1283, 0.0
      %v1286 = vmax.f32 %v1284, 0.0
      %v1287 = vmin.f32 %v1285, 6.0
      %v1288 = vmin.f32 %v1286, 6.0
      %v1289 = vpack.c.bf16 %v1287, %v1287
      %v1290 = vpack.c.bf16 %v1288, %v1288
      %1291 = vst [vmem:[#allocation2 + $0x30] sm:$0xf] %v1289
      %1292 = vst [vmem:[#allocation2 + $0x34] sm:$0xf] %v1290
      %v1293 = vld [vmem:[%s1115] sm:$0xf]
      %v1294 = vld [vmem:[%s1115 + $0x4] sm:$0xf]
      %v1295 = vld [vmem:[%s1115 + $0x8] sm:$0xf]
      %v1296 = vunpack.c.l.bf16 %v1293
      %v1297 = vunpack.c.l.bf16 %v1294
      %v1298 = vunpack.c.l.bf16 %v1295
      %v1299 = vmul.f32 %v1296, %v374
      %v1300 = vmul.f32 %v1297, %v374
      %v1301 = vadd.f32 %v385, %v1299
      %v1302 = vadd.f32 %v385, %v1300
      %v1303 = vmul.f32 %v1296, %v375
      %v1304 = vmul.f32 %v1297, %v375
      %v1305 = vmul.f32 %v1298, %v375
      %v1309 = vrot.slane %v1303, 1
      %v1310 = vrot.slane %v1304, 1
      %v1311 = vsel %vm403, %v1309, %v1310
      %v1312 = vrot.slane %v1305, 1
      %v1313 = vsel %vm403, %v1310, %v1312
      %v1316 = vadd.f32 %v1301, %v1311
      %v1317 = vadd.f32 %v1302, %v1313
      %v1318 = vmul.f32 %v1296, %v376
      %v1319 = vmul.f32 %v1297, %v376
      %v1320 = vmul.f32 %v1298, %v376
      %v1324 = vrot.slane %v1318, 2
      %v1325 = vrot.slane %v1319, 2
      %v1326 = vsel %vm419, %v1324, %v1325
      %v1327 = vrot.slane %v1320, 2
      %v1328 = vsel %vm419, %v1325, %v1327
      %v1331 = vadd.f32 %v1316, %v1326
      %v1332 = vadd.f32 %v1317, %v1328
      %v1333 = vld [vmem:[%s1244] sm:$0xf]
      %v1334 = vld [vmem:[%s1244 + $0x4] sm:$0xf]
      %v1335 = vld [vmem:[%s1244 + $0x8] sm:$0xf]
      %v1336 = vunpack.c.l.bf16 %v1333
      %v1337 = vunpack.c.l.bf16 %v1334
      %v1338 = vunpack.c.l.bf16 %v1335
      %v1339 = vmul.f32 %v1336, %v377
      %v1340 = vmul.f32 %v1337, %v377
      %v1341 = vadd.f32 %v1331, %v1339
      %v1342 = vadd.f32 %v1332, %v1340
      %v1343 = vmul.f32 %v1336, %v378
      %v1344 = vmul.f32 %v1337, %v378
      %v1345 = vmul.f32 %v1338, %v378
      %v1349 = vrot.slane %v1343, 1
      %v1350 = vrot.slane %v1344, 1
      %v1351 = vsel %vm403, %v1349, %v1350
      %v1352 = vrot.slane %v1345, 1
      %v1353 = vsel %vm403, %v1350, %v1352
      %v1356 = vadd.f32 %v1341, %v1351
      %v1357 = vadd.f32 %v1342, %v1353
      %v1358 = vmul.f32 %v1336, %v379
      %v1359 = vmul.f32 %v1337, %v379
      %v1360 = vmul.f32 %v1338, %v379
      %v1364 = vrot.slane %v1358, 2
      %v1365 = vrot.slane %v1359, 2
      %v1366 = vsel %vm419, %v1364, %v1365
      %v1367 = vrot.slane %v1360, 2
      %v1368 = vsel %vm419, %v1365, %v1367
      %v1371 = vadd.f32 %v1356, %v1366
      %v1372 = vadd.f32 %v1357, %v1368
      %s1373 = scalar_lea.vmem %s340, 108
      %v1374 = vld [vmem:[%s1373] sm:$0xf]
      %v1375 = vld [vmem:[%s1373 + $0x4] sm:$0xf]
      %v1376 = vld [vmem:[%s1373 + $0x8] sm:$0xf]
      %v1377 = vunpack.c.l.bf16 %v1374
      %v1378 = vunpack.c.l.bf16 %v1375
      %v1379 = vunpack.c.l.bf16 %v1376
      %v1380 = vmul.f32 %v1377, %v380
      %v1381 = vmul.f32 %v1378, %v380
      %v1382 = vadd.f32 %v1371, %v1380
      %v1383 = vadd.f32 %v1372, %v1381
      %v1384 = vmul.f32 %v1377, %v381
      %v1385 = vmul.f32 %v1378, %v381
      %v1386 = vmul.f32 %v1379, %v381
      %v1390 = vrot.slane %v1384, 1
      %v1391 = vrot.slane %v1385, 1
      %v1392 = vsel %vm403, %v1390, %v1391
      %v1393 = vrot.slane %v1386, 1
      %v1394 = vsel %vm403, %v1391, %v1393
      %v1397 = vadd.f32 %v1382, %v1392
      %v1398 = vadd.f32 %v1383, %v1394
      %v1399 = vmul.f32 %v1377, %v382
      %v1400 = vmul.f32 %v1378, %v382
      %v1401 = vmul.f32 %v1379, %v382
      %v1405 = vrot.slane %v1399, 2
      %v1406 = vrot.slane %v1400, 2
      %v1407 = vsel %vm419, %v1405, %v1406
      %v1408 = vrot.slane %v1401, 2
      %v1409 = vsel %vm419, %v1406, %v1408
      %v1412 = vadd.f32 %v1397, %v1407
      %v1413 = vadd.f32 %v1398, %v1409
      %v1414 = vmax.f32 %v1412, 0.0
      %v1415 = vmax.f32 %v1413, 0.0
      %v1416 = vmin.f32 %v1414, 6.0
      %v1417 = vmin.f32 %v1415, 6.0
      %v1418 = vpack.c.bf16 %v1416, %v1416
      %v1419 = vpack.c.bf16 %v1417, %v1417
      %1420 = vst [vmem:[#allocation2 + $0x38] sm:$0xf] %v1418
      %1421 = vst [vmem:[#allocation2 + $0x3c] sm:$0xf] %v1419
      %v1422 = vld [vmem:[%s1244] sm:$0xf]
      %v1423 = vld [vmem:[%s1244 + $0x4] sm:$0xf]
      %v1424 = vld [vmem:[%s1244 + $0x8] sm:$0xf]
      %v1425 = vunpack.c.l.bf16 %v1422
      %v1426 = vunpack.c.l.bf16 %v1423
      %v1427 = vunpack.c.l.bf16 %v1424
      %v1428 = vmul.f32 %v1425, %v374
      %v1429 = vmul.f32 %v1426, %v374
      %v1430 = vadd.f32 %v385, %v1428
      %v1431 = vadd.f32 %v385, %v1429
      %v1432 = vmul.f32 %v1425, %v375
      %v1433 = vmul.f32 %v1426, %v375
      %v1434 = vmul.f32 %v1427, %v375
      %v1438 = vrot.slane %v1432, 1
      %v1439 = vrot.slane %v1433, 1
      %v1440 = vsel %vm403, %v1438, %v1439
      %v1441 = vrot.slane %v1434, 1
      %v1442 = vsel %vm403, %v1439, %v1441
      %v1445 = vadd.f32 %v1430, %v1440
      %v1446 = vadd.f32 %v1431, %v1442
      %v1447 = vmul.f32 %v1425, %v376
      %v1448 = vmul.f32 %v1426, %v376
      %v1449 = vmul.f32 %v1427, %v376
      %v1453 = vrot.slane %v1447, 2
      %v1454 = vrot.slane %v1448, 2
      %v1455 = vsel %vm419, %v1453, %v1454
      %v1456 = vrot.slane %v1449, 2
      %v1457 = vsel %vm419, %v1454, %v1456
      %v1460 = vadd.f32 %v1445, %v1455
      %v1461 = vadd.f32 %v1446, %v1457
      %v1462 = vld [vmem:[%s1373] sm:$0xf]
      %v1463 = vld [vmem:[%s1373 + $0x4] sm:$0xf]
      %v1464 = vld [vmem:[%s1373 + $0x8] sm:$0xf]
      %v1465 = vunpack.c.l.bf16 %v1462
      %v1466 = vunpack.c.l.bf16 %v1463
      %v1467 = vunpack.c.l.bf16 %v1464
      %v1468 = vmul.f32 %v1465, %v377
      %v1469 = vmul.f32 %v1466, %v377
      %v1470 = vadd.f32 %v1460, %v1468
      %v1471 = vadd.f32 %v1461, %v1469
      %v1472 = vmul.f32 %v1465, %v378
      %v1473 = vmul.f32 %v1466, %v378
      %v1474 = vmul.f32 %v1467, %v378
      %v1478 = vrot.slane %v1472, 1
      %v1479 = vrot.slane %v1473, 1
      %v1480 = vsel %vm403, %v1478, %v1479
      %v1481 = vrot.slane %v1474, 1
      %v1482 = vsel %vm403, %v1479, %v1481
      %v1485 = vadd.f32 %v1470, %v1480
      %v1486 = vadd.f32 %v1471, %v1482
      %v1487 = vmul.f32 %v1465, %v379
      %v1488 = vmul.f32 %v1466, %v379
      %v1489 = vmul.f32 %v1467, %v379
      %v1493 = vrot.slane %v1487, 2
      %v1494 = vrot.slane %v1488, 2
      %v1495 = vsel %vm419, %v1493, %v1494
      %v1496 = vrot.slane %v1489, 2
      %v1497 = vsel %vm419, %v1494, %v1496
      %v1500 = vadd.f32 %v1485, %v1495
      %v1501 = vadd.f32 %v1486, %v1497
      %s1502 = scalar_lea.vmem %s340, 120
      %v1503 = vld [vmem:[%s1502] sm:$0xf]
      %v1504 = vld [vmem:[%s1502 + $0x4] sm:$0xf]
      %v1505 = vld [vmem:[%s1502 + $0x8] sm:$0xf]
      %v1506 = vunpack.c.l.bf16 %v1503
      %v1507 = vunpack.c.l.bf16 %v1504
      %v1508 = vunpack.c.l.bf16 %v1505
      %v1509 = vmul.f32 %v1506, %v380
      %v1510 = vmul.f32 %v1507, %v380
      %v1511 = vadd.f32 %v1500, %v1509
      %v1512 = vadd.f32 %v1501, %v1510
      %v1513 = vmul.f32 %v1506, %v381
      %v1514 = vmul.f32 %v1507, %v381
      %v1515 = vmul.f32 %v1508, %v381
      %v1519 = vrot.slane %v1513, 1
      %v1520 = vrot.slane %v1514, 1
      %v1521 = vsel %vm403, %v1519, %v1520
      %v1522 = vrot.slane %v1515, 1
      %v1523 = vsel %vm403, %v1520, %v1522
      %v1526 = vadd.f32 %v1511, %v1521
      %v1527 = vadd.f32 %v1512, %v1523
      %v1528 = vmul.f32 %v1506, %v382
      %v1529 = vmul.f32 %v1507, %v382
      %v1530 = vmul.f32 %v1508, %v382
      %v1534 = vrot.slane %v1528, 2
      %v1535 = vrot.slane %v1529, 2
      %v1536 = vsel %vm419, %v1534, %v1535
      %v1537 = vrot.slane %v1530, 2
      %v1538 = vsel %vm419, %v1535, %v1537
      %v1541 = vadd.f32 %v1526, %v1536
      %v1542 = vadd.f32 %v1527, %v1538
      %v1543 = vmax.f32 %v1541, 0.0
      %v1544 = vmax.f32 %v1542, 0.0
      %v1545 = vmin.f32 %v1543, 6.0
      %v1546 = vmin.f32 %v1544, 6.0
      %v1547 = vpack.c.bf16 %v1545, %v1545
      %v1548 = vpack.c.bf16 %v1546, %v1546
      %1549 = vst [vmem:[#allocation2 + $0x40] sm:$0xf] %v1547
      %1550 = vst [vmem:[#allocation2 + $0x44] sm:$0xf] %v1548
      %v1551 = vld [vmem:[%s1373] sm:$0xf]
      %v1552 = vld [vmem:[%s1373 + $0x4] sm:$0xf]
      %v1553 = vld [vmem:[%s1373 + $0x8] sm:$0xf]
      %v1554 = vunpack.c.l.bf16 %v1551
      %v1555 = vunpack.c.l.bf16 %v1552
      %v1556 = vunpack.c.l.bf16 %v1553
      %v1557 = vmul.f32 %v1554, %v374
      %v1558 = vmul.f32 %v1555, %v374
      %v1559 = vadd.f32 %v385, %v1557
      %v1560 = vadd.f32 %v385, %v1558
      %v1561 = vmul.f32 %v1554, %v375
      %v1562 = vmul.f32 %v1555, %v375
      %v1563 = vmul.f32 %v1556, %v375
      %v1567 = vrot.slane %v1561, 1
      %v1568 = vrot.slane %v1562, 1
      %v1569 = vsel %vm403, %v1567, %v1568
      %v1570 = vrot.slane %v1563, 1
      %v1571 = vsel %vm403, %v1568, %v1570
      %v1574 = vadd.f32 %v1559, %v1569
      %v1575 = vadd.f32 %v1560, %v1571
      %v1576 = vmul.f32 %v1554, %v376
      %v1577 = vmul.f32 %v1555, %v376
      %v1578 = vmul.f32 %v1556, %v376
      %v1582 = vrot.slane %v1576, 2
      %v1583 = vrot.slane %v1577, 2
      %v1584 = vsel %vm419, %v1582, %v1583
      %v1585 = vrot.slane %v1578, 2
      %v1586 = vsel %vm419, %v1583, %v1585
      %v1589 = vadd.f32 %v1574, %v1584
      %v1590 = vadd.f32 %v1575, %v1586
      %v1591 = vld [vmem:[%s1502] sm:$0xf]
      %v1592 = vld [vmem:[%s1502 + $0x4] sm:$0xf]
      %v1593 = vld [vmem:[%s1502 + $0x8] sm:$0xf]
      %v1594 = vunpack.c.l.bf16 %v1591
      %v1595 = vunpack.c.l.bf16 %v1592
      %v1596 = vunpack.c.l.bf16 %v1593
      %v1597 = vmul.f32 %v1594, %v377
      %v1598 = vmul.f32 %v1595, %v377
      %v1599 = vadd.f32 %v1589, %v1597
      %v1600 = vadd.f32 %v1590, %v1598
      %v1601 = vmul.f32 %v1594, %v378
      %v1602 = vmul.f32 %v1595, %v378
      %v1603 = vmul.f32 %v1596, %v378
      %v1607 = vrot.slane %v1601, 1
      %v1608 = vrot.slane %v1602, 1
      %v1609 = vsel %vm403, %v1607, %v1608
      %v1610 = vrot.slane %v1603, 1
      %v1611 = vsel %vm403, %v1608, %v1610
      %v1614 = vadd.f32 %v1599, %v1609
      %v1615 = vadd.f32 %v1600, %v1611
      %v1616 = vmul.f32 %v1594, %v379
      %v1617 = vmul.f32 %v1595, %v379
      %v1618 = vmul.f32 %v1596, %v379
      %v1622 = vrot.slane %v1616, 2
      %v1623 = vrot.slane %v1617, 2
      %v1624 = vsel %vm419, %v1622, %v1623
      %v1625 = vrot.slane %v1618, 2
      %v1626 = vsel %vm419, %v1623, %v1625
      %v1629 = vadd.f32 %v1614, %v1624
      %v1630 = vadd.f32 %v1615, %v1626
      %s1631 = scalar_lea.vmem %s340, 132
      %v1632 = vld [vmem:[%s1631] sm:$0xf]
      %v1633 = vld [vmem:[%s1631 + $0x4] sm:$0xf]
      %v1634 = vld [vmem:[%s1631 + $0x8] sm:$0xf]
      %v1635 = vunpack.c.l.bf16 %v1632
      %v1636 = vunpack.c.l.bf16 %v1633
      %v1637 = vunpack.c.l.bf16 %v1634
      %v1638 = vmul.f32 %v1635, %v380
      %v1639 = vmul.f32 %v1636, %v380
      %v1640 = vadd.f32 %v1629, %v1638
      %v1641 = vadd.f32 %v1630, %v1639
      %v1642 = vmul.f32 %v1635, %v381
      %v1643 = vmul.f32 %v1636, %v381
      %v1644 = vmul.f32 %v1637, %v381
      %v1648 = vrot.slane %v1642, 1
      %v1649 = vrot.slane %v1643, 1
      %v1650 = vsel %vm403, %v1648, %v1649
      %v1651 = vrot.slane %v1644, 1
      %v1652 = vsel %vm403, %v1649, %v1651
      %v1655 = vadd.f32 %v1640, %v1650
      %v1656 = vadd.f32 %v1641, %v1652
      %v1657 = vmul.f32 %v1635, %v382
      %v1658 = vmul.f32 %v1636, %v382
      %v1659 = vmul.f32 %v1637, %v382
      %v1663 = vrot.slane %v1657, 2
      %v1664 = vrot.slane %v1658, 2
      %v1665 = vsel %vm419, %v1663, %v1664
      %v1666 = vrot.slane %v1659, 2
      %v1667 = vsel %vm419, %v1664, %v1666
      %v1670 = vadd.f32 %v1655, %v1665
      %v1671 = vadd.f32 %v1656, %v1667
      %v1672 = vmax.f32 %v1670, 0.0
      %v1673 = vmax.f32 %v1671, 0.0
      %v1674 = vmin.f32 %v1672, 6.0
      %v1675 = vmin.f32 %v1673, 6.0
      %v1676 = vpack.c.bf16 %v1674, %v1674
      %v1677 = vpack.c.bf16 %v1675, %v1675
      %1678 = vst [vmem:[#allocation2 + $0x48] sm:$0xf] %v1676
      %1679 = vst [vmem:[#allocation2 + $0x4c] sm:$0xf] %v1677
      %v1680 = vld [vmem:[%s1502] sm:$0xf]
      %v1681 = vld [vmem:[%s1502 + $0x4] sm:$0xf]
      %v1682 = vld [vmem:[%s1502 + $0x8] sm:$0xf]
      %v1683 = vunpack.c.l.bf16 %v1680
      %v1684 = vunpack.c.l.bf16 %v1681
      %v1685 = vunpack.c.l.bf16 %v1682
      %v1686 = vmul.f32 %v1683, %v374
      %v1687 = vmul.f32 %v1684, %v374
      %v1688 = vadd.f32 %v385, %v1686
      %v1689 = vadd.f32 %v385, %v1687
      %v1690 = vmul.f32 %v1683, %v375
      %v1691 = vmul.f32 %v1684, %v375
      %v1692 = vmul.f32 %v1685, %v375
      %v1696 = vrot.slane %v1690, 1
      %v1697 = vrot.slane %v1691, 1
      %v1698 = vsel %vm403, %v1696, %v1697
      %v1699 = vrot.slane %v1692, 1
      %v1700 = vsel %vm403, %v1697, %v1699
      %v1703 = vadd.f32 %v1688, %v1698
      %v1704 = vadd.f32 %v1689, %v1700
      %v1705 = vmul.f32 %v1683, %v376
      %v1706 = vmul.f32 %v1684, %v376
      %v1707 = vmul.f32 %v1685, %v376
      %v1711 = vrot.slane %v1705, 2
      %v1712 = vrot.slane %v1706, 2
      %v1713 = vsel %vm419, %v1711, %v1712
      %v1714 = vrot.slane %v1707, 2
      %v1715 = vsel %vm419, %v1712, %v1714
      %v1718 = vadd.f32 %v1703, %v1713
      %v1719 = vadd.f32 %v1704, %v1715
      %v1720 = vld [vmem:[%s1631] sm:$0xf]
      %v1721 = vld [vmem:[%s1631 + $0x4] sm:$0xf]
      %v1722 = vld [vmem:[%s1631 + $0x8] sm:$0xf]
      %v1723 = vunpack.c.l.bf16 %v1720
      %v1724 = vunpack.c.l.bf16 %v1721
      %v1725 = vunpack.c.l.bf16 %v1722
      %v1726 = vmul.f32 %v1723, %v377
      %v1727 = vmul.f32 %v1724, %v377
      %v1728 = vadd.f32 %v1718, %v1726
      %v1729 = vadd.f32 %v1719, %v1727
      %v1730 = vmul.f32 %v1723, %v378
      %v1731 = vmul.f32 %v1724, %v378
      %v1732 = vmul.f32 %v1725, %v378
      %v1736 = vrot.slane %v1730, 1
      %v1737 = vrot.slane %v1731, 1
      %v1738 = vsel %vm403, %v1736, %v1737
      %v1739 = vrot.slane %v1732, 1
      %v1740 = vsel %vm403, %v1737, %v1739
      %v1743 = vadd.f32 %v1728, %v1738
      %v1744 = vadd.f32 %v1729, %v1740
      %v1745 = vmul.f32 %v1723, %v379
      %v1746 = vmul.f32 %v1724, %v379
      %v1747 = vmul.f32 %v1725, %v379
      %v1751 = vrot.slane %v1745, 2
      %v1752 = vrot.slane %v1746, 2
      %v1753 = vsel %vm419, %v1751, %v1752
      %v1754 = vrot.slane %v1747, 2
      %v1755 = vsel %vm419, %v1752, %v1754
      %v1758 = vadd.f32 %v1743, %v1753
      %v1759 = vadd.f32 %v1744, %v1755
      %s1760 = scalar_lea.vmem %s340, 144
      %v1761 = vld [vmem:[%s1760] sm:$0xf]
      %v1762 = vld [vmem:[%s1760 + $0x4] sm:$0xf]
      %v1763 = vld [vmem:[%s1760 + $0x8] sm:$0xf]
      %v1764 = vunpack.c.l.bf16 %v1761
      %v1765 = vunpack.c.l.bf16 %v1762
      %v1766 = vunpack.c.l.bf16 %v1763
      %v1767 = vmul.f32 %v1764, %v380
      %v1768 = vmul.f32 %v1765, %v380
      %v1769 = vadd.f32 %v1758, %v1767
      %v1770 = vadd.f32 %v1759, %v1768
      %v1771 = vmul.f32 %v1764, %v381
      %v1772 = vmul.f32 %v1765, %v381
      %v1773 = vmul.f32 %v1766, %v381
      %v1777 = vrot.slane %v1771, 1
      %v1778 = vrot.slane %v1772, 1
      %v1779 = vsel %vm403, %v1777, %v1778
      %v1780 = vrot.slane %v1773, 1
      %v1781 = vsel %vm403, %v1778, %v1780
      %v1784 = vadd.f32 %v1769, %v1779
      %v1785 = vadd.f32 %v1770, %v1781
      %v1786 = vmul.f32 %v1764, %v382
      %v1787 = vmul.f32 %v1765, %v382
      %v1788 = vmul.f32 %v1766, %v382
      %v1792 = vrot.slane %v1786, 2
      %v1793 = vrot.slane %v1787, 2
      %v1794 = vsel %vm419, %v1792, %v1793
      %v1795 = vrot.slane %v1788, 2
      %v1796 = vsel %vm419, %v1793, %v1795
      %v1799 = vadd.f32 %v1784, %v1794
      %v1800 = vadd.f32 %v1785, %v1796
      %v1801 = vmax.f32 %v1799, 0.0
      %v1802 = vmax.f32 %v1800, 0.0
      %v1803 = vmin.f32 %v1801, 6.0
      %v1804 = vmin.f32 %v1802, 6.0
      %v1805 = vpack.c.bf16 %v1803, %v1803
      %v1806 = vpack.c.bf16 %v1804, %v1804
      %1807 = vst [vmem:[#allocation2 + $0x50] sm:$0xf] %v1805
      %1808 = vst [vmem:[#allocation2 + $0x54] sm:$0xf] %v1806
      %v1809 = vld [vmem:[%s1631] sm:$0xf]
      %v1810 = vld [vmem:[%s1631 + $0x4] sm:$0xf]
      %v1811 = vld [vmem:[%s1631 + $0x8] sm:$0xf]
      %v1812 = vunpack.c.l.bf16 %v1809
      %v1813 = vunpack.c.l.bf16 %v1810
      %v1814 = vunpack.c.l.bf16 %v1811
      %v1815 = vmul.f32 %v1812, %v374
      %v1816 = vmul.f32 %v1813, %v374
      %v1817 = vadd.f32 %v385, %v1815
      %v1818 = vadd.f32 %v385, %v1816
      %v1819 = vmul.f32 %v1812, %v375
      %v1820 = vmul.f32 %v1813, %v375
      %v1821 = vmul.f32 %v1814, %v375
      %v1825 = vrot.slane %v1819, 1
      %v1826 = vrot.slane %v1820, 1
      %v1827 = vsel %vm403, %v1825, %v1826
      %v1828 = vrot.slane %v1821, 1
      %v1829 = vsel %vm403, %v1826, %v1828
      %v1832 = vadd.f32 %v1817, %v1827
      %v1833 = vadd.f32 %v1818, %v1829
      %v1834 = vmul.f32 %v1812, %v376
      %v1835 = vmul.f32 %v1813, %v376
      %v1836 = vmul.f32 %v1814, %v376
      %v1840 = vrot.slane %v1834, 2
      %v1841 = vrot.slane %v1835, 2
      %v1842 = vsel %vm419, %v1840, %v1841
      %v1843 = vrot.slane %v1836, 2
      %v1844 = vsel %vm419, %v1841, %v1843
      %v1847 = vadd.f32 %v1832, %v1842
      %v1848 = vadd.f32 %v1833, %v1844
      %v1849 = vld [vmem:[%s1760] sm:$0xf]
      %v1850 = vld [vmem:[%s1760 + $0x4] sm:$0xf]
      %v1851 = vld [vmem:[%s1760 + $0x8] sm:$0xf]
      %v1852 = vunpack.c.l.bf16 %v1849
      %v1853 = vunpack.c.l.bf16 %v1850
      %v1854 = vunpack.c.l.bf16 %v1851
      %v1855 = vmul.f32 %v1852, %v377
      %v1856 = vmul.f32 %v1853, %v377
      %v1857 = vadd.f32 %v1847, %v1855
      %v1858 = vadd.f32 %v1848, %v1856
      %v1859 = vmul.f32 %v1852, %v378
      %v1860 = vmul.f32 %v1853, %v378
      %v1861 = vmul.f32 %v1854, %v378
      %v1865 = vrot.slane %v1859, 1
      %v1866 = vrot.slane %v1860, 1
      %v1867 = vsel %vm403, %v1865, %v1866
      %v1868 = vrot.slane %v1861, 1
      %v1869 = vsel %vm403, %v1866, %v1868
      %v1872 = vadd.f32 %v1857, %v1867
      %v1873 = vadd.f32 %v1858, %v1869
      %v1874 = vmul.f32 %v1852, %v379
      %v1875 = vmul.f32 %v1853, %v379
      %v1876 = vmul.f32 %v1854, %v379
      %v1880 = vrot.slane %v1874, 2
      %v1881 = vrot.slane %v1875, 2
      %v1882 = vsel %vm419, %v1880, %v1881
      %v1883 = vrot.slane %v1876, 2
      %v1884 = vsel %vm419, %v1881, %v1883
      %v1887 = vadd.f32 %v1872, %v1882
      %v1888 = vadd.f32 %v1873, %v1884
      %s1889 = scalar_lea.vmem %s340, 156
      %v1890 = vld [vmem:[%s1889] sm:$0xf]
      %v1891 = vld [vmem:[%s1889 + $0x4] sm:$0xf]
      %v1892 = vld [vmem:[%s1889 + $0x8] sm:$0xf]
      %v1893 = vunpack.c.l.bf16 %v1890
      %v1894 = vunpack.c.l.bf16 %v1891
      %v1895 = vunpack.c.l.bf16 %v1892
      %v1896 = vmul.f32 %v1893, %v380
      %v1897 = vmul.f32 %v1894, %v380
      %v1898 = vadd.f32 %v1887, %v1896
      %v1899 = vadd.f32 %v1888, %v1897
      %v1900 = vmul.f32 %v1893, %v381
      %v1901 = vmul.f32 %v1894, %v381
      %v1902 = vmul.f32 %v1895, %v381
      %v1906 = vrot.slane %v1900, 1
      %v1907 = vrot.slane %v1901, 1
      %v1908 = vsel %vm403, %v1906, %v1907
      %v1909 = vrot.slane %v1902, 1
      %v1910 = vsel %vm403, %v1907, %v1909
      %v1913 = vadd.f32 %v1898, %v1908
      %v1914 = vadd.f32 %v1899, %v1910
      %v1915 = vmul.f32 %v1893, %v382
      %v1916 = vmul.f32 %v1894, %v382
      %v1917 = vmul.f32 %v1895, %v382
      %v1921 = vrot.slane %v1915, 2
      %v1922 = vrot.slane %v1916, 2
      %v1923 = vsel %vm419, %v1921, %v1922
      %v1924 = vrot.slane %v1917, 2
      %v1925 = vsel %vm419, %v1922, %v1924
      %v1928 = vadd.f32 %v1913, %v1923
      %v1929 = vadd.f32 %v1914, %v1925
      %v1930 = vmax.f32 %v1928, 0.0
      %v1931 = vmax.f32 %v1929, 0.0
      %v1932 = vmin.f32 %v1930, 6.0
      %v1933 = vmin.f32 %v1931, 6.0
      %v1934 = vpack.c.bf16 %v1932, %v1932
      %v1935 = vpack.c.bf16 %v1933, %v1933
      %1936 = vst [vmem:[#allocation2 + $0x58] sm:$0xf] %v1934
      %1937 = vst [vmem:[#allocation2 + $0x5c] sm:$0xf] %v1935
      %v1938 = vld [vmem:[%s1760] sm:$0xf]
      %v1939 = vld [vmem:[%s1760 + $0x4] sm:$0xf]
      %v1940 = vld [vmem:[%s1760 + $0x8] sm:$0xf]
      %v1941 = vunpack.c.l.bf16 %v1938
      %v1942 = vunpack.c.l.bf16 %v1939
      %v1943 = vunpack.c.l.bf16 %v1940
      %v1944 = vmul.f32 %v1941, %v374
      %v1945 = vmul.f32 %v1942, %v374
      %v1946 = vadd.f32 %v385, %v1944
      %v1947 = vadd.f32 %v385, %v1945
      %v1948 = vmul.f32 %v1941, %v375
      %v1949 = vmul.f32 %v1942, %v375
      %v1950 = vmul.f32 %v1943, %v375
      %v1954 = vrot.slane %v1948, 1
      %v1955 = vrot.slane %v1949, 1
      %v1956 = vsel %vm403, %v1954, %v1955
      %v1957 = vrot.slane %v1950, 1
      %v1958 = vsel %vm403, %v1955, %v1957
      %v1961 = vadd.f32 %v1946, %v1956
      %v1962 = vadd.f32 %v1947, %v1958
      %v1963 = vmul.f32 %v1941, %v376
      %v1964 = vmul.f32 %v1942, %v376
      %v1965 = vmul.f32 %v1943, %v376
      %v1969 = vrot.slane %v1963, 2
      %v1970 = vrot.slane %v1964, 2
      %v1971 = vsel %vm419, %v1969, %v1970
      %v1972 = vrot.slane %v1965, 2
      %v1973 = vsel %vm419, %v1970, %v1972
      %v1976 = vadd.f32 %v1961, %v1971
      %v1977 = vadd.f32 %v1962, %v1973
      %v1978 = vld [vmem:[%s1889] sm:$0xf]
      %v1979 = vld [vmem:[%s1889 + $0x4] sm:$0xf]
      %v1980 = vld [vmem:[%s1889 + $0x8] sm:$0xf]
      %v1981 = vunpack.c.l.bf16 %v1978
      %v1982 = vunpack.c.l.bf16 %v1979
      %v1983 = vunpack.c.l.bf16 %v1980
      %v1984 = vmul.f32 %v1981, %v377
      %v1985 = vmul.f32 %v1982, %v377
      %v1986 = vadd.f32 %v1976, %v1984
      %v1987 = vadd.f32 %v1977, %v1985
      %v1988 = vmul.f32 %v1981, %v378
      %v1989 = vmul.f32 %v1982, %v378
      %v1990 = vmul.f32 %v1983, %v378
      %v1994 = vrot.slane %v1988, 1
      %v1995 = vrot.slane %v1989, 1
      %v1996 = vsel %vm403, %v1994, %v1995
      %v1997 = vrot.slane %v1990, 1
      %v1998 = vsel %vm403, %v1995, %v1997
      %v2001 = vadd.f32 %v1986, %v1996
      %v2002 = vadd.f32 %v1987, %v1998
      %v2003 = vmul.f32 %v1981, %v379
      %v2004 = vmul.f32 %v1982, %v379
      %v2005 = vmul.f32 %v1983, %v379
      %v2009 = vrot.slane %v2003, 2
      %v2010 = vrot.slane %v2004, 2
      %v2011 = vsel %vm419, %v2009, %v2010
      %v2012 = vrot.slane %v2005, 2
      %v2013 = vsel %vm419, %v2010, %v2012
      %v2016 = vadd.f32 %v2001, %v2011
      %v2017 = vadd.f32 %v2002, %v2013
      %s2018 = scalar_lea.vmem %s340, 168
      %v2019 = vld [vmem:[%s2018] sm:$0xf]
      %v2020 = vld [vmem:[%s2018 + $0x4] sm:$0xf]
      %v2021 = vld [vmem:[%s2018 + $0x8] sm:$0xf]
      %v2022 = vunpack.c.l.bf16 %v2019
      %v2023 = vunpack.c.l.bf16 %v2020
      %v2024 = vunpack.c.l.bf16 %v2021
      %v2025 = vmul.f32 %v2022, %v380
      %v2026 = vmul.f32 %v2023, %v380
      %v2027 = vadd.f32 %v2016, %v2025
      %v2028 = vadd.f32 %v2017, %v2026
      %v2029 = vmul.f32 %v2022, %v381
      %v2030 = vmul.f32 %v2023, %v381
      %v2031 = vmul.f32 %v2024, %v381
      %v2035 = vrot.slane %v2029, 1
      %v2036 = vrot.slane %v2030, 1
      %v2037 = vsel %vm403, %v2035, %v2036
      %v2038 = vrot.slane %v2031, 1
      %v2039 = vsel %vm403, %v2036, %v2038
      %v2042 = vadd.f32 %v2027, %v2037
      %v2043 = vadd.f32 %v2028, %v2039
      %v2044 = vmul.f32 %v2022, %v382
      %v2045 = vmul.f32 %v2023, %v382
      %v2046 = vmul.f32 %v2024, %v382
      %v2050 = vrot.slane %v2044, 2
      %v2051 = vrot.slane %v2045, 2
      %v2052 = vsel %vm419, %v2050, %v2051
      %v2053 = vrot.slane %v2046, 2
      %v2054 = vsel %vm419, %v2051, %v2053
      %v2057 = vadd.f32 %v2042, %v2052
      %v2058 = vadd.f32 %v2043, %v2054
      %v2059 = vmax.f32 %v2057, 0.0
      %v2060 = vmax.f32 %v2058, 0.0
      %v2061 = vmin.f32 %v2059, 6.0
      %v2062 = vmin.f32 %v2060, 6.0
      %v2063 = vpack.c.bf16 %v2061, %v2061
      %v2064 = vpack.c.bf16 %v2062, %v2062
      %2065 = vst [vmem:[#allocation2 + $0x60] sm:$0xf] %v2063
      %2066 = vst [vmem:[#allocation2 + $0x64] sm:$0xf] %v2064
      %v2067 = vld [vmem:[%s1889] sm:$0xf]
      %v2068 = vld [vmem:[%s1889 + $0x4] sm:$0xf]
      %v2069 = vld [vmem:[%s1889 + $0x8] sm:$0xf]
      %v2070 = vunpack.c.l.bf16 %v2067
      %v2071 = vunpack.c.l.bf16 %v2068
      %v2072 = vunpack.c.l.bf16 %v2069
      %v2073 = vmul.f32 %v2070, %v374
      %v2074 = vmul.f32 %v2071, %v374
      %v2075 = vadd.f32 %v385, %v2073
      %v2076 = vadd.f32 %v385, %v2074
      %v2077 = vmul.f32 %v2070, %v375
      %v2078 = vmul.f32 %v2071, %v375
      %v2079 = vmul.f32 %v2072, %v375
      %v2083 = vrot.slane %v2077, 1
      %v2084 = vrot.slane %v2078, 1
      %v2085 = vsel %vm403, %v2083, %v2084
      %v2086 = vrot.slane %v2079, 1
      %v2087 = vsel %vm403, %v2084, %v2086
      %v2090 = vadd.f32 %v2075, %v2085
      %v2091 = vadd.f32 %v2076, %v2087
      %v2092 = vmul.f32 %v2070, %v376
      %v2093 = vmul.f32 %v2071, %v376
      %v2094 = vmul.f32 %v2072, %v376
      %v2098 = vrot.slane %v2092, 2
      %v2099 = vrot.slane %v2093, 2
      %v2100 = vsel %vm419, %v2098, %v2099
      %v2101 = vrot.slane %v2094, 2
      %v2102 = vsel %vm419, %v2099, %v2101
      %v2105 = vadd.f32 %v2090, %v2100
      %v2106 = vadd.f32 %v2091, %v2102
      %v2107 = vld [vmem:[%s2018] sm:$0xf]
      %v2108 = vld [vmem:[%s2018 + $0x4] sm:$0xf]
      %v2109 = vld [vmem:[%s2018 + $0x8] sm:$0xf]
      %v2110 = vunpack.c.l.bf16 %v2107
      %v2111 = vunpack.c.l.bf16 %v2108
      %v2112 = vunpack.c.l.bf16 %v2109
      %v2113 = vmul.f32 %v2110, %v377
      %v2114 = vmul.f32 %v2111, %v377
      %v2115 = vadd.f32 %v2105, %v2113
      %v2116 = vadd.f32 %v2106, %v2114
      %v2117 = vmul.f32 %v2110, %v378
      %v2118 = vmul.f32 %v2111, %v378
      %v2119 = vmul.f32 %v2112, %v378
      %v2123 = vrot.slane %v2117, 1
      %v2124 = vrot.slane %v2118, 1
      %v2125 = vsel %vm403, %v2123, %v2124
      %v2126 = vrot.slane %v2119, 1
      %v2127 = vsel %vm403, %v2124, %v2126
      %v2130 = vadd.f32 %v2115, %v2125
      %v2131 = vadd.f32 %v2116, %v2127
      %v2132 = vmul.f32 %v2110, %v379
      %v2133 = vmul.f32 %v2111, %v379
      %v2134 = vmul.f32 %v2112, %v379
      %v2138 = vrot.slane %v2132, 2
      %v2139 = vrot.slane %v2133, 2
      %v2140 = vsel %vm419, %v2138, %v2139
      %v2141 = vrot.slane %v2134, 2
      %v2142 = vsel %vm419, %v2139, %v2141
      %v2145 = vadd.f32 %v2130, %v2140
      %v2146 = vadd.f32 %v2131, %v2142
      %s2147 = scalar_lea.vmem %s340, 180
      %v2148 = vld [vmem:[%s2147] sm:$0xf]
      %v2149 = vld [vmem:[%s2147 + $0x4] sm:$0xf]
      %v2150 = vld [vmem:[%s2147 + $0x8] sm:$0xf]
      %v2151 = vunpack.c.l.bf16 %v2148
      %v2152 = vunpack.c.l.bf16 %v2149
      %v2153 = vunpack.c.l.bf16 %v2150
      %v2154 = vmul.f32 %v2151, %v380
      %v2155 = vmul.f32 %v2152, %v380
      %v2156 = vadd.f32 %v2145, %v2154
      %v2157 = vadd.f32 %v2146, %v2155
      %v2158 = vmul.f32 %v2151, %v381
      %v2159 = vmul.f32 %v2152, %v381
      %v2160 = vmul.f32 %v2153, %v381
      %v2164 = vrot.slane %v2158, 1
      %v2165 = vrot.slane %v2159, 1
      %v2166 = vsel %vm403, %v2164, %v2165
      %v2167 = vrot.slane %v2160, 1
      %v2168 = vsel %vm403, %v2165, %v2167
      %v2171 = vadd.f32 %v2156, %v2166
      %v2172 = vadd.f32 %v2157, %v2168
      %v2173 = vmul.f32 %v2151, %v382
      %v2174 = vmul.f32 %v2152, %v382
      %v2175 = vmul.f32 %v2153, %v382
      %v2179 = vrot.slane %v2173, 2
      %v2180 = vrot.slane %v2174, 2
      %v2181 = vsel %vm419, %v2179, %v2180
      %v2182 = vrot.slane %v2175, 2
      %v2183 = vsel %vm419, %v2180, %v2182
      %v2186 = vadd.f32 %v2171, %v2181
      %v2187 = vadd.f32 %v2172, %v2183
      %v2188 = vmax.f32 %v2186, 0.0
      %v2189 = vmax.f32 %v2187, 0.0
      %v2190 = vmin.f32 %v2188, 6.0
      %v2191 = vmin.f32 %v2189, 6.0
      %v2192 = vpack.c.bf16 %v2190, %v2190
      %v2193 = vpack.c.bf16 %v2191, %v2191
      %2194 = vst [vmem:[#allocation2 + $0x68] sm:$0xf] %v2192
      %2195 = vst [vmem:[#allocation2 + $0x6c] sm:$0xf] %v2193
      %v2196 = vld [vmem:[%s2018] sm:$0xf]
      %v2197 = vld [vmem:[%s2018 + $0x4] sm:$0xf]
      %v2198 = vld [vmem:[%s2018 + $0x8] sm:$0xf]
      %v2199 = vunpack.c.l.bf16 %v2196
      %v2200 = vunpack.c.l.bf16 %v2197
      %v2201 = vunpack.c.l.bf16 %v2198
      %v2202 = vmul.f32 %v2199, %v374
      %v2203 = vmul.f32 %v2200, %v374
      %v2204 = vadd.f32 %v385, %v2202
      %v2205 = vadd.f32 %v385, %v2203
      %v2206 = vmul.f32 %v2199, %v375
      %v2207 = vmul.f32 %v2200, %v375
      %v2208 = vmul.f32 %v2201, %v375
      %v2212 = vrot.slane %v2206, 1
      %v2213 = vrot.slane %v2207, 1
      %v2214 = vsel %vm403, %v2212, %v2213
      %v2215 = vrot.slane %v2208, 1
      %v2216 = vsel %vm403, %v2213, %v2215
      %v2219 = vadd.f32 %v2204, %v2214
      %v2220 = vadd.f32 %v2205, %v2216
      %v2221 = vmul.f32 %v2199, %v376
      %v2222 = vmul.f32 %v2200, %v376
      %v2223 = vmul.f32 %v2201, %v376
      %v2227 = vrot.slane %v2221, 2
      %v2228 = vrot.slane %v2222, 2
      %v2229 = vsel %vm419, %v2227, %v2228
      %v2230 = vrot.slane %v2223, 2
      %v2231 = vsel %vm419, %v2228, %v2230
      %v2234 = vadd.f32 %v2219, %v2229
      %v2235 = vadd.f32 %v2220, %v2231
      %v2236 = vld [vmem:[%s2147] sm:$0xf]
      %v2237 = vld [vmem:[%s2147 + $0x4] sm:$0xf]
      %v2238 = vld [vmem:[%s2147 + $0x8] sm:$0xf]
      %v2239 = vunpack.c.l.bf16 %v2236
      %v2240 = vunpack.c.l.bf16 %v2237
      %v2241 = vunpack.c.l.bf16 %v2238
      %v2242 = vmul.f32 %v2239, %v377
      %v2243 = vmul.f32 %v2240, %v377
      %v2244 = vadd.f32 %v2234, %v2242
      %v2245 = vadd.f32 %v2235, %v2243
      %v2246 = vmul.f32 %v2239, %v378
      %v2247 = vmul.f32 %v2240, %v378
      %v2248 = vmul.f32 %v2241, %v378
      %v2252 = vrot.slane %v2246, 1
      %v2253 = vrot.slane %v2247, 1
      %v2254 = vsel %vm403, %v2252, %v2253
      %v2255 = vrot.slane %v2248, 1
      %v2256 = vsel %vm403, %v2253, %v2255
      %v2259 = vadd.f32 %v2244, %v2254
      %v2260 = vadd.f32 %v2245, %v2256
      %v2261 = vmul.f32 %v2239, %v379
      %v2262 = vmul.f32 %v2240, %v379
      %v2263 = vmul.f32 %v2241, %v379
      %v2267 = vrot.slane %v2261, 2
      %v2268 = vrot.slane %v2262, 2
      %v2269 = vsel %vm419, %v2267, %v2268
      %v2270 = vrot.slane %v2263, 2
      %v2271 = vsel %vm419, %v2268, %v2270
      %v2274 = vadd.f32 %v2259, %v2269
      %v2275 = vadd.f32 %v2260, %v2271
      %v2276 = vld [vmem:[%s358] sm:$0xf]
      %v2277 = vld [vmem:[%s358 + $0x4] sm:$0xf]
      %v2278 = vld [vmem:[%s358 + $0x8] sm:$0xf]
      %v2279 = vunpack.c.l.bf16 %v2276
      %v2280 = vunpack.c.l.bf16 %v2277
      %v2281 = vunpack.c.l.bf16 %v2278
      %v2282 = vmul.f32 %v2279, %v380
      %v2283 = vmul.f32 %v2280, %v380
      %v2284 = vadd.f32 %v2274, %v2282
      %v2285 = vadd.f32 %v2275, %v2283
      %v2286 = vmul.f32 %v2279, %v381
      %v2287 = vmul.f32 %v2280, %v381
      %v2288 = vmul.f32 %v2281, %v381
      %v2292 = vrot.slane %v2286, 1
      %v2293 = vrot.slane %v2287, 1
      %v2294 = vsel %vm403, %v2292, %v2293
      %v2295 = vrot.slane %v2288, 1
      %v2296 = vsel %vm403, %v2293, %v2295
      %v2299 = vadd.f32 %v2284, %v2294
      %v2300 = vadd.f32 %v2285, %v2296
      %v2301 = vmul.f32 %v2279, %v382
      %v2302 = vmul.f32 %v2280, %v382
      %v2303 = vmul.f32 %v2281, %v382
      %v2307 = vrot.slane %v2301, 2
      %v2308 = vrot.slane %v2302, 2
      %v2309 = vsel %vm419, %v2307, %v2308
      %v2310 = vrot.slane %v2303, 2
      %v2311 = vsel %vm419, %v2308, %v2310
      %v2314 = vadd.f32 %v2299, %v2309
      %v2315 = vadd.f32 %v2300, %v2311
      %v2316 = vmax.f32 %v2314, 0.0
      %v2317 = vmax.f32 %v2315, 0.0
      %v2318 = vmin.f32 %v2316, 6.0
      %v2319 = vmin.f32 %v2317, 6.0
      %v2320 = vpack.c.bf16 %v2318, %v2318
      %v2321 = vpack.c.bf16 %v2319, %v2319
      %2322 = vst [vmem:[#allocation2 + $0x70] sm:$0xf] %v2320
      %2323 = vst [vmem:[#allocation2 + $0x74] sm:$0xf] %v2321
      %v2324 = vld [vmem:[%s2147] sm:$0xf]
      %v2325 = vld [vmem:[%s2147 + $0x4] sm:$0xf]
      %v2326 = vld [vmem:[%s2147 + $0x8] sm:$0xf]
      %v2327 = vunpack.c.l.bf16 %v2324
      %v2328 = vunpack.c.l.bf16 %v2325
      %v2329 = vunpack.c.l.bf16 %v2326
      %v2330 = vmul.f32 %v2327, %v374
      %v2331 = vmul.f32 %v2328, %v374
      %v2332 = vadd.f32 %v385, %v2330
      %v2333 = vadd.f32 %v385, %v2331
      %v2334 = vmul.f32 %v2327, %v375
      %v2335 = vmul.f32 %v2328, %v375
      %v2336 = vmul.f32 %v2329, %v375
      %v2340 = vrot.slane %v2334, 1
      %v2341 = vrot.slane %v2335, 1
      %v2342 = vsel %vm403, %v2340, %v2341
      %v2343 = vrot.slane %v2336, 1
      %v2344 = vsel %vm403, %v2341, %v2343
      %v2347 = vadd.f32 %v2332, %v2342
      %v2348 = vadd.f32 %v2333, %v2344
      %v2349 = vmul.f32 %v2327, %v376
      %v2350 = vmul.f32 %v2328, %v376
      %v2351 = vmul.f32 %v2329, %v376
      %v2355 = vrot.slane %v2349, 2
      %v2356 = vrot.slane %v2350, 2
      %v2357 = vsel %vm419, %v2355, %v2356
      %v2358 = vrot.slane %v2351, 2
      %v2359 = vsel %vm419, %v2356, %v2358
      %v2362 = vadd.f32 %v2347, %v2357
      %v2363 = vadd.f32 %v2348, %v2359
      %v2364 = vld [vmem:[%s358] sm:$0xf]
      %v2365 = vld [vmem:[%s358 + $0x4] sm:$0xf]
      %v2366 = vld [vmem:[%s358 + $0x8] sm:$0xf]
      %v2367 = vunpack.c.l.bf16 %v2364
      %v2368 = vunpack.c.l.bf16 %v2365
      %v2369 = vunpack.c.l.bf16 %v2366
      %v2370 = vmul.f32 %v2367, %v377
      %v2371 = vmul.f32 %v2368, %v377
      %v2372 = vadd.f32 %v2362, %v2370
      %v2373 = vadd.f32 %v2363, %v2371
      %v2374 = vmul.f32 %v2367, %v378
      %v2375 = vmul.f32 %v2368, %v378
      %v2376 = vmul.f32 %v2369, %v378
      %v2380 = vrot.slane %v2374, 1
      %v2381 = vrot.slane %v2375, 1
      %v2382 = vsel %vm403, %v2380, %v2381
      %v2383 = vrot.slane %v2376, 1
      %v2384 = vsel %vm403, %v2381, %v2383
      %v2387 = vadd.f32 %v2372, %v2382
      %v2388 = vadd.f32 %v2373, %v2384
      %v2389 = vmul.f32 %v2367, %v379
      %v2390 = vmul.f32 %v2368, %v379
      %v2391 = vmul.f32 %v2369, %v379
      %v2395 = vrot.slane %v2389, 2
      %v2396 = vrot.slane %v2390, 2
      %v2397 = vsel %vm419, %v2395, %v2396
      %v2398 = vrot.slane %v2391, 2
      %v2399 = vsel %vm419, %v2396, %v2398
      %v2402 = vadd.f32 %v2387, %v2397
      %v2403 = vadd.f32 %v2388, %v2399
      %s2404 = scalar_lea.vmem %s358, 12
      %v2405 = vld [vmem:[%s2404] sm:$0xf]
      %v2406 = vld [vmem:[%s2404 + $0x4] sm:$0xf]
      %v2407 = vld [vmem:[%s2404 + $0x8] sm:$0xf]
      %v2408 = vunpack.c.l.bf16 %v2405
      %v2409 = vunpack.c.l.bf16 %v2406
      %v2410 = vunpack.c.l.bf16 %v2407
      %v2411 = vmul.f32 %v2408, %v380
      %v2412 = vmul.f32 %v2409, %v380
      %v2413 = vadd.f32 %v2402, %v2411
      %v2414 = vadd.f32 %v2403, %v2412
      %v2415 = vmul.f32 %v2408, %v381
      %v2416 = vmul.f32 %v2409, %v381
      %v2417 = vmul.f32 %v2410, %v381
      %v2421 = vrot.slane %v2415, 1
      %v2422 = vrot.slane %v2416, 1
      %v2423 = vsel %vm403, %v2421, %v2422
      %v2424 = vrot.slane %v2417, 1
      %v2425 = vsel %vm403, %v2422, %v2424
      %v2428 = vadd.f32 %v2413, %v2423
      %v2429 = vadd.f32 %v2414, %v2425
      %v2430 = vmul.f32 %v2408, %v382
      %v2431 = vmul.f32 %v2409, %v382
      %v2432 = vmul.f32 %v2410, %v382
      %v2436 = vrot.slane %v2430, 2
      %v2437 = vrot.slane %v2431, 2
      %v2438 = vsel %vm419, %v2436, %v2437
      %v2439 = vrot.slane %v2432, 2
      %v2440 = vsel %vm419, %v2437, %v2439
      %v2443 = vadd.f32 %v2428, %v2438
      %v2444 = vadd.f32 %v2429, %v2440
      %v2445 = vmax.f32 %v2443, 0.0
      %v2446 = vmax.f32 %v2444, 0.0
      %v2447 = vmin.f32 %v2445, 6.0
      %v2448 = vmin.f32 %v2446, 6.0
      %v2449 = vpack.c.bf16 %v2447, %v2447
      %v2450 = vpack.c.bf16 %v2448, %v2448
      %2451 = vst [vmem:[#allocation2 + $0x78] sm:$0xf] %v2449
      %2452 = vst [vmem:[#allocation2 + $0x7c] sm:$0xf] %v2450
      %v2453 = vld [vmem:[#allocation2] sm:$0xf]
      %v2454 = vld [vmem:[#allocation2 + $0x4] sm:$0xf]
      %v2455 = vld [vmem:[#allocation2 + $0x8] sm:$0xf]
      %v2456 = vld [vmem:[#allocation2 + $0xc] sm:$0xf]
      %v2457 = vld [vmem:[#allocation2 + $0x10] sm:$0xf]
      %v2458 = vld [vmem:[#allocation2 + $0x14] sm:$0xf]
      %v2459 = vld [vmem:[#allocation2 + $0x18] sm:$0xf]
      %v2460 = vld [vmem:[#allocation2 + $0x1c] sm:$0xf]
      %v2461 = vld [vmem:[#allocation2 + $0x20] sm:$0xf]
      %v2462 = vld [vmem:[#allocation2 + $0x24] sm:$0xf]
      %v2463 = vld [vmem:[#allocation2 + $0x28] sm:$0xf]
      %v2464 = vld [vmem:[#allocation2 + $0x2c] sm:$0xf]
      %v2465 = vld [vmem:[#allocation2 + $0x30] sm:$0xf]
      %v2466 = vld [vmem:[#allocation2 + $0x34] sm:$0xf]
      %v2467 = vld [vmem:[#allocation2 + $0x38] sm:$0xf]
      %v2468 = vld [vmem:[#allocation2 + $0x3c] sm:$0xf]
      %v2469 = vld [vmem:[#allocation2 + $0x40] sm:$0xf]
      %v2470 = vld [vmem:[#allocation2 + $0x44] sm:$0xf]
      %v2471 = vld [vmem:[#allocation2 + $0x48] sm:$0xf]
      %v2472 = vld [vmem:[#allocation2 + $0x4c] sm:$0xf]
      %v2473 = vld [vmem:[#allocation2 + $0x50] sm:$0xf]
      %v2474 = vld [vmem:[#allocation2 + $0x54] sm:$0xf]
      %v2475 = vld [vmem:[#allocation2 + $0x58] sm:$0xf]
      %v2476 = vld [vmem:[#allocation2 + $0x5c] sm:$0xf]
      %v2477 = vld [vmem:[#allocation2 + $0x60] sm:$0xf]
      %v2478 = vld [vmem:[#allocation2 + $0x64] sm:$0xf]
      %v2479 = vld [vmem:[#allocation2 + $0x68] sm:$0xf]
      %v2480 = vld [vmem:[#allocation2 + $0x6c] sm:$0xf]
      %v2481 = vld [vmem:[#allocation2 + $0x70] sm:$0xf]
      %v2482 = vld [vmem:[#allocation2 + $0x74] sm:$0xf]
      %v2483 = vld [vmem:[#allocation2 + $0x78] sm:$0xf]
      %v2484 = vld [vmem:[#allocation2 + $0x7c] sm:$0xf]
      %v2485 = vld [vmem:[%s4] sm:$0xf]
      %v2486 = vld [vmem:[%s4 + $0x4] sm:$0xf]
      %v2487 = vld [vmem:[%s4 + $0x8] sm:$0xf]
      %v2488 = vld [vmem:[%s4 + $0xc] sm:$0xf]
      %v2489 = vld [vmem:[%s4 + $0x10] sm:$0xf]
      %v2490 = vld [vmem:[%s4 + $0x14] sm:$0xf]
      %v2491 = vld [vmem:[%s4 + $0x18] sm:$0xf]
      %v2492 = vld [vmem:[%s4 + $0x1c] sm:$0xf]
      %v2493 = vld [vmem:[%s4 + $0x20] sm:$0xf]
      %v2494 = vld [vmem:[%s4 + $0x24] sm:$0xf]
      %v2495 = vld [vmem:[%s4 + $0x28] sm:$0xf]
      %v2496 = vld [vmem:[%s4 + $0x2c] sm:$0xf]
      %v2497 = vld [vmem:[%s4 + $0x30] sm:$0xf]
      %v2498 = vld [vmem:[%s4 + $0x34] sm:$0xf]
      %v2499 = vld [vmem:[%s4 + $0x38] sm:$0xf]
      %v2500 = vld [vmem:[%s4 + $0x3c] sm:$0xf]
      %v2501 = vld [vmem:[%s5] sm:$0x1]
      %v2503 = vperm.slane %v2501, 0
      %v2537 = vunpack.c.l.b16 %v2453
      %v2538 = vunpack.c.l.b16 %v2454
      %v2539 = vunpack.c.l.b16 %v2455
      %v2540 = vunpack.c.l.b16 %v2456
      %v2541 = vunpack.c.l.b16 %v2457
      %v2542 = vunpack.c.l.b16 %v2458
      %v2543 = vunpack.c.l.b16 %v2459
      %v2544 = vunpack.c.l.b16 %v2460
      %v2545 = vunpack.c.l.b16 %v2461
      %v2546 = vunpack.c.l.b16 %v2462
      %v2547 = vunpack.c.l.b16 %v2463
      %v2548 = vunpack.c.l.b16 %v2464
      %v2549 = vunpack.c.l.b16 %v2465
      %v2550 = vunpack.c.l.b16 %v2466
      %v2551 = vunpack.c.l.b16 %v2467
      %v2552 = vunpack.c.l.b16 %v2468
      %v2553 = vunpack.c.l.b16 %v2469
      %v2554 = vunpack.c.l.b16 %v2470
      %v2555 = vunpack.c.l.b16 %v2471
      %v2556 = vunpack.c.l.b16 %v2472
      %v2557 = vunpack.c.l.b16 %v2473
      %v2558 = vunpack.c.l.b16 %v2474
      %v2559 = vunpack.c.l.b16 %v2475
      %v2560 = vunpack.c.l.b16 %v2476
      %v2561 = vunpack.c.l.b16 %v2477
      %v2562 = vunpack.c.l.b16 %v2478
      %v2563 = vunpack.c.l.b16 %v2479
      %v2564 = vunpack.c.l.b16 %v2480
      %v2565 = vunpack.c.l.b16 %v2481
      %v2566 = vunpack.c.l.b16 %v2482
      %v2567 = vunpack.c.l.b16 %v2483
      %v2568 = vunpack.c.l.b16 %v2484
      %v2569 = vpack.c.b16 %v2538, %v2537
      %v2570 = vpack.c.b16 %v2540, %v2539
      %v2571 = vpack.c.b16 %v2542, %v2541
      %v2572 = vpack.c.b16 %v2544, %v2543
      %v2573 = vpack.c.b16 %v2546, %v2545
      %v2574 = vpack.c.b16 %v2548, %v2547
      %v2575 = vpack.c.b16 %v2550, %v2549
      %v2576 = vpack.c.b16 %v2552, %v2551
      %v2577 = vpack.c.b16 %v2554, %v2553
      %v2578 = vpack.c.b16 %v2556, %v2555
      %v2579 = vpack.c.b16 %v2558, %v2557
      %v2580 = vpack.c.b16 %v2560, %v2559
      %v2581 = vpack.c.b16 %v2562, %v2561
      %v2582 = vpack.c.b16 %v2564, %v2563
      %v2583 = vpack.c.b16 %v2566, %v2565
      %v2584 = vpack.c.b16 %v2568, %v2567
      %v2617 = vunpack.c.l.b16 %v2485
      %v2618 = vunpack.c.l.b16 %v2486
      %v2619 = vunpack.c.l.b16 %v2487
      %v2620 = vunpack.c.l.b16 %v2488
      %v2621 = vunpack.c.l.b16 %v2489
      %v2622 = vunpack.c.l.b16 %v2490
      %v2623 = vunpack.c.l.b16 %v2491
      %v2624 = vunpack.c.l.b16 %v2492
      %v2625 = vunpack.c.l.b16 %v2493
      %v2626 = vunpack.c.l.b16 %v2494
      %v2627 = vunpack.c.l.b16 %v2495
      %v2628 = vunpack.c.l.b16 %v2496
      %v2629 = vunpack.c.l.b16 %v2497
      %v2630 = vunpack.c.l.b16 %v2498
      %v2631 = vunpack.c.l.b16 %v2499
      %v2632 = vunpack.c.l.b16 %v2500
      %v2633 = vpack.c.b16 %v2618, %v2617
      %v2634 = vpack.c.b16 %v2620, %v2619
      %v2635 = vpack.c.b16 %v2622, %v2621
      %v2636 = vpack.c.b16 %v2624, %v2623
      %v2637 = vpack.c.b16 %v2626, %v2625
      %v2638 = vpack.c.b16 %v2628, %v2627
      %v2639 = vpack.c.b16 %v2630, %v2629
      %v2640 = vpack.c.b16 %v2632, %v2631
      %2649 = vmatpush.bf16.msra.mxu0 %v2640
      %2650 = vmatpush.bf16.msra.mxu0 %v2639
      %2651 = vmatpush.bf16.msra.mxu0 %v2638
      %2652 = vmatpush.bf16.msra.mxu0 %v2637
      %2653 = vmatpush.bf16.msra.mxu0 %v2636
      %2654 = vmatpush.bf16.msra.mxu0 %v2635
      %2655 = vmatpush.bf16.msra.mxu0 %v2634
      %2656 = vmatpush.bf16.msra.mxu0 %v2633
      %2657 = vmatmul.bf16.gmra.mxu0 %v2569
      %v2658 = vpop.f32.mrf.mxu0
      %v2659 = vadd.f32 %v2503, %v2658
      %v2660 = vpop.f32.mrf.mxu0
      %v2661 = vadd.f32 %v2503, %v2660
      %2662 = vmatmul.bf16.gmra.mxu0 %v2570
      %v2663 = vpop.f32.mrf.mxu0
      %v2664 = vadd.f32 %v2503, %v2663
      %v2665 = vpop.f32.mrf.mxu0
      %v2666 = vadd.f32 %v2503, %v2665
      %2667 = vmatmul.bf16.gmra.mxu0 %v2571
      %v2668 = vpop.f32.mrf.mxu0
      %v2669 = vadd.f32 %v2503, %v2668
      %v2670 = vpop.f32.mrf.mxu0
      %v2671 = vadd.f32 %v2503, %v2670
      %2672 = vmatmul.bf16.gmra.mxu0 %v2572
      %v2673 = vpop.f32.mrf.mxu0
      %v2674 = vadd.f32 %v2503, %v2673
      %v2675 = vpop.f32.mrf.mxu0
      %v2676 = vadd.f32 %v2503, %v2675
      %2677 = vmatmul.bf16.gmra.mxu0 %v2573
      %v2678 = vpop.f32.mrf.mxu0
      %v2679 = vadd.f32 %v2503, %v2678
      %v2680 = vpop.f32.mrf.mxu0
      %v2681 = vadd.f32 %v2503, %v2680
      %2682 = vmatmul.bf16.gmra.mxu0 %v2574
      %v2683 = vpop.f32.mrf.mxu0
      %v2684 = vadd.f32 %v2503, %v2683
      %v2685 = vpop.f32.mrf.mxu0
      %v2686 = vadd.f32 %v2503, %v2685
      %2687 = vmatmul.bf16.gmra.mxu0 %v2575
      %v2688 = vpop.f32.mrf.mxu0
      %v2689 = vadd.f32 %v2503, %v2688
      %v2690 = vpop.f32.mrf.mxu0
      %v2691 = vadd.f32 %v2503, %v2690
      %2692 = vmatmul.bf16.gmra.mxu0 %v2576
      %v2693 = vpop.f32.mrf.mxu0
      %v2694 = vadd.f32 %v2503, %v2693
      %v2695 = vpop.f32.mrf.mxu0
      %v2696 = vadd.f32 %v2503, %v2695
      %2697 = vmatmul.bf16.gmra.mxu0 %v2577
      %v2698 = vpop.f32.mrf.mxu0
      %v2699 = vadd.f32 %v2503, %v2698
      %v2700 = vpop.f32.mrf.mxu0
      %v2701 = vadd.f32 %v2503, %v2700
      %2702 = vmatmul.bf16.gmra.mxu0 %v2578
      %v2703 = vpop.f32.mrf.mxu0
      %v2704 = vadd.f32 %v2503, %v2703
      %v2705 = vpop.f32.mrf.mxu0
      %v2706 = vadd.f32 %v2503, %v2705
      %2707 = vmatmul.bf16.gmra.mxu0 %v2579
      %v2708 = vpop.f32.mrf.mxu0
      %v2709 = vadd.f32 %v2503, %v2708
      %v2710 = vpop.f32.mrf.mxu0
      %v2711 = vadd.f32 %v2503, %v2710
      %2712 = vmatmul.bf16.gmra.mxu0 %v2580
      %v2713 = vpop.f32.mrf.mxu0
      %v2714 = vadd.f32 %v2503, %v2713
      %v2715 = vpop.f32.mrf.mxu0
      %v2716 = vadd.f32 %v2503, %v2715
      %2717 = vmatmul.bf16.gmra.mxu0 %v2581
      %v2718 = vpop.f32.mrf.mxu0
      %v2719 = vadd.f32 %v2503, %v2718
      %v2720 = vpop.f32.mrf.mxu0
      %v2721 = vadd.f32 %v2503, %v2720
      %2722 = vmatmul.bf16.gmra.mxu0 %v2582
      %v2723 = vpop.f32.mrf.mxu0
      %v2724 = vadd.f32 %v2503, %v2723
      %v2725 = vpop.f32.mrf.mxu0
      %v2726 = vadd.f32 %v2503, %v2725
      %2727 = vmatmul.bf16.gmra.mxu0 %v2583
      %v2728 = vpop.f32.mrf.mxu0
      %v2729 = vadd.f32 %v2503, %v2728
      %v2730 = vpop.f32.mrf.mxu0
      %v2731 = vadd.f32 %v2503, %v2730
      %2732 = vmatmul.bf16.gmra.mxu0 %v2584
      %v2733 = vpop.f32.mrf.mxu0
      %v2734 = vadd.f32 %v2503, %v2733
      %v2735 = vpop.f32.mrf.mxu0
      %v2736 = vadd.f32 %v2503, %v2735
      %2737 = vdwg.mxu0
      %v2738 = vpack.c.bf16 %v2659, %v2659
      %v2739 = vpack.c.bf16 %v2661, %v2661
      %v2740 = vpack.c.bf16 %v2664, %v2664
      %v2741 = vpack.c.bf16 %v2666, %v2666
      %v2742 = vpack.c.bf16 %v2669, %v2669
      %v2743 = vpack.c.bf16 %v2671, %v2671
      %v2744 = vpack.c.bf16 %v2674, %v2674
      %v2745 = vpack.c.bf16 %v2676, %v2676
      %v2746 = vpack.c.bf16 %v2679, %v2679
      %v2747 = vpack.c.bf16 %v2681, %v2681
      %v2748 = vpack.c.bf16 %v2684, %v2684
      %v2749 = vpack.c.bf16 %v2686, %v2686
      %v2750 = vpack.c.bf16 %v2689, %v2689
      %v2751 = vpack.c.bf16 %v2691, %v2691
      %v2752 = vpack.c.bf16 %v2694, %v2694
      %v2753 = vpack.c.bf16 %v2696, %v2696
      %v2754 = vpack.c.bf16 %v2699, %v2699
      %v2755 = vpack.c.bf16 %v2701, %v2701
      %v2756 = vpack.c.bf16 %v2704, %v2704
      %v2757 = vpack.c.bf16 %v2706, %v2706
      %v2758 = vpack.c.bf16 %v2709, %v2709
      %v2759 = vpack.c.bf16 %v2711, %v2711
      %v2760 = vpack.c.bf16 %v2714, %v2714
      %v2761 = vpack.c.bf16 %v2716, %v2716
      %v2762 = vpack.c.bf16 %v2719, %v2719
      %v2763 = vpack.c.bf16 %v2721, %v2721
      %v2764 = vpack.c.bf16 %v2724, %v2724
      %v2765 = vpack.c.bf16 %v2726, %v2726
      %v2766 = vpack.c.bf16 %v2729, %v2729
      %v2767 = vpack.c.bf16 %v2731, %v2731
      %v2768 = vpack.c.bf16 %v2734, %v2734
      %v2769 = vpack.c.bf16 %v2736, %v2736
      %2770 = vst [vmem:[%s370] sm:$0xf] %v2738
      %2771 = vst [vmem:[%s370 + $0x4] sm:$0xf] %v2739
      %2772 = vst [vmem:[%s370 + $0x8] sm:$0xf] %v2740
      %2773 = vst [vmem:[%s370 + $0xc] sm:$0xf] %v2741
      %2774 = vst [vmem:[%s370 + $0x10] sm:$0xf] %v2742
      %2775 = vst [vmem:[%s370 + $0x14] sm:$0xf] %v2743
      %2776 = vst [vmem:[%s370 + $0x18] sm:$0xf] %v2744
      %2777 = vst [vmem:[%s370 + $0x1c] sm:$0xf] %v2745
      %2778 = vst [vmem:[%s370 + $0x20] sm:$0xf] %v2746
      %2779 = vst [vmem:[%s370 + $0x24] sm:$0xf] %v2747
      %2780 = vst [vmem:[%s370 + $0x28] sm:$0xf] %v2748
      %2781 = vst [vmem:[%s370 + $0x2c] sm:$0xf] %v2749
      %2782 = vst [vmem:[%s370 + $0x30] sm:$0xf] %v2750
      %2783 = vst [vmem:[%s370 + $0x34] sm:$0xf] %v2751
      %2784 = vst [vmem:[%s370 + $0x38] sm:$0xf] %v2752
      %2785 = vst [vmem:[%s370 + $0x3c] sm:$0xf] %v2753
      %2786 = vst [vmem:[%s370 + $0x40] sm:$0xf] %v2754
      %2787 = vst [vmem:[%s370 + $0x44] sm:$0xf] %v2755
      %2788 = vst [vmem:[%s370 + $0x48] sm:$0xf] %v2756
      %2789 = vst [vmem:[%s370 + $0x4c] sm:$0xf] %v2757
      %2790 = vst [vmem:[%s370 + $0x50] sm:$0xf] %v2758
      %2791 = vst [vmem:[%s370 + $0x54] sm:$0xf] %v2759
      %2792 = vst [vmem:[%s370 + $0x58] sm:$0xf] %v2760
      %2793 = vst [vmem:[%s370 + $0x5c] sm:$0xf] %v2761
      %2794 = vst [vmem:[%s370 + $0x60] sm:$0xf] %v2762
      %2795 = vst [vmem:[%s370 + $0x64] sm:$0xf] %v2763
      %2796 = vst [vmem:[%s370 + $0x68] sm:$0xf] %v2764
      %2797 = vst [vmem:[%s370 + $0x6c] sm:$0xf] %v2765
      %2798 = vst [vmem:[%s370 + $0x70] sm:$0xf] %v2766
      %2799 = vst [vmem:[%s370 + $0x74] sm:$0xf] %v2767
      %2800 = vst [vmem:[%s370 + $0x78] sm:$0xf] %v2768
      %2801 = vst [vmem:[%s370 + $0x7c] sm:$0xf] %v2769
      %s2802 = smul.u32 32, %s22
      %p2803 = scmp.lt.s32.totalorder %s21, 1
      %s2804 = scalar_select %p2803, %s21, 1
      %p2805 = scmp.lt.s32.totalorder %s2802, 31
      %s2806 = scalar_select %p2805, %s2802, 31
      %s2807 = smul.addr %s2804, 32
      %s2808 = sadd.s32 %s2806, %s2807
      %s2809 = smul.addr %s2808, 4
      %s2810 = scalar_lea.vmem %s6, %s2809
      // Predicated region
      $region45: #{dep_sep_conv.1} parent=43 // pred_check
        %p2811 = pneg %p193
      $region46: #{dep_sep_conv.1} parent=43 // pred_check_branch
        %2813 = sbr.rel (%p2811) target = $region48
      $region47: #{dep_sep_conv.1} parent=43 // pred_region
        %s2814 = smul.u32 32, %s22
      $region48: #{dep_sep_conv.1} parent=43 // pred_fallthru
        _
    $region44: #{dep_sep_conv.1} parent=5 // pred_fallthru
      _
    %p2815 = scmp.le.s32.totalorder 2, %s12
    // Predicated region
    $region49: #{dep_sep_conv.1} parent=5 // pred_check
      %p2816 = pneg %p2815
    $region50: #{dep_sep_conv.1} parent=5 // pred_check_branch
      %2818 = sbr.rel (%p2816) target = $region52
    $region51: #{dep_sep_conv.1} parent=5 // pred_region
      %s2819 = ssub.s32 %s12, 2
      // Predicated region
      $region53: #{dep_sep_conv.1} parent=51 // pred_check
        %p2820 = pneg %p199
      $region54: #{dep_sep_conv.1} parent=51 // pred_check_branch
        %2822 = sbr.rel (%p2820) target = $region56
      $region55: #{dep_sep_conv.1} parent=51 // pred_region
        %s2823 = smul.u32 32, %s24
        %p2824 = scmp.lt.s32.totalorder %s23, 1
        %s2825 = scalar_select %p2824, %s23, 1
        %p2826 = scmp.lt.s32.totalorder %s2823, 31
        %s2827 = scalar_select %p2826, %s2823, 31
        %s2828 = smul.addr %s2825, 32
        %s2829 = sadd.s32 %s2827, %s2828
        %s2830 = smul.addr %s2829, 4
        %s2831 = scalar_lea.vmem %s6, %s2830
      $region56: #{dep_sep_conv.1} parent=51 // pred_fallthru
        _
    $region52: #{dep_sep_conv.1} parent=5 // pred_fallthru
      _
  $region6: #{dep_sep_conv.1} parent=0 // loop_footer
    %s16 = sadd.s32 1, %s12
  $region7: #{dep_sep_conv.1} parent=0 // loop_footer_branch
    %11 = sbr.rel target = $region3
  $region8: #{dep_sep_conv.1} parent=0 // loop_exit
    _

</llo_original>
